<compile_context>
chip_gen: v6e
topology: v6e:2x2x1
jax: 0.10.0
libtpu: 0.0.40
codegen_flags: <defaults>
</compile_context>

<pallas_src>
import numpy as np
import jax
import jax.numpy as jnp
from jax.experimental import pallas as pl
from jax.experimental.pallas import tpu as pltpu

# ---- search-space constants (ctnas mobilespace defaults) -------------------
DEPTHS = (2, 3, 4)
KERNEL_SIZES = (3, 5, 7)
EXPAND_RATIOS = (3, 4, 6)
N_UNITS = 5

C_LANES = 128  # head-logit columns padded to one full vreg lane row


def arch2str(depths, ks, ratios):
    join = lambda items: ",".join(map(str, items))
    return f"{join(depths)}:{join(ks)}:{join(ratios)}"


# ---------------------------------------------------------------------------
# Kernel
# ---------------------------------------------------------------------------
def make_controller_kernel(hidden_size, schedule, ncls, force_uniform, act_lanes):
    """`schedule` / `ncls` are static Python tuples -> the T-step loop is fully
    unrolled; head index, class count and slice bounds are compile-time constants."""
    H = int(hidden_size)
    CL = C_LANES
    T = len(schedule)
    A = int(act_lanes)

    def sample_head(ls, u):
        # ls: list of n (1,1) f32 logit lanes; u: scalar uniform in [0,1)
        n = len(ls)
        m = ls[0]
        for j in range(1, n):
            m = jnp.maximum(m, ls[j])
        d = [ls[j] - m for j in range(n)]
        e = [jnp.exp(dj) for dj in d]
        s = e[0]
        for j in range(1, n):
            s = s + e[j]
        # ---- sample via unnormalized CDF (no divide on the critical path) ----
        thr = s * u
        cdf = e[0]
        a = (cdf < thr).astype(jnp.int32)
        for j in range(1, n - 1):
            cdf = cdf + e[j]
            a = a + (cdf < thr).astype(jnp.int32)
        # n-1 comparisons -> a is structurally in [0, n-1], no clamp needed.
        # ---- log-prob / entropy (only feed accumulators, off critical path) --
        logs = jnp.log(s)
        da = d[n - 1]
        for j in range(n - 2, -1, -1):
            da = jnp.where(a == j, d[j], da)
        lp = da - logs                                   # (1,1)
        wsum = e[0] * d[0]
        for j in range(1, n):
            wsum = wsum + e[j] * d[j]
        ent = logs - wsum * pl.reciprocal(s, approx=True)  # (1,1)
        return a, lp, ent

    def kernel(u_ref,                                   # SMEM (T,) uniforms
               x0g_ref, embg_ref, whcat_ref, hb_ref,    # VMEM params
               acts_ref, sums_ref):                     # VMEM (1,A) int32 / SMEM (2,) f32
        col_act = jax.lax.broadcasted_iota(jnp.int32, (1, A), 1)

        eg = x0g_ref[...]                                # (1, 4H) f32: x0 @ Wih + b
        hgate = jnp.zeros((1, 4 * H), jnp.float32)       # h_{-1} @ Whh == 0
        c = jnp.zeros((1, H), jnp.float32)
        slp = jnp.zeros((1, 1), jnp.float32)
        sent = jnp.zeros((1, 1), jnp.float32)
        acts = jnp.zeros((1, A), jnp.int32)

        for step in range(T):                 # fully unrolled (static head schedule)
            head = schedule[step]
            n = ncls[head]
            u = u_ref[step]

            if force_uniform:
                # reference semantics: logits = zeros, LSTM state stays frozen
                ls = [jnp.zeros((1, 1), jnp.float32) for _ in range(n)]
            else:
                # LSTMCell: gates = (embed@Wih + b) + h@Whh, gate order (i, f, g, o)
                gates = eg + hgate                               # (1, 4H)
                i_g = jax.nn.sigmoid(gates[:, 0 * H:1 * H])
                f_g = jax.nn.sigmoid(gates[:, 1 * H:2 * H])
                g_g = jnp.tanh(gates[:, 2 * H:3 * H])
                o_g = jax.nn.sigmoid(gates[:, 3 * H:4 * H])
                c = f_g * c + i_g * g_g
                h = o_g * jnp.tanh(c)                            # (1, H)

                # fused [head | Whh] matmul: one MXU push per step.
                wc = whcat_ref[head]                             # (H, CL+4H) bf16
                comb = jnp.dot(h.astype(jnp.bfloat16), wc,
                               preferred_element_type=jnp.float32)  # (1, CL+4H)
                hgate = comb[:, CL:CL + 4 * H]                   # for next step
                lvec = comb[:, 0:CL] + hb_ref[head]              # (1, CL)
                ls = [lvec[:, j:j + 1] for j in range(n)]        # n valid lanes only

            a, lp, ent = sample_head(ls, u)

            if not force_uniform:
                # next-step input-gate contribution: VPU select over precomputed rows
                egtbl = embg_ref[head]                           # (n_max, 4H) f32
                new_eg = egtbl[n - 1:n, :]
                for j in range(n - 2, -1, -1):
                    new_eg = jnp.where(a == j, egtbl[j:j + 1, :], new_eg)
                eg = new_eg

            acts = jnp.where(col_act == step, a, acts)
            slp = slp + lp
            sent = sent + ent

        acts_ref[...] = acts
        sums_ref[0] = jnp.sum(slp)
        sums_ref[1] = jnp.sum(sent)

    return kernel


# ---------------------------------------------------------------------------
# Controller (parameter setup + jitted wrapper around pallas_call)
# ---------------------------------------------------------------------------
class MBSpaceControllerPallas:
    def __init__(self, key, n_conditions=1, n_unit=N_UNITS, depths=DEPTHS,
                 kernel_sizes=KERNEL_SIZES, expand_ratios=EXPAND_RATIOS,
                 hidden_size=64, init_range=0.1):
        self.n_unit = n_unit
        self.depths = list(depths)
        self.kernel_sizes = list(kernel_sizes)
        self.expand_ratios = list(expand_ratios)
        self.hidden_size = hidden_size
        H = hidden_size
        self.n_max = max(len(self.depths), len(self.expand_ratios),
                         len(self.kernel_sizes))
        CL = C_LANES

        u = lambda k, shape: jax.random.uniform(
            k, shape, jnp.float32, minval=-init_range, maxval=init_range)
        ks = jax.random.split(key, 14)

        # embeddings (rows padded to n_max)
        def pad_rows(x):
            return jnp.pad(x, ((0, self.n_max - x.shape[0]), (0, 0)))
        self.cond_emb = u(ks[0], (n_conditions, H))
        dep_emb = pad_rows(u(ks[1], (len(self.depths), H)))
        rat_emb = pad_rows(u(ks[2], (len(self.expand_ratios), H)))
        ks_emb = pad_rows(u(ks[3], (len(self.kernel_sizes), H)))
        emb = jnp.stack([dep_emb, rat_emb, ks_emb])             # (3, n_max, H)

        # LSTMCell params (torch layout (4H, H), gate order i,f,g,o)
        w_ih = u(ks[4], (4 * H, H))
        w_hh = u(ks[5], (4 * H, H))
        b_ih = u(ks[6], (4 * H,))
        b_hh = u(ks[7], (4 * H,))
        self.wih = w_ih.T                                       # (H, 4H) f32
        whh = w_hh.T                                            # (H, 4H) f32
        self.b = (b_ih + b_hh)[None, :]                         # (1, 4H) f32

        # linear heads (torch Linear weight (out,in), bias (out,)), lane-padded
        def head(kw, kb, n_out):
            w = u(kw, (n_out, H))
            bb = u(kb, (n_out,))
            wT = jnp.pad(w.T, ((0, 0), (0, CL - n_out)))        # (H, CL)
            bp = jnp.pad(bb, (0, CL - n_out))[None, :]          # (1, CL)
            return wT, bp
        dw, db = head(ks[8], ks[9], len(self.depths))
        rw, rb = head(ks[10], ks[11], len(self.expand_ratios))
        kw_, kb_ = head(ks[12], ks[13], len(self.kernel_sizes))
        head_w = jnp.stack([dw, rw, kw_])                       # (3, H, CL) f32
        self.head_b = jnp.stack([db, rb, kb_])                  # (3, 1, CL) f32

        # fused per-head [head_w | Whh] matrices, bf16 (head/logit columns first)
        self.whcat = jnp.concatenate(
            [head_w, jnp.broadcast_to(whh[None], (3, H, 4 * H))],
            axis=2).astype(jnp.bfloat16)                        # (3, H, CL+4H)

        # precomputed input-gate table: emb @ Wih + b  (f32, feeds VPU directly)
        self.embgate = (jnp.einsum('hnd,dg->hng', emb, self.wih)
                        + self.b[None]).astype(jnp.float32)     # (3, n_max, 4H)

        self.ncls = (len(self.depths), len(self.expand_ratios),
                     len(self.kernel_sizes))

        # static step schedule: per unit -> depth head, then (ratio, ks) x max(depths)
        sched = []
        for _ in range(self.n_unit):
            sched.append(0)
            for _ in range(max(self.depths)):
                sched.extend([1, 2])
        self.schedule = tuple(sched)
        self.n_steps = len(sched)
        self.act_lanes = 128 * ((self.n_steps + 127) // 128)

        self._samplers = {}

    def _build_sampler(self, force_uniform):
        T = self.n_steps
        A = self.act_lanes
        kernel = make_controller_kernel(self.hidden_size, self.schedule,
                                        self.ncls, force_uniform, A)
        smem = pl.BlockSpec(memory_space=pltpu.MemorySpace.SMEM)
        vmem = pl.BlockSpec(memory_space=pltpu.MemorySpace.VMEM)
        call = pl.pallas_call(
            kernel,
            out_shape=(jax.ShapeDtypeStruct((1, A), jnp.int32),
                       jax.ShapeDtypeStruct((2,), jnp.float32)),
            in_specs=[smem,                    # uniforms
                      vmem, vmem, vmem, vmem],  # x0gate, embgate, whcat, hb
            out_specs=(vmem, smem),
        )

        @jax.jit
        def sample(key, x0, wih, b, embgate, whcat, hb):
            uniforms = jax.random.uniform(key, (T,), jnp.float32)
            x0g = jnp.dot(x0, wih) + b          # (1, 4H); tiny, outside the kernel
            acts, sums = call(uniforms, x0g, embgate, whcat, hb)
            return acts[0, :T], sums

        return sample

    def __call__(self, sample_key, condition=None, force_uniform=False):
        H = self.hidden_size
        fu = bool(force_uniform)
        if fu not in self._samplers:
            self._samplers[fu] = self._build_sampler(fu)
        if condition is None:
            x0 = jnp.zeros((1, H), jnp.float32)
        else:
            x0 = self.cond_emb[jnp.asarray(condition)].reshape(1, H)

        actions_dev, sums_dev = self._samplers[fu](
            sample_key, x0, self.wih, self.b,
            self.embgate, self.whcat, self.head_b)

        # single host sync for the architecture string
        acts = np.asarray(jax.device_get(actions_dev))
        depths_out, ks_out, ratios_out = [], [], []
        for head, a in zip(self.schedule, acts):
            a = int(a)
            if head == 0:
                depths_out.append(self.depths[a])
            elif head == 1:
                ratios_out.append(self.expand_ratios[a])
            else:
                ks_out.append(self.kernel_sizes[a])
        arch = arch2str(depths_out, ks_out, ratios_out)
        # (1,)-shaped device arrays, like torch with batch_size=1
        return arch, sums_dev[0:1], sums_dev[1:2]


# TODO(synk): torch.distributions.Categorical uses torch's RNG; here sampling is an
# inverse-CDF draw from jit-generated uniforms — same distribution, different stream.
# TODO(synk): the reference module is batch_size=1; batching B rollouts into the matmul
# row dim (and the 2nd v7x TensorCore) is the big throughput lever but changes the API.

if __name__ == "__main__":
    key = jax.random.PRNGKey(0)
    pkey, skey1, skey2 = jax.random.split(key, 3)

    # small config: 2 units, hidden=32, batch=1  (T = 2 * (1 + 2*4) = 18 steps)
    ctrl = MBSpaceControllerPallas(pkey, n_conditions=1, n_unit=2, hidden_size=32)

    arch, sum_log_p, sum_entropy = ctrl(skey1, condition=None, force_uniform=False)
    sum_log_p, sum_entropy = jax.block_until_ready((sum_log_p, sum_entropy))
    assert np.isfinite(float(sum_log_p[0])) and float(sum_log_p[0]) <= 0.0
    assert np.isfinite(float(sum_entropy[0])) and float(sum_entropy[0]) >= 0.0
    assert len(arch.split(":")) == 3

    # force_uniform: every step samples uniformly over 3 classes
    arch_u, lp_u, ent_u = ctrl(skey2, condition=None, force_uniform=True)
    lp_u, ent_u = jax.block_until_ready((lp_u, ent_u))
    T = ctrl.n_steps
    assert abs(float(ent_u[0]) - T * np.log(3.0)) < 1e-3 * T
    assert abs(float(lp_u[0]) + T * np.log(3.0)) < 1e-3 * T
    assert len(arch_u.split(":")) == 3

    print("KERNEL_OK")
</pallas_src>

<mosaic_0001>
module attributes {stable_mosaic.version = 11 : i64} {
  func.func @kernel(%arg0: memref<18xf32, #tpu.memory_space<smem>>, %arg1: memref<1x128xf32, #tpu.memory_space<vmem>>, %arg2: memref<3x3x128xf32, #tpu.memory_space<vmem>>, %arg3: memref<3x32x256xbf16, #tpu.memory_space<vmem>>, %arg4: memref<3x1x128xf32, #tpu.memory_space<vmem>>, %arg5: memref<1x128xi32, #tpu.memory_space<vmem>>, %arg6: memref<2xf32, #tpu.memory_space<smem>>) attributes {dimension_semantics = [], scalar_prefetch = 0 : i64, scratch_operands = 0 : i64, tpu.core_type = #tpu.core_type<tc>} {
    %0 = tpu.iota {dimensions = array<i32: 1>} : vector<1x128xi32>
    %c0 = arith.constant 0 : index
    %c0_0 = arith.constant 0 : index
    %1 = vector.load %arg1[%c0, %c0_0] : memref<1x128xf32, #tpu.memory_space<vmem>>, vector<1x128xf32>
    %cst = arith.constant 0.000000e+00 : f32
    %2 = vector.broadcast %cst : f32 to vector<1x128xf32>
    %cst_1 = arith.constant 0.000000e+00 : f32
    %3 = vector.broadcast %cst_1 : f32 to vector<1x32xf32>
    %cst_2 = arith.constant 0.000000e+00 : f32
    %4 = vector.broadcast %cst_2 : f32 to vector<1x1xf32>
    %cst_3 = arith.constant 0.000000e+00 : f32
    %5 = vector.broadcast %cst_3 : f32 to vector<1x1xf32>
    %c0_i32 = arith.constant 0 : i32
    %6 = vector.broadcast %c0_i32 : i32 to vector<1x128xi32>
    %c0_4 = arith.constant 0 : index
    %7 = memref.load %arg0[%c0_4] : memref<18xf32, #tpu.memory_space<smem>>
    %8 = arith.addf %1, %2 : vector<1x128xf32>
    %9 = vector.extract_strided_slice %8 {offsets = [0, 0], sizes = [1, 32], strides = [1, 1]} : vector<1x128xf32> to vector<1x32xf32>
    %10 = arith.negf %9 : vector<1x32xf32>
    %11 = math.exp %10 : vector<1x32xf32>
    %cst_5 = arith.constant 1.000000e+00 : f32
    %12 = vector.broadcast %cst_5 : f32 to vector<1x32xf32>
    %13 = arith.addf %12, %11 : vector<1x32xf32>
    %14 = arith.divf %12, %13 : vector<1x32xf32>
    %15 = vector.extract_strided_slice %8 {offsets = [0, 32], sizes = [1, 32], strides = [1, 1]} : vector<1x128xf32> to vector<1x32xf32>
    %16 = arith.negf %15 : vector<1x32xf32>
    %17 = math.exp %16 : vector<1x32xf32>
    %cst_6 = arith.constant 1.000000e+00 : f32
    %18 = vector.broadcast %cst_6 : f32 to vector<1x32xf32>
    %19 = arith.addf %18, %17 : vector<1x32xf32>
    %20 = arith.divf %18, %19 : vector<1x32xf32>
    %21 = vector.extract_strided_slice %8 {offsets = [0, 64], sizes = [1, 32], strides = [1, 1]} : vector<1x128xf32> to vector<1x32xf32>
    %22 = math.tanh %21 : vector<1x32xf32>
    %23 = vector.extract_strided_slice %8 {offsets = [0, 96], sizes = [1, 32], strides = [1, 1]} : vector<1x128xf32> to vector<1x32xf32>
    %24 = arith.negf %23 : vector<1x32xf32>
    %25 = math.exp %24 : vector<1x32xf32>
    %cst_7 = arith.constant 1.000000e+00 : f32
    %26 = vector.broadcast %cst_7 : f32 to vector<1x32xf32>
    %27 = arith.addf %26, %25 : vector<1x32xf32>
    %28 = arith.divf %26, %27 : vector<1x32xf32>
    %29 = arith.mulf %20, %3 : vector<1x32xf32>
    %30 = arith.mulf %14, %22 : vector<1x32xf32>
    %31 = arith.addf %29, %30 : vector<1x32xf32>
    %32 = math.tanh %31 : vector<1x32xf32>
    %33 = arith.mulf %28, %32 : vector<1x32xf32>
    %c0_8 = arith.constant 0 : index
    %c0_9 = arith.constant 0 : index
    %c0_10 = arith.constant 0 : index
    %34 = vector.load %arg3[%c0_8, %c0_9, %c0_10] : memref<3x32x256xbf16, #tpu.memory_space<vmem>>, vector<1x32x256xbf16>
    %35 = vector.shape_cast %34 : vector<1x32x256xbf16> to vector<32x256xbf16>
    %36 = arith.truncf %33 : vector<1x32xf32> to vector<1x32xbf16>
    %cst_11 = arith.constant dense<0.000000e+00> : vector<1x256xf32>
    %37 = tpu.matmul %36, %35, %cst_11 {dimension_numbers = #tpu.dot_dimension_numbers<[1], [0], [0], [1], [0, 0, 1, 1], [], []>} : vector<1x32xbf16>, vector<32x256xbf16>, vector<1x256xf32> -> vector<1x256xf32>
    %38 = vector.extract_strided_slice %37 {offsets = [0, 128], sizes = [1, 128], strides = [1, 1]} : vector<1x256xf32> to vector<1x128xf32>
    %39 = vector.extract_strided_slice %37 {offsets = [0, 0], sizes = [1, 128], strides = [1, 1]} : vector<1x256xf32> to vector<1x128xf32>
    %c0_12 = arith.constant 0 : index
    %c0_13 = arith.constant 0 : index
    %c0_14 = arith.constant 0 : index
    %40 = vector.load %arg4[%c0_12, %c0_13, %c0_14] : memref<3x1x128xf32, #tpu.memory_space<vmem>>, vector<1x1x128xf32>
    %41 = vector.shape_cast %40 : vector<1x1x128xf32> to vector<1x128xf32>
    %42 = arith.addf %39, %41 : vector<1x128xf32>
    %43 = vector.extract_strided_slice %42 {offsets = [0, 0], sizes = [1, 1], strides = [1, 1]} : vector<1x128xf32> to vector<1x1xf32>
    %44 = vector.extract_strided_slice %42 {offsets = [0, 1], sizes = [1, 1], strides = [1, 1]} : vector<1x128xf32> to vector<1x1xf32>
    %45 = vector.extract_strided_slice %42 {offsets = [0, 2], sizes = [1, 1], strides = [1, 1]} : vector<1x128xf32> to vector<1x1xf32>
    %46 = arith.maximumf %43, %44 : vector<1x1xf32>
    %47 = arith.maximumf %46, %45 : vector<1x1xf32>
    %48 = arith.subf %43, %47 : vector<1x1xf32>
    %49 = arith.subf %44, %47 : vector<1x1xf32>
    %50 = arith.subf %45, %47 : vector<1x1xf32>
    %51 = math.exp %48 : vector<1x1xf32>
    %52 = math.exp %49 : vector<1x1xf32>
    %53 = math.exp %50 : vector<1x1xf32>
    %54 = arith.addf %51, %52 : vector<1x1xf32>
    %55 = arith.addf %54, %53 : vector<1x1xf32>
    %56 = vector.broadcast %7 : f32 to vector<1x1xf32>
    %57 = arith.mulf %55, %56 : vector<1x1xf32>
    %58 = arith.cmpf olt, %51, %57 : vector<1x1xf32>
    %59 = arith.extui %58 : vector<1x1xi1> to vector<1x1xi32>
    %60 = arith.addf %51, %52 : vector<1x1xf32>
    %61 = arith.cmpf olt, %60, %57 : vector<1x1xf32>
    %62 = arith.extui %61 : vector<1x1xi1> to vector<1x1xi32>
    %63 = arith.addi %59, %62 : vector<1x1xi32>
    %64 = math.log %55 : vector<1x1xf32>
    %c1_i32 = arith.constant 1 : i32
    %65 = vector.broadcast %c1_i32 : i32 to vector<1x1xi32>
    %66 = arith.cmpi eq, %63, %65 : vector<1x1xi32>
    %67 = arith.select %66, %49, %50 : vector<1x1xi1>, vector<1x1xf32>
    %c0_i32_15 = arith.constant 0 : i32
    %68 = vector.broadcast %c0_i32_15 : i32 to vector<1x1xi32>
    %69 = arith.cmpi eq, %63, %68 : vector<1x1xi32>
    %70 = arith.select %69, %48, %67 : vector<1x1xi1>, vector<1x1xf32>
    %71 = arith.subf %70, %64 : vector<1x1xf32>
    %72 = arith.mulf %51, %48 : vector<1x1xf32>
    %73 = arith.mulf %52, %49 : vector<1x1xf32>
    %74 = arith.addf %72, %73 : vector<1x1xf32>
    %75 = arith.mulf %53, %50 : vector<1x1xf32>
    %76 = arith.addf %74, %75 : vector<1x1xf32>
    %77 = tpu.reciprocal %55 {approx = true} : vector<1x1xf32> -> vector<1x1xf32>
    %78 = arith.mulf %76, %77 : vector<1x1xf32>
    %79 = arith.subf %64, %78 : vector<1x1xf32>
    %c0_16 = arith.constant 0 : index
    %c0_17 = arith.constant 0 : index
    %c0_18 = arith.constant 0 : index
    %80 = vector.load %arg2[%c0_16, %c0_17, %c0_18] : memref<3x3x128xf32, #tpu.memory_space<vmem>>, vector<1x3x128xf32>
    %81 = vector.shape_cast %80 : vector<1x3x128xf32> to vector<3x128xf32>
    %82 = vector.extract_strided_slice %81 {offsets = [2, 0], sizes = [1, 128], strides = [1, 1]} : vector<3x128xf32> to vector<1x128xf32>
    %c1_i32_19 = arith.constant 1 : i32
    %83 = vector.broadcast %c1_i32_19 : i32 to vector<1x1xi32>
    %84 = arith.cmpi eq, %63, %83 : vector<1x1xi32>
    %85 = vector.extract_strided_slice %81 {offsets = [1, 0], sizes = [1, 128], strides = [1, 1]} : vector<3x128xf32> to vector<1x128xf32>
    %86 = vector.shape_cast %84 : vector<1x1xi1> to vector<1x1xi1>
    %87 = vector.broadcast %86 : vector<1x1xi1> to vector<1x128xi1>
    %88 = arith.select %87, %85, %82 : vector<1x128xi1>, vector<1x128xf32>
    %c0_i32_20 = arith.constant 0 : i32
    %89 = vector.broadcast %c0_i32_20 : i32 to vector<1x1xi32>
    %90 = arith.cmpi eq, %63, %89 : vector<1x1xi32>
    %91 = vector.extract_strided_slice %81 {offsets = [0, 0], sizes = [1, 128], strides = [1, 1]} : vector<3x128xf32> to vector<1x128xf32>
    %92 = vector.shape_cast %90 : vector<1x1xi1> to vector<1x1xi1>
    %93 = vector.broadcast %92 : vector<1x1xi1> to vector<1x128xi1>
    %94 = arith.select %93, %91, %88 : vector<1x128xi1>, vector<1x128xf32>
    %c0_i32_21 = arith.constant 0 : i32
    %95 = vector.broadcast %c0_i32_21 : i32 to vector<1x128xi32>
    %96 = arith.cmpi eq, %0, %95 : vector<1x128xi32>
    %97 = vector.shape_cast %63 : vector<1x1xi32> to vector<1x1xi32>
    %98 = vector.broadcast %97 : vector<1x1xi32> to vector<1x128xi32>
    %99 = arith.select %96, %98, %6 : vector<1x128xi1>, vector<1x128xi32>
    %100 = arith.addf %4, %71 : vector<1x1xf32>
    %101 = arith.addf %5, %79 : vector<1x1xf32>
    %c1 = arith.constant 1 : index
    %102 = memref.load %arg0[%c1] : memref<18xf32, #tpu.memory_space<smem>>
    %103 = arith.addf %94, %38 : vector<1x128xf32>
    %104 = vector.extract_strided_slice %103 {offsets = [0, 0], sizes = [1, 32], strides = [1, 1]} : vector<1x128xf32> to vector<1x32xf32>
    %105 = arith.negf %104 : vector<1x32xf32>
    %106 = math.exp %105 : vector<1x32xf32>
    %cst_22 = arith.constant 1.000000e+00 : f32
    %107 = vector.broadcast %cst_22 : f32 to vector<1x32xf32>
    %108 = arith.addf %107, %106 : vector<1x32xf32>
    %109 = arith.divf %107, %108 : vector<1x32xf32>
    %110 = vector.extract_strided_slice %103 {offsets = [0, 32], sizes = [1, 32], strides = [1, 1]} : vector<1x128xf32> to vector<1x32xf32>
    %111 = arith.negf %110 : vector<1x32xf32>
    %112 = math.exp %111 : vector<1x32xf32>
    %cst_23 = arith.constant 1.000000e+00 : f32
    %113 = vector.broadcast %cst_23 : f32 to vector<1x32xf32>
    %114 = arith.addf %113, %112 : vector<1x32xf32>
    %115 = arith.divf %113, %114 : vector<1x32xf32>
    %116 = vector.extract_strided_slice %103 {offsets = [0, 64], sizes = [1, 32], strides = [1, 1]} : vector<1x128xf32> to vector<1x32xf32>
    %117 = math.tanh %116 : vector<1x32xf32>
    %118 = vector.extract_strided_slice %103 {offsets = [0, 96], sizes = [1, 32], strides = [1, 1]} : vector<1x128xf32> to vector<1x32xf32>
    %119 = arith.negf %118 : vector<1x32xf32>
    %120 = math.exp %119 : vector<1x32xf32>
    %cst_24 = arith.constant 1.000000e+00 : f32
    %121 = vector.broadcast %cst_24 : f32 to vector<1x32xf32>
    %122 = arith.addf %121, %120 : vector<1x32xf32>
    %123 = arith.divf %121, %122 : vector<1x32xf32>
    %124 = arith.mulf %115, %31 : vector<1x32xf32>
    %125 = arith.mulf %109, %117 : vector<1x32xf32>
    %126 = arith.addf %124, %125 : vector<1x32xf32>
    %127 = math.tanh %126 : vector<1x32xf32>
    %128 = arith.mulf %123, %127 : vector<1x32xf32>
    %c1_25 = arith.constant 1 : index
    %c0_26 = arith.constant 0 : index
    %c0_27 = arith.constant 0 : index
    %129 = vector.load %arg3[%c1_25, %c0_26, %c0_27] : memref<3x32x256xbf16, #tpu.memory_space<vmem>>, vector<1x32x256xbf16>
    %130 = vector.shape_cast %129 : vector<1x32x256xbf16> to vector<32x256xbf16>
    %131 = arith.truncf %128 : vector<1x32xf32> to vector<1x32xbf16>
    %cst_28 = arith.constant dense<0.000000e+00> : vector<1x256xf32>
    %132 = tpu.matmul %131, %130, %cst_28 {dimension_numbers = #tpu.dot_dimension_numbers<[1], [0], [0], [1], [0, 0, 1, 1], [], []>} : vector<1x32xbf16>, vector<32x256xbf16>, vector<1x256xf32> -> vector<1x256xf32>
    %133 = vector.extract_strided_slice %132 {offsets = [0, 128], sizes = [1, 128], strides = [1, 1]} : vector<1x256xf32> to vector<1x128xf32>
    %134 = vector.extract_strided_slice %132 {offsets = [0, 0], sizes = [1, 128], strides = [1, 1]} : vector<1x256xf32> to vector<1x128xf32>
    %c1_29 = arith.constant 1 : index
    %c0_30 = arith.constant 0 : index
    %c0_31 = arith.constant 0 : index
    %135 = vector.load %arg4[%c1_29, %c0_30, %c0_31] : memref<3x1x128xf32, #tpu.memory_space<vmem>>, vector<1x1x128xf32>
    %136 = vector.shape_cast %135 : vector<1x1x128xf32> to vector<1x128xf32>
    %137 = arith.addf %134, %136 : vector<1x128xf32>
    %138 = vector.extract_strided_slice %137 {offsets = [0, 0], sizes = [1, 1], strides = [1, 1]} : vector<1x128xf32> to vector<1x1xf32>
    %139 = vector.extract_strided_slice %137 {offsets = [0, 1], sizes = [1, 1], strides = [1, 1]} : vector<1x128xf32> to vector<1x1xf32>
    %140 = vector.extract_strided_slice %137 {offsets = [0, 2], sizes = [1, 1], strides = [1, 1]} : vector<1x128xf32> to vector<1x1xf32>
    %141 = arith.maximumf %138, %139 : vector<1x1xf32>
    %142 = arith.maximumf %141, %140 : vector<1x1xf32>
    %143 = arith.subf %138, %142 : vector<1x1xf32>
    %144 = arith.subf %139, %142 : vector<1x1xf32>
    %145 = arith.subf %140, %142 : vector<1x1xf32>
    %146 = math.exp %143 : vector<1x1xf32>
    %147 = math.exp %144 : vector<1x1xf32>
    %148 = math.exp %145 : vector<1x1xf32>
    %149 = arith.addf %146, %147 : vector<1x1xf32>
    %150 = arith.addf %149, %148 : vector<1x1xf32>
    %151 = vector.broadcast %102 : f32 to vector<1x1xf32>
    %152 = arith.mulf %150, %151 : vector<1x1xf32>
    %153 = arith.cmpf olt, %146, %152 : vector<1x1xf32>
    %154 = arith.extui %153 : vector<1x1xi1> to vector<1x1xi32>
    %155 = arith.addf %146, %147 : vector<1x1xf32>
    %156 = arith.cmpf olt, %155, %152 : vector<1x1xf32>
    %157 = arith.extui %156 : vector<1x1xi1> to vector<1x1xi32>
    %158 = arith.addi %154, %157 : vector<1x1xi32>
    %159 = math.log %150 : vector<1x1xf32>
    %c1_i32_32 = arith.constant 1 : i32
    %160 = vector.broadcast %c1_i32_32 : i32 to vector<1x1xi32>
    %161 = arith.cmpi eq, %158, %160 : vector<1x1xi32>
    %162 = arith.select %161, %144, %145 : vector<1x1xi1>, vector<1x1xf32>
    %c0_i32_33 = arith.constant 0 : i32
    %163 = vector.broadcast %c0_i32_33 : i32 to vector<1x1xi32>
    %164 = arith.cmpi eq, %158, %163 : vector<1x1xi32>
    %165 = arith.select %164, %143, %162 : vector<1x1xi1>, vector<1x1xf32>
    %166 = arith.subf %165, %159 : vector<1x1xf32>
    %167 = arith.mulf %146, %143 : vector<1x1xf32>
    %168 = arith.mulf %147, %144 : vector<1x1xf32>
    %169 = arith.addf %167, %168 : vector<1x1xf32>
    %170 = arith.mulf %148, %145 : vector<1x1xf32>
    %171 = arith.addf %169, %170 : vector<1x1xf32>
    %172 = tpu.reciprocal %150 {approx = true} : vector<1x1xf32> -> vector<1x1xf32>
    %173 = arith.mulf %171, %172 : vector<1x1xf32>
    %174 = arith.subf %159, %173 : vector<1x1xf32>
    %c1_34 = arith.constant 1 : index
    %c0_35 = arith.constant 0 : index
    %c0_36 = arith.constant 0 : index
    %175 = vector.load %arg2[%c1_34, %c0_35, %c0_36] : memref<3x3x128xf32, #tpu.memory_space<vmem>>, vector<1x3x128xf32>
    %176 = vector.shape_cast %175 : vector<1x3x128xf32> to vector<3x128xf32>
    %177 = vector.extract_strided_slice %176 {offsets = [2, 0], sizes = [1, 128], strides = [1, 1]} : vector<3x128xf32> to vector<1x128xf32>
    %c1_i32_37 = arith.constant 1 : i32
    %178 = vector.broadcast %c1_i32_37 : i32 to vector<1x1xi32>
    %179 = arith.cmpi eq, %158, %178 : vector<1x1xi32>
    %180 = vector.extract_strided_slice %176 {offsets = [1, 0], sizes = [1, 128], strides = [1, 1]} : vector<3x128xf32> to vector<1x128xf32>
    %181 = vector.shape_cast %179 : vector<1x1xi1> to vector<1x1xi1>
    %182 = vector.broadcast %181 : vector<1x1xi1> to vector<1x128xi1>
    %183 = arith.select %182, %180, %177 : vector<1x128xi1>, vector<1x128xf32>
    %c0_i32_38 = arith.constant 0 : i32
    %184 = vector.broadcast %c0_i32_38 : i32 to vector<1x1xi32>
    %185 = arith.cmpi eq, %158, %184 : vector<1x1xi32>
    %186 = vector.extract_strided_slice %176 {offsets = [0, 0], sizes = [1, 128], strides = [1, 1]} : vector<3x128xf32> to vector<1x128xf32>
    %187 = vector.shape_cast %185 : vector<1x1xi1> to vector<1x1xi1>
    %188 = vector.broadcast %187 : vector<1x1xi1> to vector<1x128xi1>
    %189 = arith.select %188, %186, %183 : vector<1x128xi1>, vector<1x128xf32>
    %c1_i32_39 = arith.constant 1 : i32
    %190 = vector.broadcast %c1_i32_39 : i32 to vector<1x128xi32>
    %191 = arith.cmpi eq, %0, %190 : vector<1x128xi32>
    %192 = vector.shape_cast %158 : vector<1x1xi32> to vector<1x1xi32>
    %193 = vector.broadcast %192 : vector<1x1xi32> to vector<1x128xi32>
    %194 = arith.select %191, %193, %99 : vector<1x128xi1>, vector<1x128xi32>
    %195 = arith.addf %100, %166 : vector<1x1xf32>
    %196 = arith.addf %101, %174 : vector<1x1xf32>
    %c2 = arith.constant 2 : index
    %197 = memref.load %arg0[%c2] : memref<18xf32, #tpu.memory_space<smem>>
    %198 = arith.addf %189, %133 : vector<1x128xf32>
    %199 = vector.extract_strided_slice %198 {offsets = [0, 0], sizes = [1, 32], strides = [1, 1]} : vector<1x128xf32> to vector<1x32xf32>
    %200 = arith.negf %199 : vector<1x32xf32>
    %201 = math.exp %200 : vector<1x32xf32>
    %cst_40 = arith.constant 1.000000e+00 : f32
    %202 = vector.broadcast %cst_40 : f32 to vector<1x32xf32>
    %203 = arith.addf %202, %201 : vector<1x32xf32>
    %204 = arith.divf %202, %203 : vector<1x32xf32>
    %205 = vector.extract_strided_slice %198 {offsets = [0, 32], sizes = [1, 32], strides = [1, 1]} : vector<1x128xf32> to vector<1x32xf32>
    %206 = arith.negf %205 : vector<1x32xf32>
    %207 = math.exp %206 : vector<1x32xf32>
    %cst_41 = arith.constant 1.000000e+00 : f32
    %208 = vector.broadcast %cst_41 : f32 to vector<1x32xf32>
    %209 = arith.addf %208, %207 : vector<1x32xf32>
    %210 = arith.divf %208, %209 : vector<1x32xf32>
    %211 = vector.extract_strided_slice %198 {offsets = [0, 64], sizes = [1, 32], strides = [1, 1]} : vector<1x128xf32> to vector<1x32xf32>
    %212 = math.tanh %211 : vector<1x32xf32>
    %213 = vector.extract_strided_slice %198 {offsets = [0, 96], sizes = [1, 32], strides = [1, 1]} : vector<1x128xf32> to vector<1x32xf32>
    %214 = arith.negf %213 : vector<1x32xf32>
    %215 = math.exp %214 : vector<1x32xf32>
    %cst_42 = arith.constant 1.000000e+00 : f32
    %216 = vector.broadcast %cst_42 : f32 to vector<1x32xf32>
    %217 = arith.addf %216, %215 : vector<1x32xf32>
    %218 = arith.divf %216, %217 : vector<1x32xf32>
    %219 = arith.mulf %210, %126 : vector<1x32xf32>
    %220 = arith.mulf %204, %212 : vector<1x32xf32>
    %221 = arith.addf %219, %220 : vector<1x32xf32>
    %222 = math.tanh %221 : vector<1x32xf32>
    %223 = arith.mulf %218, %222 : vector<1x32xf32>
    %c2_43 = arith.constant 2 : index
    %c0_44 = arith.constant 0 : index
    %c0_45 = arith.constant 0 : index
    %224 = vector.load %arg3[%c2_43, %c0_44, %c0_45] : memref<3x32x256xbf16, #tpu.memory_space<vmem>>, vector<1x32x256xbf16>
    %225 = vector.shape_cast %224 : vector<1x32x256xbf16> to vector<32x256xbf16>
    %226 = arith.truncf %223 : vector<1x32xf32> to vector<1x32xbf16>
    %cst_46 = arith.constant dense<0.000000e+00> : vector<1x256xf32>
    %227 = tpu.matmul %226, %225, %cst_46 {dimension_numbers = #tpu.dot_dimension_numbers<[1], [0], [0], [1], [0, 0, 1, 1], [], []>} : vector<1x32xbf16>, vector<32x256xbf16>, vector<1x256xf32> -> vector<1x256xf32>
    %228 = vector.extract_strided_slice %227 {offsets = [0, 128], sizes = [1, 128], strides = [1, 1]} : vector<1x256xf32> to vector<1x128xf32>
    %229 = vector.extract_strided_slice %227 {offsets = [0, 0], sizes = [1, 128], strides = [1, 1]} : vector<1x256xf32> to vector<1x128xf32>
    %c2_47 = arith.constant 2 : index
    %c0_48 = arith.constant 0 : index
    %c0_49 = arith.constant 0 : index
    %230 = vector.load %arg4[%c2_47, %c0_48, %c0_49] : memref<3x1x128xf32, #tpu.memory_space<vmem>>, vector<1x1x128xf32>
    %231 = vector.shape_cast %230 : vector<1x1x128xf32> to vector<1x128xf32>
    %232 = arith.addf %229, %231 : vector<1x128xf32>
    %233 = vector.extract_strided_slice %232 {offsets = [0, 0], sizes = [1, 1], strides = [1, 1]} : vector<1x128xf32> to vector<1x1xf32>
    %234 = vector.extract_strided_slice %232 {offsets = [0, 1], sizes = [1, 1], strides = [1, 1]} : vector<1x128xf32> to vector<1x1xf32>
    %235 = vector.extract_strided_slice %232 {offsets = [0, 2], sizes = [1, 1], strides = [1, 1]} : vector<1x128xf32> to vector<1x1xf32>
    %236 = arith.maximumf %233, %234 : vector<1x1xf32>
    %237 = arith.maximumf %236, %235 : vector<1x1xf32>
    %238 = arith.subf %233, %237 : vector<1x1xf32>
    %239 = arith.subf %234, %237 : vector<1x1xf32>
    %240 = arith.subf %235, %237 : vector<1x1xf32>
    %241 = math.exp %238 : vector<1x1xf32>
    %242 = math.exp %239 : vector<1x1xf32>
    %243 = math.exp %240 : vector<1x1xf32>
    %244 = arith.addf %241, %242 : vector<1x1xf32>
    %245 = arith.addf %244, %243 : vector<1x1xf32>
    %246 = vector.broadcast %197 : f32 to vector<1x1xf32>
    %247 = arith.mulf %245, %246 : vector<1x1xf32>
    %248 = arith.cmpf olt, %241, %247 : vector<1x1xf32>
    %249 = arith.extui %248 : vector<1x1xi1> to vector<1x1xi32>
    %250 = arith.addf %241, %242 : vector<1x1xf32>
    %251 = arith.cmpf olt, %250, %247 : vector<1x1xf32>
    %252 = arith.extui %251 : vector<1x1xi1> to vector<1x1xi32>
    %253 = arith.addi %249, %252 : vector<1x1xi32>
    %254 = math.log %245 : vector<1x1xf32>
    %c1_i32_50 = arith.constant 1 : i32
    %255 = vector.broadcast %c1_i32_50 : i32 to vector<1x1xi32>
    %256 = arith.cmpi eq, %253, %255 : vector<1x1xi32>
    %257 = arith.select %256, %239, %240 : vector<1x1xi1>, vector<1x1xf32>
    %c0_i32_51 = arith.constant 0 : i32
    %258 = vector.broadcast %c0_i32_51 : i32 to vector<1x1xi32>
    %259 = arith.cmpi eq, %253, %258 : vector<1x1xi32>
    %260 = arith.select %259, %238, %257 : vector<1x1xi1>, vector<1x1xf32>
    %261 = arith.subf %260, %254 : vector<1x1xf32>
    %262 = arith.mulf %241, %238 : vector<1x1xf32>
    %263 = arith.mulf %242, %239 : vector<1x1xf32>
    %264 = arith.addf %262, %263 : vector<1x1xf32>
    %265 = arith.mulf %243, %240 : vector<1x1xf32>
    %266 = arith.addf %264, %265 : vector<1x1xf32>
    %267 = tpu.reciprocal %245 {approx = true} : vector<1x1xf32> -> vector<1x1xf32>
    %268 = arith.mulf %266, %267 : vector<1x1xf32>
    %269 = arith.subf %254, %268 : vector<1x1xf32>
    %c2_52 = arith.constant 2 : index
    %c0_53 = arith.constant 0 : index
    %c0_54 = arith.constant 0 : index
    %270 = vector.load %arg2[%c2_52, %c0_53, %c0_54] : memref<3x3x128xf32, #tpu.memory_space<vmem>>, vector<1x3x128xf32>
    %271 = vector.shape_cast %270 : vector<1x3x128xf32> to vector<3x128xf32>
    %272 = vector.extract_strided_slice %271 {offsets = [2, 0], sizes = [1, 128], strides = [1, 1]} : vector<3x128xf32> to vector<1x128xf32>
    %c1_i32_55 = arith.constant 1 : i32
    %273 = vector.broadcast %c1_i32_55 : i32 to vector<1x1xi32>
    %274 = arith.cmpi eq, %253, %273 : vector<1x1xi32>
    %275 = vector.extract_strided_slice %271 {offsets = [1, 0], sizes = [1, 128], strides = [1, 1]} : vector<3x128xf32> to vector<1x128xf32>
    %276 = vector.shape_cast %274 : vector<1x1xi1> to vector<1x1xi1>
    %277 = vector.broadcast %276 : vector<1x1xi1> to vector<1x128xi1>
    %278 = arith.select %277, %275, %272 : vector<1x128xi1>, vector<1x128xf32>
    %c0_i32_56 = arith.constant 0 : i32
    %279 = vector.broadcast %c0_i32_56 : i32 to vector<1x1xi32>
    %280 = arith.cmpi eq, %253, %279 : vector<1x1xi32>
    %281 = vector.extract_strided_slice %271 {offsets = [0, 0], sizes = [1, 128], strides = [1, 1]} : vector<3x128xf32> to vector<1x128xf32>
    %282 = vector.shape_cast %280 : vector<1x1xi1> to vector<1x1xi1>
    %283 = vector.broadcast %282 : vector<1x1xi1> to vector<1x128xi1>
    %284 = arith.select %283, %281, %278 : vector<1x128xi1>, vector<1x128xf32>
    %c2_i32 = arith.constant 2 : i32
    %285 = vector.broadcast %c2_i32 : i32 to vector<1x128xi32>
    %286 = arith.cmpi eq, %0, %285 : vector<1x128xi32>
    %287 = vector.shape_cast %253 : vector<1x1xi32> to vector<1x1xi32>
    %288 = vector.broadcast %287 : vector<1x1xi32> to vector<1x128xi32>
    %289 = arith.select %286, %288, %194 : vector<1x128xi1>, vector<1x128xi32>
    %290 = arith.addf %195, %261 : vector<1x1xf32>
    %291 = arith.addf %196, %269 : vector<1x1xf32>
    %c3 = arith.constant 3 : index
    %292 = memref.load %arg0[%c3] : memref<18xf32, #tpu.memory_space<smem>>
    %293 = arith.addf %284, %228 : vector<1x128xf32>
    %294 = vector.extract_strided_slice %293 {offsets = [0, 0], sizes = [1, 32], strides = [1, 1]} : vector<1x128xf32> to vector<1x32xf32>
    %295 = arith.negf %294 : vector<1x32xf32>
    %296 = math.exp %295 : vector<1x32xf32>
    %cst_57 = arith.constant 1.000000e+00 : f32
    %297 = vector.broadcast %cst_57 : f32 to vector<1x32xf32>
    %298 = arith.addf %297, %296 : vector<1x32xf32>
    %299 = arith.divf %297, %298 : vector<1x32xf32>
    %300 = vector.extract_strided_slice %293 {offsets = [0, 32], sizes = [1, 32], strides = [1, 1]} : vector<1x128xf32> to vector<1x32xf32>
    %301 = arith.negf %300 : vector<1x32xf32>
    %302 = math.exp %301 : vector<1x32xf32>
    %cst_58 = arith.constant 1.000000e+00 : f32
    %303 = vector.broadcast %cst_58 : f32 to vector<1x32xf32>
    %304 = arith.addf %303, %302 : vector<1x32xf32>
    %305 = arith.divf %303, %304 : vector<1x32xf32>
    %306 = vector.extract_strided_slice %293 {offsets = [0, 64], sizes = [1, 32], strides = [1, 1]} : vector<1x128xf32> to vector<1x32xf32>
    %307 = math.tanh %306 : vector<1x32xf32>
    %308 = vector.extract_strided_slice %293 {offsets = [0, 96], sizes = [1, 32], strides = [1, 1]} : vector<1x128xf32> to vector<1x32xf32>
    %309 = arith.negf %308 : vector<1x32xf32>
    %310 = math.exp %309 : vector<1x32xf32>
    %cst_59 = arith.constant 1.000000e+00 : f32
    %311 = vector.broadcast %cst_59 : f32 to vector<1x32xf32>
    %312 = arith.addf %311, %310 : vector<1x32xf32>
    %313 = arith.divf %311, %312 : vector<1x32xf32>
    %314 = arith.mulf %305, %221 : vector<1x32xf32>
    %315 = arith.mulf %299, %307 : vector<1x32xf32>
    %316 = arith.addf %314, %315 : vector<1x32xf32>
    %317 = math.tanh %316 : vector<1x32xf32>
    %318 = arith.mulf %313, %317 : vector<1x32xf32>
    %c1_60 = arith.constant 1 : index
    %c0_61 = arith.constant 0 : index
    %c0_62 = arith.constant 0 : index
    %319 = vector.load %arg3[%c1_60, %c0_61, %c0_62] : memref<3x32x256xbf16, #tpu.memory_space<vmem>>, vector<1x32x256xbf16>
    %320 = vector.shape_cast %319 : vector<1x32x256xbf16> to vector<32x256xbf16>
    %321 = arith.truncf %318 : vector<1x32xf32> to vector<1x32xbf16>
    %cst_63 = arith.constant dense<0.000000e+00> : vector<1x256xf32>
    %322 = tpu.matmul %321, %320, %cst_63 {dimension_numbers = #tpu.dot_dimension_numbers<[1], [0], [0], [1], [0, 0, 1, 1], [], []>} : vector<1x32xbf16>, vector<32x256xbf16>, vector<1x256xf32> -> vector<1x256xf32>
    %323 = vector.extract_strided_slice %322 {offsets = [0, 128], sizes = [1, 128], strides = [1, 1]} : vector<1x256xf32> to vector<1x128xf32>
    %324 = vector.extract_strided_slice %322 {offsets = [0, 0], sizes = [1, 128], strides = [1, 1]} : vector<1x256xf32> to vector<1x128xf32>
    %c1_64 = arith.constant 1 : index
    %c0_65 = arith.constant 0 : index
    %c0_66 = arith.constant 0 : index
    %325 = vector.load %arg4[%c1_64, %c0_65, %c0_66] : memref<3x1x128xf32, #tpu.memory_space<vmem>>, vector<1x1x128xf32>
    %326 = vector.shape_cast %325 : vector<1x1x128xf32> to vector<1x128xf32>
    %327 = arith.addf %324, %326 : vector<1x128xf32>
    %328 = vector.extract_strided_slice %327 {offsets = [0, 0], sizes = [1, 1], strides = [1, 1]} : vector<1x128xf32> to vector<1x1xf32>
    %329 = vector.extract_strided_slice %327 {offsets = [0, 1], sizes = [1, 1], strides = [1, 1]} : vector<1x128xf32> to vector<1x1xf32>
    %330 = vector.extract_strided_slice %327 {offsets = [0, 2], sizes = [1, 1], strides = [1, 1]} : vector<1x128xf32> to vector<1x1xf32>
    %331 = arith.maximumf %328, %329 : vector<1x1xf32>
    %332 = arith.maximumf %331, %330 : vector<1x1xf32>
    %333 = arith.subf %328, %332 : vector<1x1xf32>
    %334 = arith.subf %329, %332 : vector<1x1xf32>
    %335 = arith.subf %330, %332 : vector<1x1xf32>
    %336 = math.exp %333 : vector<1x1xf32>
    %337 = math.exp %334 : vector<1x1xf32>
    %338 = math.exp %335 : vector<1x1xf32>
    %339 = arith.addf %336, %337 : vector<1x1xf32>
    %340 = arith.addf %339, %338 : vector<1x1xf32>
    %341 = vector.broadcast %292 : f32 to vector<1x1xf32>
    %342 = arith.mulf %340, %341 : vector<1x1xf32>
    %343 = arith.cmpf olt, %336, %342 : vector<1x1xf32>
    %344 = arith.extui %343 : vector<1x1xi1> to vector<1x1xi32>
    %345 = arith.addf %336, %337 : vector<1x1xf32>
    %346 = arith.cmpf olt, %345, %342 : vector<1x1xf32>
    %347 = arith.extui %346 : vector<1x1xi1> to vector<1x1xi32>
    %348 = arith.addi %344, %347 : vector<1x1xi32>
    %349 = math.log %340 : vector<1x1xf32>
    %c1_i32_67 = arith.constant 1 : i32
    %350 = vector.broadcast %c1_i32_67 : i32 to vector<1x1xi32>
    %351 = arith.cmpi eq, %348, %350 : vector<1x1xi32>
    %352 = arith.select %351, %334, %335 : vector<1x1xi1>, vector<1x1xf32>
    %c0_i32_68 = arith.constant 0 : i32
    %353 = vector.broadcast %c0_i32_68 : i32 to vector<1x1xi32>
    %354 = arith.cmpi eq, %348, %353 : vector<1x1xi32>
    %355 = arith.select %354, %333, %352 : vector<1x1xi1>, vector<1x1xf32>
    %356 = arith.subf %355, %349 : vector<1x1xf32>
    %357 = arith.mulf %336, %333 : vector<1x1xf32>
    %358 = arith.mulf %337, %334 : vector<1x1xf32>
    %359 = arith.addf %357, %358 : vector<1x1xf32>
    %360 = arith.mulf %338, %335 : vector<1x1xf32>
    %361 = arith.addf %359, %360 : vector<1x1xf32>
    %362 = tpu.reciprocal %340 {approx = true} : vector<1x1xf32> -> vector<1x1xf32>
    %363 = arith.mulf %361, %362 : vector<1x1xf32>
    %364 = arith.subf %349, %363 : vector<1x1xf32>
    %c1_69 = arith.constant 1 : index
    %c0_70 = arith.constant 0 : index
    %c0_71 = arith.constant 0 : index
    %365 = vector.load %arg2[%c1_69, %c0_70, %c0_71] : memref<3x3x128xf32, #tpu.memory_space<vmem>>, vector<1x3x128xf32>
    %366 = vector.shape_cast %365 : vector<1x3x128xf32> to vector<3x128xf32>
    %367 = vector.extract_strided_slice %366 {offsets = [2, 0], sizes = [1, 128], strides = [1, 1]} : vector<3x128xf32> to vector<1x128xf32>
    %c1_i32_72 = arith.constant 1 : i32
    %368 = vector.broadcast %c1_i32_72 : i32 to vector<1x1xi32>
    %369 = arith.cmpi eq, %348, %368 : vector<1x1xi32>
    %370 = vector.extract_strided_slice %366 {offsets = [1, 0], sizes = [1, 128], strides = [1, 1]} : vector<3x128xf32> to vector<1x128xf32>
    %371 = vector.shape_cast %369 : vector<1x1xi1> to vector<1x1xi1>
    %372 = vector.broadcast %371 : vector<1x1xi1> to vector<1x128xi1>
    %373 = arith.select %372, %370, %367 : vector<1x128xi1>, vector<1x128xf32>
    %c0_i32_73 = arith.constant 0 : i32
    %374 = vector.broadcast %c0_i32_73 : i32 to vector<1x1xi32>
    %375 = arith.cmpi eq, %348, %374 : vector<1x1xi32>
    %376 = vector.extract_strided_slice %366 {offsets = [0, 0], sizes = [1, 128], strides = [1, 1]} : vector<3x128xf32> to vector<1x128xf32>
    %377 = vector.shape_cast %375 : vector<1x1xi1> to vector<1x1xi1>
    %378 = vector.broadcast %377 : vector<1x1xi1> to vector<1x128xi1>
    %379 = arith.select %378, %376, %373 : vector<1x128xi1>, vector<1x128xf32>
    %c3_i32 = arith.constant 3 : i32
    %380 = vector.broadcast %c3_i32 : i32 to vector<1x128xi32>
    %381 = arith.cmpi eq, %0, %380 : vector<1x128xi32>
    %382 = vector.shape_cast %348 : vector<1x1xi32> to vector<1x1xi32>
    %383 = vector.broadcast %382 : vector<1x1xi32> to vector<1x128xi32>
    %384 = arith.select %381, %383, %289 : vector<1x128xi1>, vector<1x128xi32>
    %385 = arith.addf %290, %356 : vector<1x1xf32>
    %386 = arith.addf %291, %364 : vector<1x1xf32>
    %c4 = arith.constant 4 : index
    %387 = memref.load %arg0[%c4] : memref<18xf32, #tpu.memory_space<smem>>
    %388 = arith.addf %379, %323 : vector<1x128xf32>
    %389 = vector.extract_strided_slice %388 {offsets = [0, 0], sizes = [1, 32], strides = [1, 1]} : vector<1x128xf32> to vector<1x32xf32>
    %390 = arith.negf %389 : vector<1x32xf32>
    %391 = math.exp %390 : vector<1x32xf32>
    %cst_74 = arith.constant 1.000000e+00 : f32
    %392 = vector.broadcast %cst_74 : f32 to vector<1x32xf32>
    %393 = arith.addf %392, %391 : vector<1x32xf32>
    %394 = arith.divf %392, %393 : vector<1x32xf32>
    %395 = vector.extract_strided_slice %388 {offsets = [0, 32], sizes = [1, 32], strides = [1, 1]} : vector<1x128xf32> to vector<1x32xf32>
    %396 = arith.negf %395 : vector<1x32xf32>
    %397 = math.exp %396 : vector<1x32xf32>
    %cst_75 = arith.constant 1.000000e+00 : f32
    %398 = vector.broadcast %cst_75 : f32 to vector<1x32xf32>
    %399 = arith.addf %398, %397 : vector<1x32xf32>
    %400 = arith.divf %398, %399 : vector<1x32xf32>
    %401 = vector.extract_strided_slice %388 {offsets = [0, 64], sizes = [1, 32], strides = [1, 1]} : vector<1x128xf32> to vector<1x32xf32>
    %402 = math.tanh %401 : vector<1x32xf32>
    %403 = vector.extract_strided_slice %388 {offsets = [0, 96], sizes = [1, 32], strides = [1, 1]} : vector<1x128xf32> to vector<1x32xf32>
    %404 = arith.negf %403 : vector<1x32xf32>
    %405 = math.exp %404 : vector<1x32xf32>
    %cst_76 = arith.constant 1.000000e+00 : f32
    %406 = vector.broadcast %cst_76 : f32 to vector<1x32xf32>
    %407 = arith.addf %406, %405 : vector<1x32xf32>
    %408 = arith.divf %406, %407 : vector<1x32xf32>
    %409 = arith.mulf %400, %316 : vector<1x32xf32>
    %410 = arith.mulf %394, %402 : vector<1x32xf32>
    %411 = arith.addf %409, %410 : vector<1x32xf32>
    %412 = math.tanh %411 : vector<1x32xf32>
    %413 = arith.mulf %408, %412 : vector<1x32xf32>
    %c2_77 = arith.constant 2 : index
    %c0_78 = arith.constant 0 : index
    %c0_79 = arith.constant 0 : index
    %414 = vector.load %arg3[%c2_77, %c0_78, %c0_79] : memref<3x32x256xbf16, #tpu.memory_space<vmem>>, vector<1x32x256xbf16>
    %415 = vector.shape_cast %414 : vector<1x32x256xbf16> to vector<32x256xbf16>
    %416 = arith.truncf %413 : vector<1x32xf32> to vector<1x32xbf16>
    %cst_80 = arith.constant dense<0.000000e+00> : vector<1x256xf32>
    %417 = tpu.matmul %416, %415, %cst_80 {dimension_numbers = #tpu.dot_dimension_numbers<[1], [0], [0], [1], [0, 0, 1, 1], [], []>} : vector<1x32xbf16>, vector<32x256xbf16>, vector<1x256xf32> -> vector<1x256xf32>
    %418 = vector.extract_strided_slice %417 {offsets = [0, 128], sizes = [1, 128], strides = [1, 1]} : vector<1x256xf32> to vector<1x128xf32>
    %419 = vector.extract_strided_slice %417 {offsets = [0, 0], sizes = [1, 128], strides = [1, 1]} : vector<1x256xf32> to vector<1x128xf32>
    %c2_81 = arith.constant 2 : index
    %c0_82 = arith.constant 0 : index
    %c0_83 = arith.constant 0 : index
    %420 = vector.load %arg4[%c2_81, %c0_82, %c0_83] : memref<3x1x128xf32, #tpu.memory_space<vmem>>, vector<1x1x128xf32>
    %421 = vector.shape_cast %420 : vector<1x1x128xf32> to vector<1x128xf32>
    %422 = arith.addf %419, %421 : vector<1x128xf32>
    %423 = vector.extract_strided_slice %422 {offsets = [0, 0], sizes = [1, 1], strides = [1, 1]} : vector<1x128xf32> to vector<1x1xf32>
    %424 = vector.extract_strided_slice %422 {offsets = [0, 1], sizes = [1, 1], strides = [1, 1]} : vector<1x128xf32> to vector<1x1xf32>
    %425 = vector.extract_strided_slice %422 {offsets = [0, 2], sizes = [1, 1], strides = [1, 1]} : vector<1x128xf32> to vector<1x1xf32>
    %426 = arith.maximumf %423, %424 : vector<1x1xf32>
    %427 = arith.maximumf %426, %425 : vector<1x1xf32>
    %428 = arith.subf %423, %427 : vector<1x1xf32>
    %429 = arith.subf %424, %427 : vector<1x1xf32>
    %430 = arith.subf %425, %427 : vector<1x1xf32>
    %431 = math.exp %428 : vector<1x1xf32>
    %432 = math.exp %429 : vector<1x1xf32>
    %433 = math.exp %430 : vector<1x1xf32>
    %434 = arith.addf %431, %432 : vector<1x1xf32>
    %435 = arith.addf %434, %433 : vector<1x1xf32>
    %436 = vector.broadcast %387 : f32 to vector<1x1xf32>
    %437 = arith.mulf %435, %436 : vector<1x1xf32>
    %438 = arith.cmpf olt, %431, %437 : vector<1x1xf32>
    %439 = arith.extui %438 : vector<1x1xi1> to vector<1x1xi32>
    %440 = arith.addf %431, %432 : vector<1x1xf32>
    %441 = arith.cmpf olt, %440, %437 : vector<1x1xf32>
    %442 = arith.extui %441 : vector<1x1xi1> to vector<1x1xi32>
    %443 = arith.addi %439, %442 : vector<1x1xi32>
    %444 = math.log %435 : vector<1x1xf32>
    %c1_i32_84 = arith.constant 1 : i32
    %445 = vector.broadcast %c1_i32_84 : i32 to vector<1x1xi32>
    %446 = arith.cmpi eq, %443, %445 : vector<1x1xi32>
    %447 = arith.select %446, %429, %430 : vector<1x1xi1>, vector<1x1xf32>
    %c0_i32_85 = arith.constant 0 : i32
    %448 = vector.broadcast %c0_i32_85 : i32 to vector<1x1xi32>
    %449 = arith.cmpi eq, %443, %448 : vector<1x1xi32>
    %450 = arith.select %449, %428, %447 : vector<1x1xi1>, vector<1x1xf32>
    %451 = arith.subf %450, %444 : vector<1x1xf32>
    %452 = arith.mulf %431, %428 : vector<1x1xf32>
    %453 = arith.mulf %432, %429 : vector<1x1xf32>
    %454 = arith.addf %452, %453 : vector<1x1xf32>
    %455 = arith.mulf %433, %430 : vector<1x1xf32>
    %456 = arith.addf %454, %455 : vector<1x1xf32>
    %457 = tpu.reciprocal %435 {approx = true} : vector<1x1xf32> -> vector<1x1xf32>
    %458 = arith.mulf %456, %457 : vector<1x1xf32>
    %459 = arith.subf %444, %458 : vector<1x1xf32>
    %c2_86 = arith.constant 2 : index
    %c0_87 = arith.constant 0 : index
    %c0_88 = arith.constant 0 : index
    %460 = vector.load %arg2[%c2_86, %c0_87, %c0_88] : memref<3x3x128xf32, #tpu.memory_space<vmem>>, vector<1x3x128xf32>
    %461 = vector.shape_cast %460 : vector<1x3x128xf32> to vector<3x128xf32>
    %462 = vector.extract_strided_slice %461 {offsets = [2, 0], sizes = [1, 128], strides = [1, 1]} : vector<3x128xf32> to vector<1x128xf32>
    %c1_i32_89 = arith.constant 1 : i32
    %463 = vector.broadcast %c1_i32_89 : i32 to vector<1x1xi32>
    %464 = arith.cmpi eq, %443, %463 : vector<1x1xi32>
    %465 = vector.extract_strided_slice %461 {offsets = [1, 0], sizes = [1, 128], strides = [1, 1]} : vector<3x128xf32> to vector<1x128xf32>
    %466 = vector.shape_cast %464 : vector<1x1xi1> to vector<1x1xi1>
    %467 = vector.broadcast %466 : vector<1x1xi1> to vector<1x128xi1>
    %468 = arith.select %467, %465, %462 : vector<1x128xi1>, vector<1x128xf32>
    %c0_i32_90 = arith.constant 0 : i32
    %469 = vector.broadcast %c0_i32_90 : i32 to vector<1x1xi32>
    %470 = arith.cmpi eq, %443, %469 : vector<1x1xi32>
    %471 = vector.extract_strided_slice %461 {offsets = [0, 0], sizes = [1, 128], strides = [1, 1]} : vector<3x128xf32> to vector<1x128xf32>
    %472 = vector.shape_cast %470 : vector<1x1xi1> to vector<1x1xi1>
    %473 = vector.broadcast %472 : vector<1x1xi1> to vector<1x128xi1>
    %474 = arith.select %473, %471, %468 : vector<1x128xi1>, vector<1x128xf32>
    %c4_i32 = arith.constant 4 : i32
    %475 = vector.broadcast %c4_i32 : i32 to vector<1x128xi32>
    %476 = arith.cmpi eq, %0, %475 : vector<1x128xi32>
    %477 = vector.shape_cast %443 : vector<1x1xi32> to vector<1x1xi32>
    %478 = vector.broadcast %477 : vector<1x1xi32> to vector<1x128xi32>
    %479 = arith.select %476, %478, %384 : vector<1x128xi1>, vector<1x128xi32>
    %480 = arith.addf %385, %451 : vector<1x1xf32>
    %481 = arith.addf %386, %459 : vector<1x1xf32>
    %c5 = arith.constant 5 : index
    %482 = memref.load %arg0[%c5] : memref<18xf32, #tpu.memory_space<smem>>
    %483 = arith.addf %474, %418 : vector<1x128xf32>
    %484 = vector.extract_strided_slice %483 {offsets = [0, 0], sizes = [1, 32], strides = [1, 1]} : vector<1x128xf32> to vector<1x32xf32>
    %485 = arith.negf %484 : vector<1x32xf32>
    %486 = math.exp %485 : vector<1x32xf32>
    %cst_91 = arith.constant 1.000000e+00 : f32
    %487 = vector.broadcast %cst_91 : f32 to vector<1x32xf32>
    %488 = arith.addf %487, %486 : vector<1x32xf32>
    %489 = arith.divf %487, %488 : vector<1x32xf32>
    %490 = vector.extract_strided_slice %483 {offsets = [0, 32], sizes = [1, 32], strides = [1, 1]} : vector<1x128xf32> to vector<1x32xf32>
    %491 = arith.negf %490 : vector<1x32xf32>
    %492 = math.exp %491 : vector<1x32xf32>
    %cst_92 = arith.constant 1.000000e+00 : f32
    %493 = vector.broadcast %cst_92 : f32 to vector<1x32xf32>
    %494 = arith.addf %493, %492 : vector<1x32xf32>
    %495 = arith.divf %493, %494 : vector<1x32xf32>
    %496 = vector.extract_strided_slice %483 {offsets = [0, 64], sizes = [1, 32], strides = [1, 1]} : vector<1x128xf32> to vector<1x32xf32>
    %497 = math.tanh %496 : vector<1x32xf32>
    %498 = vector.extract_strided_slice %483 {offsets = [0, 96], sizes = [1, 32], strides = [1, 1]} : vector<1x128xf32> to vector<1x32xf32>
    %499 = arith.negf %498 : vector<1x32xf32>
    %500 = math.exp %499 : vector<1x32xf32>
    %cst_93 = arith.constant 1.000000e+00 : f32
    %501 = vector.broadcast %cst_93 : f32 to vector<1x32xf32>
    %502 = arith.addf %501, %500 : vector<1x32xf32>
    %503 = arith.divf %501, %502 : vector<1x32xf32>
    %504 = arith.mulf %495, %411 : vector<1x32xf32>
    %505 = arith.mulf %489, %497 : vector<1x32xf32>
    %506 = arith.addf %504, %505 : vector<1x32xf32>
    %507 = math.tanh %506 : vector<1x32xf32>
    %508 = arith.mulf %503, %507 : vector<1x32xf32>
    %c1_94 = arith.constant 1 : index
    %c0_95 = arith.constant 0 : index
    %c0_96 = arith.constant 0 : index
    %509 = vector.load %arg3[%c1_94, %c0_95, %c0_96] : memref<3x32x256xbf16, #tpu.memory_space<vmem>>, vector<1x32x256xbf16>
    %510 = vector.shape_cast %509 : vector<1x32x256xbf16> to vector<32x256xbf16>
    %511 = arith.truncf %508 : vector<1x32xf32> to vector<1x32xbf16>
    %cst_97 = arith.constant dense<0.000000e+00> : vector<1x256xf32>
    %512 = tpu.matmul %511, %510, %cst_97 {dimension_numbers = #tpu.dot_dimension_numbers<[1], [0], [0], [1], [0, 0, 1, 1], [], []>} : vector<1x32xbf16>, vector<32x256xbf16>, vector<1x256xf32> -> vector<1x256xf32>
    %513 = vector.extract_strided_slice %512 {offsets = [0, 128], sizes = [1, 128], strides = [1, 1]} : vector<1x256xf32> to vector<1x128xf32>
    %514 = vector.extract_strided_slice %512 {offsets = [0, 0], sizes = [1, 128], strides = [1, 1]} : vector<1x256xf32> to vector<1x128xf32>
    %c1_98 = arith.constant 1 : index
    %c0_99 = arith.constant 0 : index
    %c0_100 = arith.constant 0 : index
    %515 = vector.load %arg4[%c1_98, %c0_99, %c0_100] : memref<3x1x128xf32, #tpu.memory_space<vmem>>, vector<1x1x128xf32>
    %516 = vector.shape_cast %515 : vector<1x1x128xf32> to vector<1x128xf32>
    %517 = arith.addf %514, %516 : vector<1x128xf32>
    %518 = vector.extract_strided_slice %517 {offsets = [0, 0], sizes = [1, 1], strides = [1, 1]} : vector<1x128xf32> to vector<1x1xf32>
    %519 = vector.extract_strided_slice %517 {offsets = [0, 1], sizes = [1, 1], strides = [1, 1]} : vector<1x128xf32> to vector<1x1xf32>
    %520 = vector.extract_strided_slice %517 {offsets = [0, 2], sizes = [1, 1], strides = [1, 1]} : vector<1x128xf32> to vector<1x1xf32>
    %521 = arith.maximumf %518, %519 : vector<1x1xf32>
    %522 = arith.maximumf %521, %520 : vector<1x1xf32>
    %523 = arith.subf %518, %522 : vector<1x1xf32>
    %524 = arith.subf %519, %522 : vector<1x1xf32>
    %525 = arith.subf %520, %522 : vector<1x1xf32>
    %526 = math.exp %523 : vector<1x1xf32>
    %527 = math.exp %524 : vector<1x1xf32>
    %528 = math.exp %525 : vector<1x1xf32>
    %529 = arith.addf %526, %527 : vector<1x1xf32>
    %530 = arith.addf %529, %528 : vector<1x1xf32>
    %531 = vector.broadcast %482 : f32 to vector<1x1xf32>
    %532 = arith.mulf %530, %531 : vector<1x1xf32>
    %533 = arith.cmpf olt, %526, %532 : vector<1x1xf32>
    %534 = arith.extui %533 : vector<1x1xi1> to vector<1x1xi32>
    %535 = arith.addf %526, %527 : vector<1x1xf32>
    %536 = arith.cmpf olt, %535, %532 : vector<1x1xf32>
    %537 = arith.extui %536 : vector<1x1xi1> to vector<1x1xi32>
    %538 = arith.addi %534, %537 : vector<1x1xi32>
    %539 = math.log %530 : vector<1x1xf32>
    %c1_i32_101 = arith.constant 1 : i32
    %540 = vector.broadcast %c1_i32_101 : i32 to vector<1x1xi32>
    %541 = arith.cmpi eq, %538, %540 : vector<1x1xi32>
    %542 = arith.select %541, %524, %525 : vector<1x1xi1>, vector<1x1xf32>
    %c0_i32_102 = arith.constant 0 : i32
    %543 = vector.broadcast %c0_i32_102 : i32 to vector<1x1xi32>
    %544 = arith.cmpi eq, %538, %543 : vector<1x1xi32>
    %545 = arith.select %544, %523, %542 : vector<1x1xi1>, vector<1x1xf32>
    %546 = arith.subf %545, %539 : vector<1x1xf32>
    %547 = arith.mulf %526, %523 : vector<1x1xf32>
    %548 = arith.mulf %527, %524 : vector<1x1xf32>
    %549 = arith.addf %547, %548 : vector<1x1xf32>
    %550 = arith.mulf %528, %525 : vector<1x1xf32>
    %551 = arith.addf %549, %550 : vector<1x1xf32>
    %552 = tpu.reciprocal %530 {approx = true} : vector<1x1xf32> -> vector<1x1xf32>
    %553 = arith.mulf %551, %552 : vector<1x1xf32>
    %554 = arith.subf %539, %553 : vector<1x1xf32>
    %c1_103 = arith.constant 1 : index
    %c0_104 = arith.constant 0 : index
    %c0_105 = arith.constant 0 : index
    %555 = vector.load %arg2[%c1_103, %c0_104, %c0_105] : memref<3x3x128xf32, #tpu.memory_space<vmem>>, vector<1x3x128xf32>
    %556 = vector.shape_cast %555 : vector<1x3x128xf32> to vector<3x128xf32>
    %557 = vector.extract_strided_slice %556 {offsets = [2, 0], sizes = [1, 128], strides = [1, 1]} : vector<3x128xf32> to vector<1x128xf32>
    %c1_i32_106 = arith.constant 1 : i32
    %558 = vector.broadcast %c1_i32_106 : i32 to vector<1x1xi32>
    %559 = arith.cmpi eq, %538, %558 : vector<1x1xi32>
    %560 = vector.extract_strided_slice %556 {offsets = [1, 0], sizes = [1, 128], strides = [1, 1]} : vector<3x128xf32> to vector<1x128xf32>
    %561 = vector.shape_cast %559 : vector<1x1xi1> to vector<1x1xi1>
    %562 = vector.broadcast %561 : vector<1x1xi1> to vector<1x128xi1>
    %563 = arith.select %562, %560, %557 : vector<1x128xi1>, vector<1x128xf32>
    %c0_i32_107 = arith.constant 0 : i32
    %564 = vector.broadcast %c0_i32_107 : i32 to vector<1x1xi32>
    %565 = arith.cmpi eq, %538, %564 : vector<1x1xi32>
    %566 = vector.extract_strided_slice %556 {offsets = [0, 0], sizes = [1, 128], strides = [1, 1]} : vector<3x128xf32> to vector<1x128xf32>
    %567 = vector.shape_cast %565 : vector<1x1xi1> to vector<1x1xi1>
    %568 = vector.broadcast %567 : vector<1x1xi1> to vector<1x128xi1>
    %569 = arith.select %568, %566, %563 : vector<1x128xi1>, vector<1x128xf32>
    %c5_i32 = arith.constant 5 : i32
    %570 = vector.broadcast %c5_i32 : i32 to vector<1x128xi32>
    %571 = arith.cmpi eq, %0, %570 : vector<1x128xi32>
    %572 = vector.shape_cast %538 : vector<1x1xi32> to vector<1x1xi32>
    %573 = vector.broadcast %572 : vector<1x1xi32> to vector<1x128xi32>
    %574 = arith.select %571, %573, %479 : vector<1x128xi1>, vector<1x128xi32>
    %575 = arith.addf %480, %546 : vector<1x1xf32>
    %576 = arith.addf %481, %554 : vector<1x1xf32>
    %c6 = arith.constant 6 : index
    %577 = memref.load %arg0[%c6] : memref<18xf32, #tpu.memory_space<smem>>
    %578 = arith.addf %569, %513 : vector<1x128xf32>
    %579 = vector.extract_strided_slice %578 {offsets = [0, 0], sizes = [1, 32], strides = [1, 1]} : vector<1x128xf32> to vector<1x32xf32>
    %580 = arith.negf %579 : vector<1x32xf32>
    %581 = math.exp %580 : vector<1x32xf32>
    %cst_108 = arith.constant 1.000000e+00 : f32
    %582 = vector.broadcast %cst_108 : f32 to vector<1x32xf32>
    %583 = arith.addf %582, %581 : vector<1x32xf32>
    %584 = arith.divf %582, %583 : vector<1x32xf32>
    %585 = vector.extract_strided_slice %578 {offsets = [0, 32], sizes = [1, 32], strides = [1, 1]} : vector<1x128xf32> to vector<1x32xf32>
    %586 = arith.negf %585 : vector<1x32xf32>
    %587 = math.exp %586 : vector<1x32xf32>
    %cst_109 = arith.constant 1.000000e+00 : f32
    %588 = vector.broadcast %cst_109 : f32 to vector<1x32xf32>
    %589 = arith.addf %588, %587 : vector<1x32xf32>
    %590 = arith.divf %588, %589 : vector<1x32xf32>
    %591 = vector.extract_strided_slice %578 {offsets = [0, 64], sizes = [1, 32], strides = [1, 1]} : vector<1x128xf32> to vector<1x32xf32>
    %592 = math.tanh %591 : vector<1x32xf32>
    %593 = vector.extract_strided_slice %578 {offsets = [0, 96], sizes = [1, 32], strides = [1, 1]} : vector<1x128xf32> to vector<1x32xf32>
    %594 = arith.negf %593 : vector<1x32xf32>
    %595 = math.exp %594 : vector<1x32xf32>
    %cst_110 = arith.constant 1.000000e+00 : f32
    %596 = vector.broadcast %cst_110 : f32 to vector<1x32xf32>
    %597 = arith.addf %596, %595 : vector<1x32xf32>
    %598 = arith.divf %596, %597 : vector<1x32xf32>
    %599 = arith.mulf %590, %506 : vector<1x32xf32>
    %600 = arith.mulf %584, %592 : vector<1x32xf32>
    %601 = arith.addf %599, %600 : vector<1x32xf32>
    %602 = math.tanh %601 : vector<1x32xf32>
    %603 = arith.mulf %598, %602 : vector<1x32xf32>
    %c2_111 = arith.constant 2 : index
    %c0_112 = arith.constant 0 : index
    %c0_113 = arith.constant 0 : index
    %604 = vector.load %arg3[%c2_111, %c0_112, %c0_113] : memref<3x32x256xbf16, #tpu.memory_space<vmem>>, vector<1x32x256xbf16>
    %605 = vector.shape_cast %604 : vector<1x32x256xbf16> to vector<32x256xbf16>
    %606 = arith.truncf %603 : vector<1x32xf32> to vector<1x32xbf16>
    %cst_114 = arith.constant dense<0.000000e+00> : vector<1x256xf32>
    %607 = tpu.matmul %606, %605, %cst_114 {dimension_numbers = #tpu.dot_dimension_numbers<[1], [0], [0], [1], [0, 0, 1, 1], [], []>} : vector<1x32xbf16>, vector<32x256xbf16>, vector<1x256xf32> -> vector<1x256xf32>
    %608 = vector.extract_strided_slice %607 {offsets = [0, 128], sizes = [1, 128], strides = [1, 1]} : vector<1x256xf32> to vector<1x128xf32>
    %609 = vector.extract_strided_slice %607 {offsets = [0, 0], sizes = [1, 128], strides = [1, 1]} : vector<1x256xf32> to vector<1x128xf32>
    %c2_115 = arith.constant 2 : index
    %c0_116 = arith.constant 0 : index
    %c0_117 = arith.constant 0 : index
    %610 = vector.load %arg4[%c2_115, %c0_116, %c0_117] : memref<3x1x128xf32, #tpu.memory_space<vmem>>, vector<1x1x128xf32>
    %611 = vector.shape_cast %610 : vector<1x1x128xf32> to vector<1x128xf32>
    %612 = arith.addf %609, %611 : vector<1x128xf32>
    %613 = vector.extract_strided_slice %612 {offsets = [0, 0], sizes = [1, 1], strides = [1, 1]} : vector<1x128xf32> to vector<1x1xf32>
    %614 = vector.extract_strided_slice %612 {offsets = [0, 1], sizes = [1, 1], strides = [1, 1]} : vector<1x128xf32> to vector<1x1xf32>
    %615 = vector.extract_strided_slice %612 {offsets = [0, 2], sizes = [1, 1], strides = [1, 1]} : vector<1x128xf32> to vector<1x1xf32>
    %616 = arith.maximumf %613, %614 : vector<1x1xf32>
    %617 = arith.maximumf %616, %615 : vector<1x1xf32>
    %618 = arith.subf %613, %617 : vector<1x1xf32>
    %619 = arith.subf %614, %617 : vector<1x1xf32>
    %620 = arith.subf %615, %617 : vector<1x1xf32>
    %621 = math.exp %618 : vector<1x1xf32>
    %622 = math.exp %619 : vector<1x1xf32>
    %623 = math.exp %620 : vector<1x1xf32>
    %624 = arith.addf %621, %622 : vector<1x1xf32>
    %625 = arith.addf %624, %623 : vector<1x1xf32>
    %626 = vector.broadcast %577 : f32 to vector<1x1xf32>
    %627 = arith.mulf %625, %626 : vector<1x1xf32>
    %628 = arith.cmpf olt, %621, %627 : vector<1x1xf32>
    %629 = arith.extui %628 : vector<1x1xi1> to vector<1x1xi32>
    %630 = arith.addf %621, %622 : vector<1x1xf32>
    %631 = arith.cmpf olt, %630, %627 : vector<1x1xf32>
    %632 = arith.extui %631 : vector<1x1xi1> to vector<1x1xi32>
    %633 = arith.addi %629, %632 : vector<1x1xi32>
    %634 = math.log %625 : vector<1x1xf32>
    %c1_i32_118 = arith.constant 1 : i32
    %635 = vector.broadcast %c1_i32_118 : i32 to vector<1x1xi32>
    %636 = arith.cmpi eq, %633, %635 : vector<1x1xi32>
    %637 = arith.select %636, %619, %620 : vector<1x1xi1>, vector<1x1xf32>
    %c0_i32_119 = arith.constant 0 : i32
    %638 = vector.broadcast %c0_i32_119 : i32 to vector<1x1xi32>
    %639 = arith.cmpi eq, %633, %638 : vector<1x1xi32>
    %640 = arith.select %639, %618, %637 : vector<1x1xi1>, vector<1x1xf32>
    %641 = arith.subf %640, %634 : vector<1x1xf32>
    %642 = arith.mulf %621, %618 : vector<1x1xf32>
    %643 = arith.mulf %622, %619 : vector<1x1xf32>
    %644 = arith.addf %642, %643 : vector<1x1xf32>
    %645 = arith.mulf %623, %620 : vector<1x1xf32>
    %646 = arith.addf %644, %645 : vector<1x1xf32>
    %647 = tpu.reciprocal %625 {approx = true} : vector<1x1xf32> -> vector<1x1xf32>
    %648 = arith.mulf %646, %647 : vector<1x1xf32>
    %649 = arith.subf %634, %648 : vector<1x1xf32>
    %c2_120 = arith.constant 2 : index
    %c0_121 = arith.constant 0 : index
    %c0_122 = arith.constant 0 : index
    %650 = vector.load %arg2[%c2_120, %c0_121, %c0_122] : memref<3x3x128xf32, #tpu.memory_space<vmem>>, vector<1x3x128xf32>
    %651 = vector.shape_cast %650 : vector<1x3x128xf32> to vector<3x128xf32>
    %652 = vector.extract_strided_slice %651 {offsets = [2, 0], sizes = [1, 128], strides = [1, 1]} : vector<3x128xf32> to vector<1x128xf32>
    %c1_i32_123 = arith.constant 1 : i32
    %653 = vector.broadcast %c1_i32_123 : i32 to vector<1x1xi32>
    %654 = arith.cmpi eq, %633, %653 : vector<1x1xi32>
    %655 = vector.extract_strided_slice %651 {offsets = [1, 0], sizes = [1, 128], strides = [1, 1]} : vector<3x128xf32> to vector<1x128xf32>
    %656 = vector.shape_cast %654 : vector<1x1xi1> to vector<1x1xi1>
    %657 = vector.broadcast %656 : vector<1x1xi1> to vector<1x128xi1>
    %658 = arith.select %657, %655, %652 : vector<1x128xi1>, vector<1x128xf32>
    %c0_i32_124 = arith.constant 0 : i32
    %659 = vector.broadcast %c0_i32_124 : i32 to vector<1x1xi32>
    %660 = arith.cmpi eq, %633, %659 : vector<1x1xi32>
    %661 = vector.extract_strided_slice %651 {offsets = [0, 0], sizes = [1, 128], strides = [1, 1]} : vector<3x128xf32> to vector<1x128xf32>
    %662 = vector.shape_cast %660 : vector<1x1xi1> to vector<1x1xi1>
    %663 = vector.broadcast %662 : vector<1x1xi1> to vector<1x128xi1>
    %664 = arith.select %663, %661, %658 : vector<1x128xi1>, vector<1x128xf32>
    %c6_i32 = arith.constant 6 : i32
    %665 = vector.broadcast %c6_i32 : i32 to vector<1x128xi32>
    %666 = arith.cmpi eq, %0, %665 : vector<1x128xi32>
    %667 = vector.shape_cast %633 : vector<1x1xi32> to vector<1x1xi32>
    %668 = vector.broadcast %667 : vector<1x1xi32> to vector<1x128xi32>
    %669 = arith.select %666, %668, %574 : vector<1x128xi1>, vector<1x128xi32>
    %670 = arith.addf %575, %641 : vector<1x1xf32>
    %671 = arith.addf %576, %649 : vector<1x1xf32>
    %c7 = arith.constant 7 : index
    %672 = memref.load %arg0[%c7] : memref<18xf32, #tpu.memory_space<smem>>
    %673 = arith.addf %664, %608 : vector<1x128xf32>
    %674 = vector.extract_strided_slice %673 {offsets = [0, 0], sizes = [1, 32], strides = [1, 1]} : vector<1x128xf32> to vector<1x32xf32>
    %675 = arith.negf %674 : vector<1x32xf32>
    %676 = math.exp %675 : vector<1x32xf32>
    %cst_125 = arith.constant 1.000000e+00 : f32
    %677 = vector.broadcast %cst_125 : f32 to vector<1x32xf32>
    %678 = arith.addf %677, %676 : vector<1x32xf32>
    %679 = arith.divf %677, %678 : vector<1x32xf32>
    %680 = vector.extract_strided_slice %673 {offsets = [0, 32], sizes = [1, 32], strides = [1, 1]} : vector<1x128xf32> to vector<1x32xf32>
    %681 = arith.negf %680 : vector<1x32xf32>
    %682 = math.exp %681 : vector<1x32xf32>
    %cst_126 = arith.constant 1.000000e+00 : f32
    %683 = vector.broadcast %cst_126 : f32 to vector<1x32xf32>
    %684 = arith.addf %683, %682 : vector<1x32xf32>
    %685 = arith.divf %683, %684 : vector<1x32xf32>
    %686 = vector.extract_strided_slice %673 {offsets = [0, 64], sizes = [1, 32], strides = [1, 1]} : vector<1x128xf32> to vector<1x32xf32>
    %687 = math.tanh %686 : vector<1x32xf32>
    %688 = vector.extract_strided_slice %673 {offsets = [0, 96], sizes = [1, 32], strides = [1, 1]} : vector<1x128xf32> to vector<1x32xf32>
    %689 = arith.negf %688 : vector<1x32xf32>
    %690 = math.exp %689 : vector<1x32xf32>
    %cst_127 = arith.constant 1.000000e+00 : f32
    %691 = vector.broadcast %cst_127 : f32 to vector<1x32xf32>
    %692 = arith.addf %691, %690 : vector<1x32xf32>
    %693 = arith.divf %691, %692 : vector<1x32xf32>
    %694 = arith.mulf %685, %601 : vector<1x32xf32>
    %695 = arith.mulf %679, %687 : vector<1x32xf32>
    %696 = arith.addf %694, %695 : vector<1x32xf32>
    %697 = math.tanh %696 : vector<1x32xf32>
    %698 = arith.mulf %693, %697 : vector<1x32xf32>
    %c1_128 = arith.constant 1 : index
    %c0_129 = arith.constant 0 : index
    %c0_130 = arith.constant 0 : index
    %699 = vector.load %arg3[%c1_128, %c0_129, %c0_130] : memref<3x32x256xbf16, #tpu.memory_space<vmem>>, vector<1x32x256xbf16>
    %700 = vector.shape_cast %699 : vector<1x32x256xbf16> to vector<32x256xbf16>
    %701 = arith.truncf %698 : vector<1x32xf32> to vector<1x32xbf16>
    %cst_131 = arith.constant dense<0.000000e+00> : vector<1x256xf32>
    %702 = tpu.matmul %701, %700, %cst_131 {dimension_numbers = #tpu.dot_dimension_numbers<[1], [0], [0], [1], [0, 0, 1, 1], [], []>} : vector<1x32xbf16>, vector<32x256xbf16>, vector<1x256xf32> -> vector<1x256xf32>
    %703 = vector.extract_strided_slice %702 {offsets = [0, 128], sizes = [1, 128], strides = [1, 1]} : vector<1x256xf32> to vector<1x128xf32>
    %704 = vector.extract_strided_slice %702 {offsets = [0, 0], sizes = [1, 128], strides = [1, 1]} : vector<1x256xf32> to vector<1x128xf32>
    %c1_132 = arith.constant 1 : index
    %c0_133 = arith.constant 0 : index
    %c0_134 = arith.constant 0 : index
    %705 = vector.load %arg4[%c1_132, %c0_133, %c0_134] : memref<3x1x128xf32, #tpu.memory_space<vmem>>, vector<1x1x128xf32>
    %706 = vector.shape_cast %705 : vector<1x1x128xf32> to vector<1x128xf32>
    %707 = arith.addf %704, %706 : vector<1x128xf32>
    %708 = vector.extract_strided_slice %707 {offsets = [0, 0], sizes = [1, 1], strides = [1, 1]} : vector<1x128xf32> to vector<1x1xf32>
    %709 = vector.extract_strided_slice %707 {offsets = [0, 1], sizes = [1, 1], strides = [1, 1]} : vector<1x128xf32> to vector<1x1xf32>
    %710 = vector.extract_strided_slice %707 {offsets = [0, 2], sizes = [1, 1], strides = [1, 1]} : vector<1x128xf32> to vector<1x1xf32>
    %711 = arith.maximumf %708, %709 : vector<1x1xf32>
    %712 = arith.maximumf %711, %710 : vector<1x1xf32>
    %713 = arith.subf %708, %712 : vector<1x1xf32>
    %714 = arith.subf %709, %712 : vector<1x1xf32>
    %715 = arith.subf %710, %712 : vector<1x1xf32>
    %716 = math.exp %713 : vector<1x1xf32>
    %717 = math.exp %714 : vector<1x1xf32>
    %718 = math.exp %715 : vector<1x1xf32>
    %719 = arith.addf %716, %717 : vector<1x1xf32>
    %720 = arith.addf %719, %718 : vector<1x1xf32>
    %721 = vector.broadcast %672 : f32 to vector<1x1xf32>
    %722 = arith.mulf %720, %721 : vector<1x1xf32>
    %723 = arith.cmpf olt, %716, %722 : vector<1x1xf32>
    %724 = arith.extui %723 : vector<1x1xi1> to vector<1x1xi32>
    %725 = arith.addf %716, %717 : vector<1x1xf32>
    %726 = arith.cmpf olt, %725, %722 : vector<1x1xf32>
    %727 = arith.extui %726 : vector<1x1xi1> to vector<1x1xi32>
    %728 = arith.addi %724, %727 : vector<1x1xi32>
    %729 = math.log %720 : vector<1x1xf32>
    %c1_i32_135 = arith.constant 1 : i32
    %730 = vector.broadcast %c1_i32_135 : i32 to vector<1x1xi32>
    %731 = arith.cmpi eq, %728, %730 : vector<1x1xi32>
    %732 = arith.select %731, %714, %715 : vector<1x1xi1>, vector<1x1xf32>
    %c0_i32_136 = arith.constant 0 : i32
    %733 = vector.broadcast %c0_i32_136 : i32 to vector<1x1xi32>
    %734 = arith.cmpi eq, %728, %733 : vector<1x1xi32>
    %735 = arith.select %734, %713, %732 : vector<1x1xi1>, vector<1x1xf32>
    %736 = arith.subf %735, %729 : vector<1x1xf32>
    %737 = arith.mulf %716, %713 : vector<1x1xf32>
    %738 = arith.mulf %717, %714 : vector<1x1xf32>
    %739 = arith.addf %737, %738 : vector<1x1xf32>
    %740 = arith.mulf %718, %715 : vector<1x1xf32>
    %741 = arith.addf %739, %740 : vector<1x1xf32>
    %742 = tpu.reciprocal %720 {approx = true} : vector<1x1xf32> -> vector<1x1xf32>
    %743 = arith.mulf %741, %742 : vector<1x1xf32>
    %744 = arith.subf %729, %743 : vector<1x1xf32>
    %c1_137 = arith.constant 1 : index
    %c0_138 = arith.constant 0 : index
    %c0_139 = arith.constant 0 : index
    %745 = vector.load %arg2[%c1_137, %c0_138, %c0_139] : memref<3x3x128xf32, #tpu.memory_space<vmem>>, vector<1x3x128xf32>
    %746 = vector.shape_cast %745 : vector<1x3x128xf32> to vector<3x128xf32>
    %747 = vector.extract_strided_slice %746 {offsets = [2, 0], sizes = [1, 128], strides = [1, 1]} : vector<3x128xf32> to vector<1x128xf32>
    %c1_i32_140 = arith.constant 1 : i32
    %748 = vector.broadcast %c1_i32_140 : i32 to vector<1x1xi32>
    %749 = arith.cmpi eq, %728, %748 : vector<1x1xi32>
    %750 = vector.extract_strided_slice %746 {offsets = [1, 0], sizes = [1, 128], strides = [1, 1]} : vector<3x128xf32> to vector<1x128xf32>
    %751 = vector.shape_cast %749 : vector<1x1xi1> to vector<1x1xi1>
    %752 = vector.broadcast %751 : vector<1x1xi1> to vector<1x128xi1>
    %753 = arith.select %752, %750, %747 : vector<1x128xi1>, vector<1x128xf32>
    %c0_i32_141 = arith.constant 0 : i32
    %754 = vector.broadcast %c0_i32_141 : i32 to vector<1x1xi32>
    %755 = arith.cmpi eq, %728, %754 : vector<1x1xi32>
    %756 = vector.extract_strided_slice %746 {offsets = [0, 0], sizes = [1, 128], strides = [1, 1]} : vector<3x128xf32> to vector<1x128xf32>
    %757 = vector.shape_cast %755 : vector<1x1xi1> to vector<1x1xi1>
    %758 = vector.broadcast %757 : vector<1x1xi1> to vector<1x128xi1>
    %759 = arith.select %758, %756, %753 : vector<1x128xi1>, vector<1x128xf32>
    %c7_i32 = arith.constant 7 : i32
    %760 = vector.broadcast %c7_i32 : i32 to vector<1x128xi32>
    %761 = arith.cmpi eq, %0, %760 : vector<1x128xi32>
    %762 = vector.shape_cast %728 : vector<1x1xi32> to vector<1x1xi32>
    %763 = vector.broadcast %762 : vector<1x1xi32> to vector<1x128xi32>
    %764 = arith.select %761, %763, %669 : vector<1x128xi1>, vector<1x128xi32>
    %765 = arith.addf %670, %736 : vector<1x1xf32>
    %766 = arith.addf %671, %744 : vector<1x1xf32>
    %c8 = arith.constant 8 : index
    %767 = memref.load %arg0[%c8] : memref<18xf32, #tpu.memory_space<smem>>
    %768 = arith.addf %759, %703 : vector<1x128xf32>
    %769 = vector.extract_strided_slice %768 {offsets = [0, 0], sizes = [1, 32], strides = [1, 1]} : vector<1x128xf32> to vector<1x32xf32>
    %770 = arith.negf %769 : vector<1x32xf32>
    %771 = math.exp %770 : vector<1x32xf32>
    %cst_142 = arith.constant 1.000000e+00 : f32
    %772 = vector.broadcast %cst_142 : f32 to vector<1x32xf32>
    %773 = arith.addf %772, %771 : vector<1x32xf32>
    %774 = arith.divf %772, %773 : vector<1x32xf32>
    %775 = vector.extract_strided_slice %768 {offsets = [0, 32], sizes = [1, 32], strides = [1, 1]} : vector<1x128xf32> to vector<1x32xf32>
    %776 = arith.negf %775 : vector<1x32xf32>
    %777 = math.exp %776 : vector<1x32xf32>
    %cst_143 = arith.constant 1.000000e+00 : f32
    %778 = vector.broadcast %cst_143 : f32 to vector<1x32xf32>
    %779 = arith.addf %778, %777 : vector<1x32xf32>
    %780 = arith.divf %778, %779 : vector<1x32xf32>
    %781 = vector.extract_strided_slice %768 {offsets = [0, 64], sizes = [1, 32], strides = [1, 1]} : vector<1x128xf32> to vector<1x32xf32>
    %782 = math.tanh %781 : vector<1x32xf32>
    %783 = vector.extract_strided_slice %768 {offsets = [0, 96], sizes = [1, 32], strides = [1, 1]} : vector<1x128xf32> to vector<1x32xf32>
    %784 = arith.negf %783 : vector<1x32xf32>
    %785 = math.exp %784 : vector<1x32xf32>
    %cst_144 = arith.constant 1.000000e+00 : f32
    %786 = vector.broadcast %cst_144 : f32 to vector<1x32xf32>
    %787 = arith.addf %786, %785 : vector<1x32xf32>
    %788 = arith.divf %786, %787 : vector<1x32xf32>
    %789 = arith.mulf %780, %696 : vector<1x32xf32>
    %790 = arith.mulf %774, %782 : vector<1x32xf32>
    %791 = arith.addf %789, %790 : vector<1x32xf32>
    %792 = math.tanh %791 : vector<1x32xf32>
    %793 = arith.mulf %788, %792 : vector<1x32xf32>
    %c2_145 = arith.constant 2 : index
    %c0_146 = arith.constant 0 : index
    %c0_147 = arith.constant 0 : index
    %794 = vector.load %arg3[%c2_145, %c0_146, %c0_147] : memref<3x32x256xbf16, #tpu.memory_space<vmem>>, vector<1x32x256xbf16>
    %795 = vector.shape_cast %794 : vector<1x32x256xbf16> to vector<32x256xbf16>
    %796 = arith.truncf %793 : vector<1x32xf32> to vector<1x32xbf16>
    %cst_148 = arith.constant dense<0.000000e+00> : vector<1x256xf32>
    %797 = tpu.matmul %796, %795, %cst_148 {dimension_numbers = #tpu.dot_dimension_numbers<[1], [0], [0], [1], [0, 0, 1, 1], [], []>} : vector<1x32xbf16>, vector<32x256xbf16>, vector<1x256xf32> -> vector<1x256xf32>
    %798 = vector.extract_strided_slice %797 {offsets = [0, 128], sizes = [1, 128], strides = [1, 1]} : vector<1x256xf32> to vector<1x128xf32>
    %799 = vector.extract_strided_slice %797 {offsets = [0, 0], sizes = [1, 128], strides = [1, 1]} : vector<1x256xf32> to vector<1x128xf32>
    %c2_149 = arith.constant 2 : index
    %c0_150 = arith.constant 0 : index
    %c0_151 = arith.constant 0 : index
    %800 = vector.load %arg4[%c2_149, %c0_150, %c0_151] : memref<3x1x128xf32, #tpu.memory_space<vmem>>, vector<1x1x128xf32>
    %801 = vector.shape_cast %800 : vector<1x1x128xf32> to vector<1x128xf32>
    %802 = arith.addf %799, %801 : vector<1x128xf32>
    %803 = vector.extract_strided_slice %802 {offsets = [0, 0], sizes = [1, 1], strides = [1, 1]} : vector<1x128xf32> to vector<1x1xf32>
    %804 = vector.extract_strided_slice %802 {offsets = [0, 1], sizes = [1, 1], strides = [1, 1]} : vector<1x128xf32> to vector<1x1xf32>
    %805 = vector.extract_strided_slice %802 {offsets = [0, 2], sizes = [1, 1], strides = [1, 1]} : vector<1x128xf32> to vector<1x1xf32>
    %806 = arith.maximumf %803, %804 : vector<1x1xf32>
    %807 = arith.maximumf %806, %805 : vector<1x1xf32>
    %808 = arith.subf %803, %807 : vector<1x1xf32>
    %809 = arith.subf %804, %807 : vector<1x1xf32>
    %810 = arith.subf %805, %807 : vector<1x1xf32>
    %811 = math.exp %808 : vector<1x1xf32>
    %812 = math.exp %809 : vector<1x1xf32>
    %813 = math.exp %810 : vector<1x1xf32>
    %814 = arith.addf %811, %812 : vector<1x1xf32>
    %815 = arith.addf %814, %813 : vector<1x1xf32>
    %816 = vector.broadcast %767 : f32 to vector<1x1xf32>
    %817 = arith.mulf %815, %816 : vector<1x1xf32>
    %818 = arith.cmpf olt, %811, %817 : vector<1x1xf32>
    %819 = arith.extui %818 : vector<1x1xi1> to vector<1x1xi32>
    %820 = arith.addf %811, %812 : vector<1x1xf32>
    %821 = arith.cmpf olt, %820, %817 : vector<1x1xf32>
    %822 = arith.extui %821 : vector<1x1xi1> to vector<1x1xi32>
    %823 = arith.addi %819, %822 : vector<1x1xi32>
    %824 = math.log %815 : vector<1x1xf32>
    %c1_i32_152 = arith.constant 1 : i32
    %825 = vector.broadcast %c1_i32_152 : i32 to vector<1x1xi32>
    %826 = arith.cmpi eq, %823, %825 : vector<1x1xi32>
    %827 = arith.select %826, %809, %810 : vector<1x1xi1>, vector<1x1xf32>
    %c0_i32_153 = arith.constant 0 : i32
    %828 = vector.broadcast %c0_i32_153 : i32 to vector<1x1xi32>
    %829 = arith.cmpi eq, %823, %828 : vector<1x1xi32>
    %830 = arith.select %829, %808, %827 : vector<1x1xi1>, vector<1x1xf32>
    %831 = arith.subf %830, %824 : vector<1x1xf32>
    %832 = arith.mulf %811, %808 : vector<1x1xf32>
    %833 = arith.mulf %812, %809 : vector<1x1xf32>
    %834 = arith.addf %832, %833 : vector<1x1xf32>
    %835 = arith.mulf %813, %810 : vector<1x1xf32>
    %836 = arith.addf %834, %835 : vector<1x1xf32>
    %837 = tpu.reciprocal %815 {approx = true} : vector<1x1xf32> -> vector<1x1xf32>
    %838 = arith.mulf %836, %837 : vector<1x1xf32>
    %839 = arith.subf %824, %838 : vector<1x1xf32>
    %c2_154 = arith.constant 2 : index
    %c0_155 = arith.constant 0 : index
    %c0_156 = arith.constant 0 : index
    %840 = vector.load %arg2[%c2_154, %c0_155, %c0_156] : memref<3x3x128xf32, #tpu.memory_space<vmem>>, vector<1x3x128xf32>
    %841 = vector.shape_cast %840 : vector<1x3x128xf32> to vector<3x128xf32>
    %842 = vector.extract_strided_slice %841 {offsets = [2, 0], sizes = [1, 128], strides = [1, 1]} : vector<3x128xf32> to vector<1x128xf32>
    %c1_i32_157 = arith.constant 1 : i32
    %843 = vector.broadcast %c1_i32_157 : i32 to vector<1x1xi32>
    %844 = arith.cmpi eq, %823, %843 : vector<1x1xi32>
    %845 = vector.extract_strided_slice %841 {offsets = [1, 0], sizes = [1, 128], strides = [1, 1]} : vector<3x128xf32> to vector<1x128xf32>
    %846 = vector.shape_cast %844 : vector<1x1xi1> to vector<1x1xi1>
    %847 = vector.broadcast %846 : vector<1x1xi1> to vector<1x128xi1>
    %848 = arith.select %847, %845, %842 : vector<1x128xi1>, vector<1x128xf32>
    %c0_i32_158 = arith.constant 0 : i32
    %849 = vector.broadcast %c0_i32_158 : i32 to vector<1x1xi32>
    %850 = arith.cmpi eq, %823, %849 : vector<1x1xi32>
    %851 = vector.extract_strided_slice %841 {offsets = [0, 0], sizes = [1, 128], strides = [1, 1]} : vector<3x128xf32> to vector<1x128xf32>
    %852 = vector.shape_cast %850 : vector<1x1xi1> to vector<1x1xi1>
    %853 = vector.broadcast %852 : vector<1x1xi1> to vector<1x128xi1>
    %854 = arith.select %853, %851, %848 : vector<1x128xi1>, vector<1x128xf32>
    %c8_i32 = arith.constant 8 : i32
    %855 = vector.broadcast %c8_i32 : i32 to vector<1x128xi32>
    %856 = arith.cmpi eq, %0, %855 : vector<1x128xi32>
    %857 = vector.shape_cast %823 : vector<1x1xi32> to vector<1x1xi32>
    %858 = vector.broadcast %857 : vector<1x1xi32> to vector<1x128xi32>
    %859 = arith.select %856, %858, %764 : vector<1x128xi1>, vector<1x128xi32>
    %860 = arith.addf %765, %831 : vector<1x1xf32>
    %861 = arith.addf %766, %839 : vector<1x1xf32>
    %c9 = arith.constant 9 : index
    %862 = memref.load %arg0[%c9] : memref<18xf32, #tpu.memory_space<smem>>
    %863 = arith.addf %854, %798 : vector<1x128xf32>
    %864 = vector.extract_strided_slice %863 {offsets = [0, 0], sizes = [1, 32], strides = [1, 1]} : vector<1x128xf32> to vector<1x32xf32>
    %865 = arith.negf %864 : vector<1x32xf32>
    %866 = math.exp %865 : vector<1x32xf32>
    %cst_159 = arith.constant 1.000000e+00 : f32
    %867 = vector.broadcast %cst_159 : f32 to vector<1x32xf32>
    %868 = arith.addf %867, %866 : vector<1x32xf32>
    %869 = arith.divf %867, %868 : vector<1x32xf32>
    %870 = vector.extract_strided_slice %863 {offsets = [0, 32], sizes = [1, 32], strides = [1, 1]} : vector<1x128xf32> to vector<1x32xf32>
    %871 = arith.negf %870 : vector<1x32xf32>
    %872 = math.exp %871 : vector<1x32xf32>
    %cst_160 = arith.constant 1.000000e+00 : f32
    %873 = vector.broadcast %cst_160 : f32 to vector<1x32xf32>
    %874 = arith.addf %873, %872 : vector<1x32xf32>
    %875 = arith.divf %873, %874 : vector<1x32xf32>
    %876 = vector.extract_strided_slice %863 {offsets = [0, 64], sizes = [1, 32], strides = [1, 1]} : vector<1x128xf32> to vector<1x32xf32>
    %877 = math.tanh %876 : vector<1x32xf32>
    %878 = vector.extract_strided_slice %863 {offsets = [0, 96], sizes = [1, 32], strides = [1, 1]} : vector<1x128xf32> to vector<1x32xf32>
    %879 = arith.negf %878 : vector<1x32xf32>
    %880 = math.exp %879 : vector<1x32xf32>
    %cst_161 = arith.constant 1.000000e+00 : f32
    %881 = vector.broadcast %cst_161 : f32 to vector<1x32xf32>
    %882 = arith.addf %881, %880 : vector<1x32xf32>
    %883 = arith.divf %881, %882 : vector<1x32xf32>
    %884 = arith.mulf %875, %791 : vector<1x32xf32>
    %885 = arith.mulf %869, %877 : vector<1x32xf32>
    %886 = arith.addf %884, %885 : vector<1x32xf32>
    %887 = math.tanh %886 : vector<1x32xf32>
    %888 = arith.mulf %883, %887 : vector<1x32xf32>
    %c0_162 = arith.constant 0 : index
    %c0_163 = arith.constant 0 : index
    %c0_164 = arith.constant 0 : index
    %889 = vector.load %arg3[%c0_162, %c0_163, %c0_164] : memref<3x32x256xbf16, #tpu.memory_space<vmem>>, vector<1x32x256xbf16>
    %890 = vector.shape_cast %889 : vector<1x32x256xbf16> to vector<32x256xbf16>
    %891 = arith.truncf %888 : vector<1x32xf32> to vector<1x32xbf16>
    %cst_165 = arith.constant dense<0.000000e+00> : vector<1x256xf32>
    %892 = tpu.matmul %891, %890, %cst_165 {dimension_numbers = #tpu.dot_dimension_numbers<[1], [0], [0], [1], [0, 0, 1, 1], [], []>} : vector<1x32xbf16>, vector<32x256xbf16>, vector<1x256xf32> -> vector<1x256xf32>
    %893 = vector.extract_strided_slice %892 {offsets = [0, 128], sizes = [1, 128], strides = [1, 1]} : vector<1x256xf32> to vector<1x128xf32>
    %894 = vector.extract_strided_slice %892 {offsets = [0, 0], sizes = [1, 128], strides = [1, 1]} : vector<1x256xf32> to vector<1x128xf32>
    %c0_166 = arith.constant 0 : index
    %c0_167 = arith.constant 0 : index
    %c0_168 = arith.constant 0 : index
    %895 = vector.load %arg4[%c0_166, %c0_167, %c0_168] : memref<3x1x128xf32, #tpu.memory_space<vmem>>, vector<1x1x128xf32>
    %896 = vector.shape_cast %895 : vector<1x1x128xf32> to vector<1x128xf32>
    %897 = arith.addf %894, %896 : vector<1x128xf32>
    %898 = vector.extract_strided_slice %897 {offsets = [0, 0], sizes = [1, 1], strides = [1, 1]} : vector<1x128xf32> to vector<1x1xf32>
    %899 = vector.extract_strided_slice %897 {offsets = [0, 1], sizes = [1, 1], strides = [1, 1]} : vector<1x128xf32> to vector<1x1xf32>
    %900 = vector.extract_strided_slice %897 {offsets = [0, 2], sizes = [1, 1], strides = [1, 1]} : vector<1x128xf32> to vector<1x1xf32>
    %901 = arith.maximumf %898, %899 : vector<1x1xf32>
    %902 = arith.maximumf %901, %900 : vector<1x1xf32>
    %903 = arith.subf %898, %902 : vector<1x1xf32>
    %904 = arith.subf %899, %902 : vector<1x1xf32>
    %905 = arith.subf %900, %902 : vector<1x1xf32>
    %906 = math.exp %903 : vector<1x1xf32>
    %907 = math.exp %904 : vector<1x1xf32>
    %908 = math.exp %905 : vector<1x1xf32>
    %909 = arith.addf %906, %907 : vector<1x1xf32>
    %910 = arith.addf %909, %908 : vector<1x1xf32>
    %911 = vector.broadcast %862 : f32 to vector<1x1xf32>
    %912 = arith.mulf %910, %911 : vector<1x1xf32>
    %913 = arith.cmpf olt, %906, %912 : vector<1x1xf32>
    %914 = arith.extui %913 : vector<1x1xi1> to vector<1x1xi32>
    %915 = arith.addf %906, %907 : vector<1x1xf32>
    %916 = arith.cmpf olt, %915, %912 : vector<1x1xf32>
    %917 = arith.extui %916 : vector<1x1xi1> to vector<1x1xi32>
    %918 = arith.addi %914, %917 : vector<1x1xi32>
    %919 = math.log %910 : vector<1x1xf32>
    %c1_i32_169 = arith.constant 1 : i32
    %920 = vector.broadcast %c1_i32_169 : i32 to vector<1x1xi32>
    %921 = arith.cmpi eq, %918, %920 : vector<1x1xi32>
    %922 = arith.select %921, %904, %905 : vector<1x1xi1>, vector<1x1xf32>
    %c0_i32_170 = arith.constant 0 : i32
    %923 = vector.broadcast %c0_i32_170 : i32 to vector<1x1xi32>
    %924 = arith.cmpi eq, %918, %923 : vector<1x1xi32>
    %925 = arith.select %924, %903, %922 : vector<1x1xi1>, vector<1x1xf32>
    %926 = arith.subf %925, %919 : vector<1x1xf32>
    %927 = arith.mulf %906, %903 : vector<1x1xf32>
    %928 = arith.mulf %907, %904 : vector<1x1xf32>
    %929 = arith.addf %927, %928 : vector<1x1xf32>
    %930 = arith.mulf %908, %905 : vector<1x1xf32>
    %931 = arith.addf %929, %930 : vector<1x1xf32>
    %932 = tpu.reciprocal %910 {approx = true} : vector<1x1xf32> -> vector<1x1xf32>
    %933 = arith.mulf %931, %932 : vector<1x1xf32>
    %934 = arith.subf %919, %933 : vector<1x1xf32>
    %c0_171 = arith.constant 0 : index
    %c0_172 = arith.constant 0 : index
    %c0_173 = arith.constant 0 : index
    %935 = vector.load %arg2[%c0_171, %c0_172, %c0_173] : memref<3x3x128xf32, #tpu.memory_space<vmem>>, vector<1x3x128xf32>
    %936 = vector.shape_cast %935 : vector<1x3x128xf32> to vector<3x128xf32>
    %937 = vector.extract_strided_slice %936 {offsets = [2, 0], sizes = [1, 128], strides = [1, 1]} : vector<3x128xf32> to vector<1x128xf32>
    %c1_i32_174 = arith.constant 1 : i32
    %938 = vector.broadcast %c1_i32_174 : i32 to vector<1x1xi32>
    %939 = arith.cmpi eq, %918, %938 : vector<1x1xi32>
    %940 = vector.extract_strided_slice %936 {offsets = [1, 0], sizes = [1, 128], strides = [1, 1]} : vector<3x128xf32> to vector<1x128xf32>
    %941 = vector.shape_cast %939 : vector<1x1xi1> to vector<1x1xi1>
    %942 = vector.broadcast %941 : vector<1x1xi1> to vector<1x128xi1>
    %943 = arith.select %942, %940, %937 : vector<1x128xi1>, vector<1x128xf32>
    %c0_i32_175 = arith.constant 0 : i32
    %944 = vector.broadcast %c0_i32_175 : i32 to vector<1x1xi32>
    %945 = arith.cmpi eq, %918, %944 : vector<1x1xi32>
    %946 = vector.extract_strided_slice %936 {offsets = [0, 0], sizes = [1, 128], strides = [1, 1]} : vector<3x128xf32> to vector<1x128xf32>
    %947 = vector.shape_cast %945 : vector<1x1xi1> to vector<1x1xi1>
    %948 = vector.broadcast %947 : vector<1x1xi1> to vector<1x128xi1>
    %949 = arith.select %948, %946, %943 : vector<1x128xi1>, vector<1x128xf32>
    %c9_i32 = arith.constant 9 : i32
    %950 = vector.broadcast %c9_i32 : i32 to vector<1x128xi32>
    %951 = arith.cmpi eq, %0, %950 : vector<1x128xi32>
    %952 = vector.shape_cast %918 : vector<1x1xi32> to vector<1x1xi32>
    %953 = vector.broadcast %952 : vector<1x1xi32> to vector<1x128xi32>
    %954 = arith.select %951, %953, %859 : vector<1x128xi1>, vector<1x128xi32>
    %955 = arith.addf %860, %926 : vector<1x1xf32>
    %956 = arith.addf %861, %934 : vector<1x1xf32>
    %c10 = arith.constant 10 : index
    %957 = memref.load %arg0[%c10] : memref<18xf32, #tpu.memory_space<smem>>
    %958 = arith.addf %949, %893 : vector<1x128xf32>
    %959 = vector.extract_strided_slice %958 {offsets = [0, 0], sizes = [1, 32], strides = [1, 1]} : vector<1x128xf32> to vector<1x32xf32>
    %960 = arith.negf %959 : vector<1x32xf32>
    %961 = math.exp %960 : vector<1x32xf32>
    %cst_176 = arith.constant 1.000000e+00 : f32
    %962 = vector.broadcast %cst_176 : f32 to vector<1x32xf32>
    %963 = arith.addf %962, %961 : vector<1x32xf32>
    %964 = arith.divf %962, %963 : vector<1x32xf32>
    %965 = vector.extract_strided_slice %958 {offsets = [0, 32], sizes = [1, 32], strides = [1, 1]} : vector<1x128xf32> to vector<1x32xf32>
    %966 = arith.negf %965 : vector<1x32xf32>
    %967 = math.exp %966 : vector<1x32xf32>
    %cst_177 = arith.constant 1.000000e+00 : f32
    %968 = vector.broadcast %cst_177 : f32 to vector<1x32xf32>
    %969 = arith.addf %968, %967 : vector<1x32xf32>
    %970 = arith.divf %968, %969 : vector<1x32xf32>
    %971 = vector.extract_strided_slice %958 {offsets = [0, 64], sizes = [1, 32], strides = [1, 1]} : vector<1x128xf32> to vector<1x32xf32>
    %972 = math.tanh %971 : vector<1x32xf32>
    %973 = vector.extract_strided_slice %958 {offsets = [0, 96], sizes = [1, 32], strides = [1, 1]} : vector<1x128xf32> to vector<1x32xf32>
    %974 = arith.negf %973 : vector<1x32xf32>
    %975 = math.exp %974 : vector<1x32xf32>
    %cst_178 = arith.constant 1.000000e+00 : f32
    %976 = vector.broadcast %cst_178 : f32 to vector<1x32xf32>
    %977 = arith.addf %976, %975 : vector<1x32xf32>
    %978 = arith.divf %976, %977 : vector<1x32xf32>
    %979 = arith.mulf %970, %886 : vector<1x32xf32>
    %980 = arith.mulf %964, %972 : vector<1x32xf32>
    %981 = arith.addf %979, %980 : vector<1x32xf32>
    %982 = math.tanh %981 : vector<1x32xf32>
    %983 = arith.mulf %978, %982 : vector<1x32xf32>
    %c1_179 = arith.constant 1 : index
    %c0_180 = arith.constant 0 : index
    %c0_181 = arith.constant 0 : index
    %984 = vector.load %arg3[%c1_179, %c0_180, %c0_181] : memref<3x32x256xbf16, #tpu.memory_space<vmem>>, vector<1x32x256xbf16>
    %985 = vector.shape_cast %984 : vector<1x32x256xbf16> to vector<32x256xbf16>
    %986 = arith.truncf %983 : vector<1x32xf32> to vector<1x32xbf16>
    %cst_182 = arith.constant dense<0.000000e+00> : vector<1x256xf32>
    %987 = tpu.matmul %986, %985, %cst_182 {dimension_numbers = #tpu.dot_dimension_numbers<[1], [0], [0], [1], [0, 0, 1, 1], [], []>} : vector<1x32xbf16>, vector<32x256xbf16>, vector<1x256xf32> -> vector<1x256xf32>
    %988 = vector.extract_strided_slice %987 {offsets = [0, 128], sizes = [1, 128], strides = [1, 1]} : vector<1x256xf32> to vector<1x128xf32>
    %989 = vector.extract_strided_slice %987 {offsets = [0, 0], sizes = [1, 128], strides = [1, 1]} : vector<1x256xf32> to vector<1x128xf32>
    %c1_183 = arith.constant 1 : index
    %c0_184 = arith.constant 0 : index
    %c0_185 = arith.constant 0 : index
    %990 = vector.load %arg4[%c1_183, %c0_184, %c0_185] : memref<3x1x128xf32, #tpu.memory_space<vmem>>, vector<1x1x128xf32>
    %991 = vector.shape_cast %990 : vector<1x1x128xf32> to vector<1x128xf32>
    %992 = arith.addf %989, %991 : vector<1x128xf32>
    %993 = vector.extract_strided_slice %992 {offsets = [0, 0], sizes = [1, 1], strides = [1, 1]} : vector<1x128xf32> to vector<1x1xf32>
    %994 = vector.extract_strided_slice %992 {offsets = [0, 1], sizes = [1, 1], strides = [1, 1]} : vector<1x128xf32> to vector<1x1xf32>
    %995 = vector.extract_strided_slice %992 {offsets = [0, 2], sizes = [1, 1], strides = [1, 1]} : vector<1x128xf32> to vector<1x1xf32>
    %996 = arith.maximumf %993, %994 : vector<1x1xf32>
    %997 = arith.maximumf %996, %995 : vector<1x1xf32>
    %998 = arith.subf %993, %997 : vector<1x1xf32>
    %999 = arith.subf %994, %997 : vector<1x1xf32>
    %1000 = arith.subf %995, %997 : vector<1x1xf32>
    %1001 = math.exp %998 : vector<1x1xf32>
    %1002 = math.exp %999 : vector<1x1xf32>
    %1003 = math.exp %1000 : vector<1x1xf32>
    %1004 = arith.addf %1001, %1002 : vector<1x1xf32>
    %1005 = arith.addf %1004, %1003 : vector<1x1xf32>
    %1006 = vector.broadcast %957 : f32 to vector<1x1xf32>
    %1007 = arith.mulf %1005, %1006 : vector<1x1xf32>
    %1008 = arith.cmpf olt, %1001, %1007 : vector<1x1xf32>
    %1009 = arith.extui %1008 : vector<1x1xi1> to vector<1x1xi32>
    %1010 = arith.addf %1001, %1002 : vector<1x1xf32>
    %1011 = arith.cmpf olt, %1010, %1007 : vector<1x1xf32>
    %1012 = arith.extui %1011 : vector<1x1xi1> to vector<1x1xi32>
    %1013 = arith.addi %1009, %1012 : vector<1x1xi32>
    %1014 = math.log %1005 : vector<1x1xf32>
    %c1_i32_186 = arith.constant 1 : i32
    %1015 = vector.broadcast %c1_i32_186 : i32 to vector<1x1xi32>
    %1016 = arith.cmpi eq, %1013, %1015 : vector<1x1xi32>
    %1017 = arith.select %1016, %999, %1000 : vector<1x1xi1>, vector<1x1xf32>
    %c0_i32_187 = arith.constant 0 : i32
    %1018 = vector.broadcast %c0_i32_187 : i32 to vector<1x1xi32>
    %1019 = arith.cmpi eq, %1013, %1018 : vector<1x1xi32>
    %1020 = arith.select %1019, %998, %1017 : vector<1x1xi1>, vector<1x1xf32>
    %1021 = arith.subf %1020, %1014 : vector<1x1xf32>
    %1022 = arith.mulf %1001, %998 : vector<1x1xf32>
    %1023 = arith.mulf %1002, %999 : vector<1x1xf32>
    %1024 = arith.addf %1022, %1023 : vector<1x1xf32>
    %1025 = arith.mulf %1003, %1000 : vector<1x1xf32>
    %1026 = arith.addf %1024, %1025 : vector<1x1xf32>
    %1027 = tpu.reciprocal %1005 {approx = true} : vector<1x1xf32> -> vector<1x1xf32>
    %1028 = arith.mulf %1026, %1027 : vector<1x1xf32>
    %1029 = arith.subf %1014, %1028 : vector<1x1xf32>
    %c1_188 = arith.constant 1 : index
    %c0_189 = arith.constant 0 : index
    %c0_190 = arith.constant 0 : index
    %1030 = vector.load %arg2[%c1_188, %c0_189, %c0_190] : memref<3x3x128xf32, #tpu.memory_space<vmem>>, vector<1x3x128xf32>
    %1031 = vector.shape_cast %1030 : vector<1x3x128xf32> to vector<3x128xf32>
    %1032 = vector.extract_strided_slice %1031 {offsets = [2, 0], sizes = [1, 128], strides = [1, 1]} : vector<3x128xf32> to vector<1x128xf32>
    %c1_i32_191 = arith.constant 1 : i32
    %1033 = vector.broadcast %c1_i32_191 : i32 to vector<1x1xi32>
    %1034 = arith.cmpi eq, %1013, %1033 : vector<1x1xi32>
    %1035 = vector.extract_strided_slice %1031 {offsets = [1, 0], sizes = [1, 128], strides = [1, 1]} : vector<3x128xf32> to vector<1x128xf32>
    %1036 = vector.shape_cast %1034 : vector<1x1xi1> to vector<1x1xi1>
    %1037 = vector.broadcast %1036 : vector<1x1xi1> to vector<1x128xi1>
    %1038 = arith.select %1037, %1035, %1032 : vector<1x128xi1>, vector<1x128xf32>
    %c0_i32_192 = arith.constant 0 : i32
    %1039 = vector.broadcast %c0_i32_192 : i32 to vector<1x1xi32>
    %1040 = arith.cmpi eq, %1013, %1039 : vector<1x1xi32>
    %1041 = vector.extract_strided_slice %1031 {offsets = [0, 0], sizes = [1, 128], strides = [1, 1]} : vector<3x128xf32> to vector<1x128xf32>
    %1042 = vector.shape_cast %1040 : vector<1x1xi1> to vector<1x1xi1>
    %1043 = vector.broadcast %1042 : vector<1x1xi1> to vector<1x128xi1>
    %1044 = arith.select %1043, %1041, %1038 : vector<1x128xi1>, vector<1x128xf32>
    %c10_i32 = arith.constant 10 : i32
    %1045 = vector.broadcast %c10_i32 : i32 to vector<1x128xi32>
    %1046 = arith.cmpi eq, %0, %1045 : vector<1x128xi32>
    %1047 = vector.shape_cast %1013 : vector<1x1xi32> to vector<1x1xi32>
    %1048 = vector.broadcast %1047 : vector<1x1xi32> to vector<1x128xi32>
    %1049 = arith.select %1046, %1048, %954 : vector<1x128xi1>, vector<1x128xi32>
    %1050 = arith.addf %955, %1021 : vector<1x1xf32>
    %1051 = arith.addf %956, %1029 : vector<1x1xf32>
    %c11 = arith.constant 11 : index
    %1052 = memref.load %arg0[%c11] : memref<18xf32, #tpu.memory_space<smem>>
    %1053 = arith.addf %1044, %988 : vector<1x128xf32>
    %1054 = vector.extract_strided_slice %1053 {offsets = [0, 0], sizes = [1, 32], strides = [1, 1]} : vector<1x128xf32> to vector<1x32xf32>
    %1055 = arith.negf %1054 : vector<1x32xf32>
    %1056 = math.exp %1055 : vector<1x32xf32>
    %cst_193 = arith.constant 1.000000e+00 : f32
    %1057 = vector.broadcast %cst_193 : f32 to vector<1x32xf32>
    %1058 = arith.addf %1057, %1056 : vector<1x32xf32>
    %1059 = arith.divf %1057, %1058 : vector<1x32xf32>
    %1060 = vector.extract_strided_slice %1053 {offsets = [0, 32], sizes = [1, 32], strides = [1, 1]} : vector<1x128xf32> to vector<1x32xf32>
    %1061 = arith.negf %1060 : vector<1x32xf32>
    %1062 = math.exp %1061 : vector<1x32xf32>
    %cst_194 = arith.constant 1.000000e+00 : f32
    %1063 = vector.broadcast %cst_194 : f32 to vector<1x32xf32>
    %1064 = arith.addf %1063, %1062 : vector<1x32xf32>
    %1065 = arith.divf %1063, %1064 : vector<1x32xf32>
    %1066 = vector.extract_strided_slice %1053 {offsets = [0, 64], sizes = [1, 32], strides = [1, 1]} : vector<1x128xf32> to vector<1x32xf32>
    %1067 = math.tanh %1066 : vector<1x32xf32>
    %1068 = vector.extract_strided_slice %1053 {offsets = [0, 96], sizes = [1, 32], strides = [1, 1]} : vector<1x128xf32> to vector<1x32xf32>
    %1069 = arith.negf %1068 : vector<1x32xf32>
    %1070 = math.exp %1069 : vector<1x32xf32>
    %cst_195 = arith.constant 1.000000e+00 : f32
    %1071 = vector.broadcast %cst_195 : f32 to vector<1x32xf32>
    %1072 = arith.addf %1071, %1070 : vector<1x32xf32>
    %1073 = arith.divf %1071, %1072 : vector<1x32xf32>
    %1074 = arith.mulf %1065, %981 : vector<1x32xf32>
    %1075 = arith.mulf %1059, %1067 : vector<1x32xf32>
    %1076 = arith.addf %1074, %1075 : vector<1x32xf32>
    %1077 = math.tanh %1076 : vector<1x32xf32>
    %1078 = arith.mulf %1073, %1077 : vector<1x32xf32>
    %c2_196 = arith.constant 2 : index
    %c0_197 = arith.constant 0 : index
    %c0_198 = arith.constant 0 : index
    %1079 = vector.load %arg3[%c2_196, %c0_197, %c0_198] : memref<3x32x256xbf16, #tpu.memory_space<vmem>>, vector<1x32x256xbf16>
    %1080 = vector.shape_cast %1079 : vector<1x32x256xbf16> to vector<32x256xbf16>
    %1081 = arith.truncf %1078 : vector<1x32xf32> to vector<1x32xbf16>
    %cst_199 = arith.constant dense<0.000000e+00> : vector<1x256xf32>
    %1082 = tpu.matmul %1081, %1080, %cst_199 {dimension_numbers = #tpu.dot_dimension_numbers<[1], [0], [0], [1], [0, 0, 1, 1], [], []>} : vector<1x32xbf16>, vector<32x256xbf16>, vector<1x256xf32> -> vector<1x256xf32>
    %1083 = vector.extract_strided_slice %1082 {offsets = [0, 128], sizes = [1, 128], strides = [1, 1]} : vector<1x256xf32> to vector<1x128xf32>
    %1084 = vector.extract_strided_slice %1082 {offsets = [0, 0], sizes = [1, 128], strides = [1, 1]} : vector<1x256xf32> to vector<1x128xf32>
    %c2_200 = arith.constant 2 : index
    %c0_201 = arith.constant 0 : index
    %c0_202 = arith.constant 0 : index
    %1085 = vector.load %arg4[%c2_200, %c0_201, %c0_202] : memref<3x1x128xf32, #tpu.memory_space<vmem>>, vector<1x1x128xf32>
    %1086 = vector.shape_cast %1085 : vector<1x1x128xf32> to vector<1x128xf32>
    %1087 = arith.addf %1084, %1086 : vector<1x128xf32>
    %1088 = vector.extract_strided_slice %1087 {offsets = [0, 0], sizes = [1, 1], strides = [1, 1]} : vector<1x128xf32> to vector<1x1xf32>
    %1089 = vector.extract_strided_slice %1087 {offsets = [0, 1], sizes = [1, 1], strides = [1, 1]} : vector<1x128xf32> to vector<1x1xf32>
    %1090 = vector.extract_strided_slice %1087 {offsets = [0, 2], sizes = [1, 1], strides = [1, 1]} : vector<1x128xf32> to vector<1x1xf32>
    %1091 = arith.maximumf %1088, %1089 : vector<1x1xf32>
    %1092 = arith.maximumf %1091, %1090 : vector<1x1xf32>
    %1093 = arith.subf %1088, %1092 : vector<1x1xf32>
    %1094 = arith.subf %1089, %1092 : vector<1x1xf32>
    %1095 = arith.subf %1090, %1092 : vector<1x1xf32>
    %1096 = math.exp %1093 : vector<1x1xf32>
    %1097 = math.exp %1094 : vector<1x1xf32>
    %1098 = math.exp %1095 : vector<1x1xf32>
    %1099 = arith.addf %1096, %1097 : vector<1x1xf32>
    %1100 = arith.addf %1099, %1098 : vector<1x1xf32>
    %1101 = vector.broadcast %1052 : f32 to vector<1x1xf32>
    %1102 = arith.mulf %1100, %1101 : vector<1x1xf32>
    %1103 = arith.cmpf olt, %1096, %1102 : vector<1x1xf32>
    %1104 = arith.extui %1103 : vector<1x1xi1> to vector<1x1xi32>
    %1105 = arith.addf %1096, %1097 : vector<1x1xf32>
    %1106 = arith.cmpf olt, %1105, %1102 : vector<1x1xf32>
    %1107 = arith.extui %1106 : vector<1x1xi1> to vector<1x1xi32>
    %1108 = arith.addi %1104, %1107 : vector<1x1xi32>
    %1109 = math.log %1100 : vector<1x1xf32>
    %c1_i32_203 = arith.constant 1 : i32
    %1110 = vector.broadcast %c1_i32_203 : i32 to vector<1x1xi32>
    %1111 = arith.cmpi eq, %1108, %1110 : vector<1x1xi32>
    %1112 = arith.select %1111, %1094, %1095 : vector<1x1xi1>, vector<1x1xf32>
    %c0_i32_204 = arith.constant 0 : i32
    %1113 = vector.broadcast %c0_i32_204 : i32 to vector<1x1xi32>
    %1114 = arith.cmpi eq, %1108, %1113 : vector<1x1xi32>
    %1115 = arith.select %1114, %1093, %1112 : vector<1x1xi1>, vector<1x1xf32>
    %1116 = arith.subf %1115, %1109 : vector<1x1xf32>
    %1117 = arith.mulf %1096, %1093 : vector<1x1xf32>
    %1118 = arith.mulf %1097, %1094 : vector<1x1xf32>
    %1119 = arith.addf %1117, %1118 : vector<1x1xf32>
    %1120 = arith.mulf %1098, %1095 : vector<1x1xf32>
    %1121 = arith.addf %1119, %1120 : vector<1x1xf32>
    %1122 = tpu.reciprocal %1100 {approx = true} : vector<1x1xf32> -> vector<1x1xf32>
    %1123 = arith.mulf %1121, %1122 : vector<1x1xf32>
    %1124 = arith.subf %1109, %1123 : vector<1x1xf32>
    %c2_205 = arith.constant 2 : index
    %c0_206 = arith.constant 0 : index
    %c0_207 = arith.constant 0 : index
    %1125 = vector.load %arg2[%c2_205, %c0_206, %c0_207] : memref<3x3x128xf32, #tpu.memory_space<vmem>>, vector<1x3x128xf32>
    %1126 = vector.shape_cast %1125 : vector<1x3x128xf32> to vector<3x128xf32>
    %1127 = vector.extract_strided_slice %1126 {offsets = [2, 0], sizes = [1, 128], strides = [1, 1]} : vector<3x128xf32> to vector<1x128xf32>
    %c1_i32_208 = arith.constant 1 : i32
    %1128 = vector.broadcast %c1_i32_208 : i32 to vector<1x1xi32>
    %1129 = arith.cmpi eq, %1108, %1128 : vector<1x1xi32>
    %1130 = vector.extract_strided_slice %1126 {offsets = [1, 0], sizes = [1, 128], strides = [1, 1]} : vector<3x128xf32> to vector<1x128xf32>
    %1131 = vector.shape_cast %1129 : vector<1x1xi1> to vector<1x1xi1>
    %1132 = vector.broadcast %1131 : vector<1x1xi1> to vector<1x128xi1>
    %1133 = arith.select %1132, %1130, %1127 : vector<1x128xi1>, vector<1x128xf32>
    %c0_i32_209 = arith.constant 0 : i32
    %1134 = vector.broadcast %c0_i32_209 : i32 to vector<1x1xi32>
    %1135 = arith.cmpi eq, %1108, %1134 : vector<1x1xi32>
    %1136 = vector.extract_strided_slice %1126 {offsets = [0, 0], sizes = [1, 128], strides = [1, 1]} : vector<3x128xf32> to vector<1x128xf32>
    %1137 = vector.shape_cast %1135 : vector<1x1xi1> to vector<1x1xi1>
    %1138 = vector.broadcast %1137 : vector<1x1xi1> to vector<1x128xi1>
    %1139 = arith.select %1138, %1136, %1133 : vector<1x128xi1>, vector<1x128xf32>
    %c11_i32 = arith.constant 11 : i32
    %1140 = vector.broadcast %c11_i32 : i32 to vector<1x128xi32>
    %1141 = arith.cmpi eq, %0, %1140 : vector<1x128xi32>
    %1142 = vector.shape_cast %1108 : vector<1x1xi32> to vector<1x1xi32>
    %1143 = vector.broadcast %1142 : vector<1x1xi32> to vector<1x128xi32>
    %1144 = arith.select %1141, %1143, %1049 : vector<1x128xi1>, vector<1x128xi32>
    %1145 = arith.addf %1050, %1116 : vector<1x1xf32>
    %1146 = arith.addf %1051, %1124 : vector<1x1xf32>
    %c12 = arith.constant 12 : index
    %1147 = memref.load %arg0[%c12] : memref<18xf32, #tpu.memory_space<smem>>
    %1148 = arith.addf %1139, %1083 : vector<1x128xf32>
    %1149 = vector.extract_strided_slice %1148 {offsets = [0, 0], sizes = [1, 32], strides = [1, 1]} : vector<1x128xf32> to vector<1x32xf32>
    %1150 = arith.negf %1149 : vector<1x32xf32>
    %1151 = math.exp %1150 : vector<1x32xf32>
    %cst_210 = arith.constant 1.000000e+00 : f32
    %1152 = vector.broadcast %cst_210 : f32 to vector<1x32xf32>
    %1153 = arith.addf %1152, %1151 : vector<1x32xf32>
    %1154 = arith.divf %1152, %1153 : vector<1x32xf32>
    %1155 = vector.extract_strided_slice %1148 {offsets = [0, 32], sizes = [1, 32], strides = [1, 1]} : vector<1x128xf32> to vector<1x32xf32>
    %1156 = arith.negf %1155 : vector<1x32xf32>
    %1157 = math.exp %1156 : vector<1x32xf32>
    %cst_211 = arith.constant 1.000000e+00 : f32
    %1158 = vector.broadcast %cst_211 : f32 to vector<1x32xf32>
    %1159 = arith.addf %1158, %1157 : vector<1x32xf32>
    %1160 = arith.divf %1158, %1159 : vector<1x32xf32>
    %1161 = vector.extract_strided_slice %1148 {offsets = [0, 64], sizes = [1, 32], strides = [1, 1]} : vector<1x128xf32> to vector<1x32xf32>
    %1162 = math.tanh %1161 : vector<1x32xf32>
    %1163 = vector.extract_strided_slice %1148 {offsets = [0, 96], sizes = [1, 32], strides = [1, 1]} : vector<1x128xf32> to vector<1x32xf32>
    %1164 = arith.negf %1163 : vector<1x32xf32>
    %1165 = math.exp %1164 : vector<1x32xf32>
    %cst_212 = arith.constant 1.000000e+00 : f32
    %1166 = vector.broadcast %cst_212 : f32 to vector<1x32xf32>
    %1167 = arith.addf %1166, %1165 : vector<1x32xf32>
    %1168 = arith.divf %1166, %1167 : vector<1x32xf32>
    %1169 = arith.mulf %1160, %1076 : vector<1x32xf32>
    %1170 = arith.mulf %1154, %1162 : vector<1x32xf32>
    %1171 = arith.addf %1169, %1170 : vector<1x32xf32>
    %1172 = math.tanh %1171 : vector<1x32xf32>
    %1173 = arith.mulf %1168, %1172 : vector<1x32xf32>
    %c1_213 = arith.constant 1 : index
    %c0_214 = arith.constant 0 : index
    %c0_215 = arith.constant 0 : index
    %1174 = vector.load %arg3[%c1_213, %c0_214, %c0_215] : memref<3x32x256xbf16, #tpu.memory_space<vmem>>, vector<1x32x256xbf16>
    %1175 = vector.shape_cast %1174 : vector<1x32x256xbf16> to vector<32x256xbf16>
    %1176 = arith.truncf %1173 : vector<1x32xf32> to vector<1x32xbf16>
    %cst_216 = arith.constant dense<0.000000e+00> : vector<1x256xf32>
    %1177 = tpu.matmul %1176, %1175, %cst_216 {dimension_numbers = #tpu.dot_dimension_numbers<[1], [0], [0], [1], [0, 0, 1, 1], [], []>} : vector<1x32xbf16>, vector<32x256xbf16>, vector<1x256xf32> -> vector<1x256xf32>
    %1178 = vector.extract_strided_slice %1177 {offsets = [0, 128], sizes = [1, 128], strides = [1, 1]} : vector<1x256xf32> to vector<1x128xf32>
    %1179 = vector.extract_strided_slice %1177 {offsets = [0, 0], sizes = [1, 128], strides = [1, 1]} : vector<1x256xf32> to vector<1x128xf32>
    %c1_217 = arith.constant 1 : index
    %c0_218 = arith.constant 0 : index
    %c0_219 = arith.constant 0 : index
    %1180 = vector.load %arg4[%c1_217, %c0_218, %c0_219] : memref<3x1x128xf32, #tpu.memory_space<vmem>>, vector<1x1x128xf32>
    %1181 = vector.shape_cast %1180 : vector<1x1x128xf32> to vector<1x128xf32>
    %1182 = arith.addf %1179, %1181 : vector<1x128xf32>
    %1183 = vector.extract_strided_slice %1182 {offsets = [0, 0], sizes = [1, 1], strides = [1, 1]} : vector<1x128xf32> to vector<1x1xf32>
    %1184 = vector.extract_strided_slice %1182 {offsets = [0, 1], sizes = [1, 1], strides = [1, 1]} : vector<1x128xf32> to vector<1x1xf32>
    %1185 = vector.extract_strided_slice %1182 {offsets = [0, 2], sizes = [1, 1], strides = [1, 1]} : vector<1x128xf32> to vector<1x1xf32>
    %1186 = arith.maximumf %1183, %1184 : vector<1x1xf32>
    %1187 = arith.maximumf %1186, %1185 : vector<1x1xf32>
    %1188 = arith.subf %1183, %1187 : vector<1x1xf32>
    %1189 = arith.subf %1184, %1187 : vector<1x1xf32>
    %1190 = arith.subf %1185, %1187 : vector<1x1xf32>
    %1191 = math.exp %1188 : vector<1x1xf32>
    %1192 = math.exp %1189 : vector<1x1xf32>
    %1193 = math.exp %1190 : vector<1x1xf32>
    %1194 = arith.addf %1191, %1192 : vector<1x1xf32>
    %1195 = arith.addf %1194, %1193 : vector<1x1xf32>
    %1196 = vector.broadcast %1147 : f32 to vector<1x1xf32>
    %1197 = arith.mulf %1195, %1196 : vector<1x1xf32>
    %1198 = arith.cmpf olt, %1191, %1197 : vector<1x1xf32>
    %1199 = arith.extui %1198 : vector<1x1xi1> to vector<1x1xi32>
    %1200 = arith.addf %1191, %1192 : vector<1x1xf32>
    %1201 = arith.cmpf olt, %1200, %1197 : vector<1x1xf32>
    %1202 = arith.extui %1201 : vector<1x1xi1> to vector<1x1xi32>
    %1203 = arith.addi %1199, %1202 : vector<1x1xi32>
    %1204 = math.log %1195 : vector<1x1xf32>
    %c1_i32_220 = arith.constant 1 : i32
    %1205 = vector.broadcast %c1_i32_220 : i32 to vector<1x1xi32>
    %1206 = arith.cmpi eq, %1203, %1205 : vector<1x1xi32>
    %1207 = arith.select %1206, %1189, %1190 : vector<1x1xi1>, vector<1x1xf32>
    %c0_i32_221 = arith.constant 0 : i32
    %1208 = vector.broadcast %c0_i32_221 : i32 to vector<1x1xi32>
    %1209 = arith.cmpi eq, %1203, %1208 : vector<1x1xi32>
    %1210 = arith.select %1209, %1188, %1207 : vector<1x1xi1>, vector<1x1xf32>
    %1211 = arith.subf %1210, %1204 : vector<1x1xf32>
    %1212 = arith.mulf %1191, %1188 : vector<1x1xf32>
    %1213 = arith.mulf %1192, %1189 : vector<1x1xf32>
    %1214 = arith.addf %1212, %1213 : vector<1x1xf32>
    %1215 = arith.mulf %1193, %1190 : vector<1x1xf32>
    %1216 = arith.addf %1214, %1215 : vector<1x1xf32>
    %1217 = tpu.reciprocal %1195 {approx = true} : vector<1x1xf32> -> vector<1x1xf32>
    %1218 = arith.mulf %1216, %1217 : vector<1x1xf32>
    %1219 = arith.subf %1204, %1218 : vector<1x1xf32>
    %c1_222 = arith.constant 1 : index
    %c0_223 = arith.constant 0 : index
    %c0_224 = arith.constant 0 : index
    %1220 = vector.load %arg2[%c1_222, %c0_223, %c0_224] : memref<3x3x128xf32, #tpu.memory_space<vmem>>, vector<1x3x128xf32>
    %1221 = vector.shape_cast %1220 : vector<1x3x128xf32> to vector<3x128xf32>
    %1222 = vector.extract_strided_slice %1221 {offsets = [2, 0], sizes = [1, 128], strides = [1, 1]} : vector<3x128xf32> to vector<1x128xf32>
    %c1_i32_225 = arith.constant 1 : i32
    %1223 = vector.broadcast %c1_i32_225 : i32 to vector<1x1xi32>
    %1224 = arith.cmpi eq, %1203, %1223 : vector<1x1xi32>
    %1225 = vector.extract_strided_slice %1221 {offsets = [1, 0], sizes = [1, 128], strides = [1, 1]} : vector<3x128xf32> to vector<1x128xf32>
    %1226 = vector.shape_cast %1224 : vector<1x1xi1> to vector<1x1xi1>
    %1227 = vector.broadcast %1226 : vector<1x1xi1> to vector<1x128xi1>
    %1228 = arith.select %1227, %1225, %1222 : vector<1x128xi1>, vector<1x128xf32>
    %c0_i32_226 = arith.constant 0 : i32
    %1229 = vector.broadcast %c0_i32_226 : i32 to vector<1x1xi32>
    %1230 = arith.cmpi eq, %1203, %1229 : vector<1x1xi32>
    %1231 = vector.extract_strided_slice %1221 {offsets = [0, 0], sizes = [1, 128], strides = [1, 1]} : vector<3x128xf32> to vector<1x128xf32>
    %1232 = vector.shape_cast %1230 : vector<1x1xi1> to vector<1x1xi1>
    %1233 = vector.broadcast %1232 : vector<1x1xi1> to vector<1x128xi1>
    %1234 = arith.select %1233, %1231, %1228 : vector<1x128xi1>, vector<1x128xf32>
    %c12_i32 = arith.constant 12 : i32
    %1235 = vector.broadcast %c12_i32 : i32 to vector<1x128xi32>
    %1236 = arith.cmpi eq, %0, %1235 : vector<1x128xi32>
    %1237 = vector.shape_cast %1203 : vector<1x1xi32> to vector<1x1xi32>
    %1238 = vector.broadcast %1237 : vector<1x1xi32> to vector<1x128xi32>
    %1239 = arith.select %1236, %1238, %1144 : vector<1x128xi1>, vector<1x128xi32>
    %1240 = arith.addf %1145, %1211 : vector<1x1xf32>
    %1241 = arith.addf %1146, %1219 : vector<1x1xf32>
    %c13 = arith.constant 13 : index
    %1242 = memref.load %arg0[%c13] : memref<18xf32, #tpu.memory_space<smem>>
    %1243 = arith.addf %1234, %1178 : vector<1x128xf32>
    %1244 = vector.extract_strided_slice %1243 {offsets = [0, 0], sizes = [1, 32], strides = [1, 1]} : vector<1x128xf32> to vector<1x32xf32>
    %1245 = arith.negf %1244 : vector<1x32xf32>
    %1246 = math.exp %1245 : vector<1x32xf32>
    %cst_227 = arith.constant 1.000000e+00 : f32
    %1247 = vector.broadcast %cst_227 : f32 to vector<1x32xf32>
    %1248 = arith.addf %1247, %1246 : vector<1x32xf32>
    %1249 = arith.divf %1247, %1248 : vector<1x32xf32>
    %1250 = vector.extract_strided_slice %1243 {offsets = [0, 32], sizes = [1, 32], strides = [1, 1]} : vector<1x128xf32> to vector<1x32xf32>
    %1251 = arith.negf %1250 : vector<1x32xf32>
    %1252 = math.exp %1251 : vector<1x32xf32>
    %cst_228 = arith.constant 1.000000e+00 : f32
    %1253 = vector.broadcast %cst_228 : f32 to vector<1x32xf32>
    %1254 = arith.addf %1253, %1252 : vector<1x32xf32>
    %1255 = arith.divf %1253, %1254 : vector<1x32xf32>
    %1256 = vector.extract_strided_slice %1243 {offsets = [0, 64], sizes = [1, 32], strides = [1, 1]} : vector<1x128xf32> to vector<1x32xf32>
    %1257 = math.tanh %1256 : vector<1x32xf32>
    %1258 = vector.extract_strided_slice %1243 {offsets = [0, 96], sizes = [1, 32], strides = [1, 1]} : vector<1x128xf32> to vector<1x32xf32>
    %1259 = arith.negf %1258 : vector<1x32xf32>
    %1260 = math.exp %1259 : vector<1x32xf32>
    %cst_229 = arith.constant 1.000000e+00 : f32
    %1261 = vector.broadcast %cst_229 : f32 to vector<1x32xf32>
    %1262 = arith.addf %1261, %1260 : vector<1x32xf32>
    %1263 = arith.divf %1261, %1262 : vector<1x32xf32>
    %1264 = arith.mulf %1255, %1171 : vector<1x32xf32>
    %1265 = arith.mulf %1249, %1257 : vector<1x32xf32>
    %1266 = arith.addf %1264, %1265 : vector<1x32xf32>
    %1267 = math.tanh %1266 : vector<1x32xf32>
    %1268 = arith.mulf %1263, %1267 : vector<1x32xf32>
    %c2_230 = arith.constant 2 : index
    %c0_231 = arith.constant 0 : index
    %c0_232 = arith.constant 0 : index
    %1269 = vector.load %arg3[%c2_230, %c0_231, %c0_232] : memref<3x32x256xbf16, #tpu.memory_space<vmem>>, vector<1x32x256xbf16>
    %1270 = vector.shape_cast %1269 : vector<1x32x256xbf16> to vector<32x256xbf16>
    %1271 = arith.truncf %1268 : vector<1x32xf32> to vector<1x32xbf16>
    %cst_233 = arith.constant dense<0.000000e+00> : vector<1x256xf32>
    %1272 = tpu.matmul %1271, %1270, %cst_233 {dimension_numbers = #tpu.dot_dimension_numbers<[1], [0], [0], [1], [0, 0, 1, 1], [], []>} : vector<1x32xbf16>, vector<32x256xbf16>, vector<1x256xf32> -> vector<1x256xf32>
    %1273 = vector.extract_strided_slice %1272 {offsets = [0, 128], sizes = [1, 128], strides = [1, 1]} : vector<1x256xf32> to vector<1x128xf32>
    %1274 = vector.extract_strided_slice %1272 {offsets = [0, 0], sizes = [1, 128], strides = [1, 1]} : vector<1x256xf32> to vector<1x128xf32>
    %c2_234 = arith.constant 2 : index
    %c0_235 = arith.constant 0 : index
    %c0_236 = arith.constant 0 : index
    %1275 = vector.load %arg4[%c2_234, %c0_235, %c0_236] : memref<3x1x128xf32, #tpu.memory_space<vmem>>, vector<1x1x128xf32>
    %1276 = vector.shape_cast %1275 : vector<1x1x128xf32> to vector<1x128xf32>
    %1277 = arith.addf %1274, %1276 : vector<1x128xf32>
    %1278 = vector.extract_strided_slice %1277 {offsets = [0, 0], sizes = [1, 1], strides = [1, 1]} : vector<1x128xf32> to vector<1x1xf32>
    %1279 = vector.extract_strided_slice %1277 {offsets = [0, 1], sizes = [1, 1], strides = [1, 1]} : vector<1x128xf32> to vector<1x1xf32>
    %1280 = vector.extract_strided_slice %1277 {offsets = [0, 2], sizes = [1, 1], strides = [1, 1]} : vector<1x128xf32> to vector<1x1xf32>
    %1281 = arith.maximumf %1278, %1279 : vector<1x1xf32>
    %1282 = arith.maximumf %1281, %1280 : vector<1x1xf32>
    %1283 = arith.subf %1278, %1282 : vector<1x1xf32>
    %1284 = arith.subf %1279, %1282 : vector<1x1xf32>
    %1285 = arith.subf %1280, %1282 : vector<1x1xf32>
    %1286 = math.exp %1283 : vector<1x1xf32>
    %1287 = math.exp %1284 : vector<1x1xf32>
    %1288 = math.exp %1285 : vector<1x1xf32>
    %1289 = arith.addf %1286, %1287 : vector<1x1xf32>
    %1290 = arith.addf %1289, %1288 : vector<1x1xf32>
    %1291 = vector.broadcast %1242 : f32 to vector<1x1xf32>
    %1292 = arith.mulf %1290, %1291 : vector<1x1xf32>
    %1293 = arith.cmpf olt, %1286, %1292 : vector<1x1xf32>
    %1294 = arith.extui %1293 : vector<1x1xi1> to vector<1x1xi32>
    %1295 = arith.addf %1286, %1287 : vector<1x1xf32>
    %1296 = arith.cmpf olt, %1295, %1292 : vector<1x1xf32>
    %1297 = arith.extui %1296 : vector<1x1xi1> to vector<1x1xi32>
    %1298 = arith.addi %1294, %1297 : vector<1x1xi32>
    %1299 = math.log %1290 : vector<1x1xf32>
    %c1_i32_237 = arith.constant 1 : i32
    %1300 = vector.broadcast %c1_i32_237 : i32 to vector<1x1xi32>
    %1301 = arith.cmpi eq, %1298, %1300 : vector<1x1xi32>
    %1302 = arith.select %1301, %1284, %1285 : vector<1x1xi1>, vector<1x1xf32>
    %c0_i32_238 = arith.constant 0 : i32
    %1303 = vector.broadcast %c0_i32_238 : i32 to vector<1x1xi32>
    %1304 = arith.cmpi eq, %1298, %1303 : vector<1x1xi32>
    %1305 = arith.select %1304, %1283, %1302 : vector<1x1xi1>, vector<1x1xf32>
    %1306 = arith.subf %1305, %1299 : vector<1x1xf32>
    %1307 = arith.mulf %1286, %1283 : vector<1x1xf32>
    %1308 = arith.mulf %1287, %1284 : vector<1x1xf32>
    %1309 = arith.addf %1307, %1308 : vector<1x1xf32>
    %1310 = arith.mulf %1288, %1285 : vector<1x1xf32>
    %1311 = arith.addf %1309, %1310 : vector<1x1xf32>
    %1312 = tpu.reciprocal %1290 {approx = true} : vector<1x1xf32> -> vector<1x1xf32>
    %1313 = arith.mulf %1311, %1312 : vector<1x1xf32>
    %1314 = arith.subf %1299, %1313 : vector<1x1xf32>
    %c2_239 = arith.constant 2 : index
    %c0_240 = arith.constant 0 : index
    %c0_241 = arith.constant 0 : index
    %1315 = vector.load %arg2[%c2_239, %c0_240, %c0_241] : memref<3x3x128xf32, #tpu.memory_space<vmem>>, vector<1x3x128xf32>
    %1316 = vector.shape_cast %1315 : vector<1x3x128xf32> to vector<3x128xf32>
    %1317 = vector.extract_strided_slice %1316 {offsets = [2, 0], sizes = [1, 128], strides = [1, 1]} : vector<3x128xf32> to vector<1x128xf32>
    %c1_i32_242 = arith.constant 1 : i32
    %1318 = vector.broadcast %c1_i32_242 : i32 to vector<1x1xi32>
    %1319 = arith.cmpi eq, %1298, %1318 : vector<1x1xi32>
    %1320 = vector.extract_strided_slice %1316 {offsets = [1, 0], sizes = [1, 128], strides = [1, 1]} : vector<3x128xf32> to vector<1x128xf32>
    %1321 = vector.shape_cast %1319 : vector<1x1xi1> to vector<1x1xi1>
    %1322 = vector.broadcast %1321 : vector<1x1xi1> to vector<1x128xi1>
    %1323 = arith.select %1322, %1320, %1317 : vector<1x128xi1>, vector<1x128xf32>
    %c0_i32_243 = arith.constant 0 : i32
    %1324 = vector.broadcast %c0_i32_243 : i32 to vector<1x1xi32>
    %1325 = arith.cmpi eq, %1298, %1324 : vector<1x1xi32>
    %1326 = vector.extract_strided_slice %1316 {offsets = [0, 0], sizes = [1, 128], strides = [1, 1]} : vector<3x128xf32> to vector<1x128xf32>
    %1327 = vector.shape_cast %1325 : vector<1x1xi1> to vector<1x1xi1>
    %1328 = vector.broadcast %1327 : vector<1x1xi1> to vector<1x128xi1>
    %1329 = arith.select %1328, %1326, %1323 : vector<1x128xi1>, vector<1x128xf32>
    %c13_i32 = arith.constant 13 : i32
    %1330 = vector.broadcast %c13_i32 : i32 to vector<1x128xi32>
    %1331 = arith.cmpi eq, %0, %1330 : vector<1x128xi32>
    %1332 = vector.shape_cast %1298 : vector<1x1xi32> to vector<1x1xi32>
    %1333 = vector.broadcast %1332 : vector<1x1xi32> to vector<1x128xi32>
    %1334 = arith.select %1331, %1333, %1239 : vector<1x128xi1>, vector<1x128xi32>
    %1335 = arith.addf %1240, %1306 : vector<1x1xf32>
    %1336 = arith.addf %1241, %1314 : vector<1x1xf32>
    %c14 = arith.constant 14 : index
    %1337 = memref.load %arg0[%c14] : memref<18xf32, #tpu.memory_space<smem>>
    %1338 = arith.addf %1329, %1273 : vector<1x128xf32>
    %1339 = vector.extract_strided_slice %1338 {offsets = [0, 0], sizes = [1, 32], strides = [1, 1]} : vector<1x128xf32> to vector<1x32xf32>
    %1340 = arith.negf %1339 : vector<1x32xf32>
    %1341 = math.exp %1340 : vector<1x32xf32>
    %cst_244 = arith.constant 1.000000e+00 : f32
    %1342 = vector.broadcast %cst_244 : f32 to vector<1x32xf32>
    %1343 = arith.addf %1342, %1341 : vector<1x32xf32>
    %1344 = arith.divf %1342, %1343 : vector<1x32xf32>
    %1345 = vector.extract_strided_slice %1338 {offsets = [0, 32], sizes = [1, 32], strides = [1, 1]} : vector<1x128xf32> to vector<1x32xf32>
    %1346 = arith.negf %1345 : vector<1x32xf32>
    %1347 = math.exp %1346 : vector<1x32xf32>
    %cst_245 = arith.constant 1.000000e+00 : f32
    %1348 = vector.broadcast %cst_245 : f32 to vector<1x32xf32>
    %1349 = arith.addf %1348, %1347 : vector<1x32xf32>
    %1350 = arith.divf %1348, %1349 : vector<1x32xf32>
    %1351 = vector.extract_strided_slice %1338 {offsets = [0, 64], sizes = [1, 32], strides = [1, 1]} : vector<1x128xf32> to vector<1x32xf32>
    %1352 = math.tanh %1351 : vector<1x32xf32>
    %1353 = vector.extract_strided_slice %1338 {offsets = [0, 96], sizes = [1, 32], strides = [1, 1]} : vector<1x128xf32> to vector<1x32xf32>
    %1354 = arith.negf %1353 : vector<1x32xf32>
    %1355 = math.exp %1354 : vector<1x32xf32>
    %cst_246 = arith.constant 1.000000e+00 : f32
    %1356 = vector.broadcast %cst_246 : f32 to vector<1x32xf32>
    %1357 = arith.addf %1356, %1355 : vector<1x32xf32>
    %1358 = arith.divf %1356, %1357 : vector<1x32xf32>
    %1359 = arith.mulf %1350, %1266 : vector<1x32xf32>
    %1360 = arith.mulf %1344, %1352 : vector<1x32xf32>
    %1361 = arith.addf %1359, %1360 : vector<1x32xf32>
    %1362 = math.tanh %1361 : vector<1x32xf32>
    %1363 = arith.mulf %1358, %1362 : vector<1x32xf32>
    %c1_247 = arith.constant 1 : index
    %c0_248 = arith.constant 0 : index
    %c0_249 = arith.constant 0 : index
    %1364 = vector.load %arg3[%c1_247, %c0_248, %c0_249] : memref<3x32x256xbf16, #tpu.memory_space<vmem>>, vector<1x32x256xbf16>
    %1365 = vector.shape_cast %1364 : vector<1x32x256xbf16> to vector<32x256xbf16>
    %1366 = arith.truncf %1363 : vector<1x32xf32> to vector<1x32xbf16>
    %cst_250 = arith.constant dense<0.000000e+00> : vector<1x256xf32>
    %1367 = tpu.matmul %1366, %1365, %cst_250 {dimension_numbers = #tpu.dot_dimension_numbers<[1], [0], [0], [1], [0, 0, 1, 1], [], []>} : vector<1x32xbf16>, vector<32x256xbf16>, vector<1x256xf32> -> vector<1x256xf32>
    %1368 = vector.extract_strided_slice %1367 {offsets = [0, 128], sizes = [1, 128], strides = [1, 1]} : vector<1x256xf32> to vector<1x128xf32>
    %1369 = vector.extract_strided_slice %1367 {offsets = [0, 0], sizes = [1, 128], strides = [1, 1]} : vector<1x256xf32> to vector<1x128xf32>
    %c1_251 = arith.constant 1 : index
    %c0_252 = arith.constant 0 : index
    %c0_253 = arith.constant 0 : index
    %1370 = vector.load %arg4[%c1_251, %c0_252, %c0_253] : memref<3x1x128xf32, #tpu.memory_space<vmem>>, vector<1x1x128xf32>
    %1371 = vector.shape_cast %1370 : vector<1x1x128xf32> to vector<1x128xf32>
    %1372 = arith.addf %1369, %1371 : vector<1x128xf32>
    %1373 = vector.extract_strided_slice %1372 {offsets = [0, 0], sizes = [1, 1], strides = [1, 1]} : vector<1x128xf32> to vector<1x1xf32>
    %1374 = vector.extract_strided_slice %1372 {offsets = [0, 1], sizes = [1, 1], strides = [1, 1]} : vector<1x128xf32> to vector<1x1xf32>
    %1375 = vector.extract_strided_slice %1372 {offsets = [0, 2], sizes = [1, 1], strides = [1, 1]} : vector<1x128xf32> to vector<1x1xf32>
    %1376 = arith.maximumf %1373, %1374 : vector<1x1xf32>
    %1377 = arith.maximumf %1376, %1375 : vector<1x1xf32>
    %1378 = arith.subf %1373, %1377 : vector<1x1xf32>
    %1379 = arith.subf %1374, %1377 : vector<1x1xf32>
    %1380 = arith.subf %1375, %1377 : vector<1x1xf32>
    %1381 = math.exp %1378 : vector<1x1xf32>
    %1382 = math.exp %1379 : vector<1x1xf32>
    %1383 = math.exp %1380 : vector<1x1xf32>
    %1384 = arith.addf %1381, %1382 : vector<1x1xf32>
    %1385 = arith.addf %1384, %1383 : vector<1x1xf32>
    %1386 = vector.broadcast %1337 : f32 to vector<1x1xf32>
    %1387 = arith.mulf %1385, %1386 : vector<1x1xf32>
    %1388 = arith.cmpf olt, %1381, %1387 : vector<1x1xf32>
    %1389 = arith.extui %1388 : vector<1x1xi1> to vector<1x1xi32>
    %1390 = arith.addf %1381, %1382 : vector<1x1xf32>
    %1391 = arith.cmpf olt, %1390, %1387 : vector<1x1xf32>
    %1392 = arith.extui %1391 : vector<1x1xi1> to vector<1x1xi32>
    %1393 = arith.addi %1389, %1392 : vector<1x1xi32>
    %1394 = math.log %1385 : vector<1x1xf32>
    %c1_i32_254 = arith.constant 1 : i32
    %1395 = vector.broadcast %c1_i32_254 : i32 to vector<1x1xi32>
    %1396 = arith.cmpi eq, %1393, %1395 : vector<1x1xi32>
    %1397 = arith.select %1396, %1379, %1380 : vector<1x1xi1>, vector<1x1xf32>
    %c0_i32_255 = arith.constant 0 : i32
    %1398 = vector.broadcast %c0_i32_255 : i32 to vector<1x1xi32>
    %1399 = arith.cmpi eq, %1393, %1398 : vector<1x1xi32>
    %1400 = arith.select %1399, %1378, %1397 : vector<1x1xi1>, vector<1x1xf32>
    %1401 = arith.subf %1400, %1394 : vector<1x1xf32>
    %1402 = arith.mulf %1381, %1378 : vector<1x1xf32>
    %1403 = arith.mulf %1382, %1379 : vector<1x1xf32>
    %1404 = arith.addf %1402, %1403 : vector<1x1xf32>
    %1405 = arith.mulf %1383, %1380 : vector<1x1xf32>
    %1406 = arith.addf %1404, %1405 : vector<1x1xf32>
    %1407 = tpu.reciprocal %1385 {approx = true} : vector<1x1xf32> -> vector<1x1xf32>
    %1408 = arith.mulf %1406, %1407 : vector<1x1xf32>
    %1409 = arith.subf %1394, %1408 : vector<1x1xf32>
    %c1_256 = arith.constant 1 : index
    %c0_257 = arith.constant 0 : index
    %c0_258 = arith.constant 0 : index
    %1410 = vector.load %arg2[%c1_256, %c0_257, %c0_258] : memref<3x3x128xf32, #tpu.memory_space<vmem>>, vector<1x3x128xf32>
    %1411 = vector.shape_cast %1410 : vector<1x3x128xf32> to vector<3x128xf32>
    %1412 = vector.extract_strided_slice %1411 {offsets = [2, 0], sizes = [1, 128], strides = [1, 1]} : vector<3x128xf32> to vector<1x128xf32>
    %c1_i32_259 = arith.constant 1 : i32
    %1413 = vector.broadcast %c1_i32_259 : i32 to vector<1x1xi32>
    %1414 = arith.cmpi eq, %1393, %1413 : vector<1x1xi32>
    %1415 = vector.extract_strided_slice %1411 {offsets = [1, 0], sizes = [1, 128], strides = [1, 1]} : vector<3x128xf32> to vector<1x128xf32>
    %1416 = vector.shape_cast %1414 : vector<1x1xi1> to vector<1x1xi1>
    %1417 = vector.broadcast %1416 : vector<1x1xi1> to vector<1x128xi1>
    %1418 = arith.select %1417, %1415, %1412 : vector<1x128xi1>, vector<1x128xf32>
    %c0_i32_260 = arith.constant 0 : i32
    %1419 = vector.broadcast %c0_i32_260 : i32 to vector<1x1xi32>
    %1420 = arith.cmpi eq, %1393, %1419 : vector<1x1xi32>
    %1421 = vector.extract_strided_slice %1411 {offsets = [0, 0], sizes = [1, 128], strides = [1, 1]} : vector<3x128xf32> to vector<1x128xf32>
    %1422 = vector.shape_cast %1420 : vector<1x1xi1> to vector<1x1xi1>
    %1423 = vector.broadcast %1422 : vector<1x1xi1> to vector<1x128xi1>
    %1424 = arith.select %1423, %1421, %1418 : vector<1x128xi1>, vector<1x128xf32>
    %c14_i32 = arith.constant 14 : i32
    %1425 = vector.broadcast %c14_i32 : i32 to vector<1x128xi32>
    %1426 = arith.cmpi eq, %0, %1425 : vector<1x128xi32>
    %1427 = vector.shape_cast %1393 : vector<1x1xi32> to vector<1x1xi32>
    %1428 = vector.broadcast %1427 : vector<1x1xi32> to vector<1x128xi32>
    %1429 = arith.select %1426, %1428, %1334 : vector<1x128xi1>, vector<1x128xi32>
    %1430 = arith.addf %1335, %1401 : vector<1x1xf32>
    %1431 = arith.addf %1336, %1409 : vector<1x1xf32>
    %c15 = arith.constant 15 : index
    %1432 = memref.load %arg0[%c15] : memref<18xf32, #tpu.memory_space<smem>>
    %1433 = arith.addf %1424, %1368 : vector<1x128xf32>
    %1434 = vector.extract_strided_slice %1433 {offsets = [0, 0], sizes = [1, 32], strides = [1, 1]} : vector<1x128xf32> to vector<1x32xf32>
    %1435 = arith.negf %1434 : vector<1x32xf32>
    %1436 = math.exp %1435 : vector<1x32xf32>
    %cst_261 = arith.constant 1.000000e+00 : f32
    %1437 = vector.broadcast %cst_261 : f32 to vector<1x32xf32>
    %1438 = arith.addf %1437, %1436 : vector<1x32xf32>
    %1439 = arith.divf %1437, %1438 : vector<1x32xf32>
    %1440 = vector.extract_strided_slice %1433 {offsets = [0, 32], sizes = [1, 32], strides = [1, 1]} : vector<1x128xf32> to vector<1x32xf32>
    %1441 = arith.negf %1440 : vector<1x32xf32>
    %1442 = math.exp %1441 : vector<1x32xf32>
    %cst_262 = arith.constant 1.000000e+00 : f32
    %1443 = vector.broadcast %cst_262 : f32 to vector<1x32xf32>
    %1444 = arith.addf %1443, %1442 : vector<1x32xf32>
    %1445 = arith.divf %1443, %1444 : vector<1x32xf32>
    %1446 = vector.extract_strided_slice %1433 {offsets = [0, 64], sizes = [1, 32], strides = [1, 1]} : vector<1x128xf32> to vector<1x32xf32>
    %1447 = math.tanh %1446 : vector<1x32xf32>
    %1448 = vector.extract_strided_slice %1433 {offsets = [0, 96], sizes = [1, 32], strides = [1, 1]} : vector<1x128xf32> to vector<1x32xf32>
    %1449 = arith.negf %1448 : vector<1x32xf32>
    %1450 = math.exp %1449 : vector<1x32xf32>
    %cst_263 = arith.constant 1.000000e+00 : f32
    %1451 = vector.broadcast %cst_263 : f32 to vector<1x32xf32>
    %1452 = arith.addf %1451, %1450 : vector<1x32xf32>
    %1453 = arith.divf %1451, %1452 : vector<1x32xf32>
    %1454 = arith.mulf %1445, %1361 : vector<1x32xf32>
    %1455 = arith.mulf %1439, %1447 : vector<1x32xf32>
    %1456 = arith.addf %1454, %1455 : vector<1x32xf32>
    %1457 = math.tanh %1456 : vector<1x32xf32>
    %1458 = arith.mulf %1453, %1457 : vector<1x32xf32>
    %c2_264 = arith.constant 2 : index
    %c0_265 = arith.constant 0 : index
    %c0_266 = arith.constant 0 : index
    %1459 = vector.load %arg3[%c2_264, %c0_265, %c0_266] : memref<3x32x256xbf16, #tpu.memory_space<vmem>>, vector<1x32x256xbf16>
    %1460 = vector.shape_cast %1459 : vector<1x32x256xbf16> to vector<32x256xbf16>
    %1461 = arith.truncf %1458 : vector<1x32xf32> to vector<1x32xbf16>
    %cst_267 = arith.constant dense<0.000000e+00> : vector<1x256xf32>
    %1462 = tpu.matmul %1461, %1460, %cst_267 {dimension_numbers = #tpu.dot_dimension_numbers<[1], [0], [0], [1], [0, 0, 1, 1], [], []>} : vector<1x32xbf16>, vector<32x256xbf16>, vector<1x256xf32> -> vector<1x256xf32>
    %1463 = vector.extract_strided_slice %1462 {offsets = [0, 128], sizes = [1, 128], strides = [1, 1]} : vector<1x256xf32> to vector<1x128xf32>
    %1464 = vector.extract_strided_slice %1462 {offsets = [0, 0], sizes = [1, 128], strides = [1, 1]} : vector<1x256xf32> to vector<1x128xf32>
    %c2_268 = arith.constant 2 : index
    %c0_269 = arith.constant 0 : index
    %c0_270 = arith.constant 0 : index
    %1465 = vector.load %arg4[%c2_268, %c0_269, %c0_270] : memref<3x1x128xf32, #tpu.memory_space<vmem>>, vector<1x1x128xf32>
    %1466 = vector.shape_cast %1465 : vector<1x1x128xf32> to vector<1x128xf32>
    %1467 = arith.addf %1464, %1466 : vector<1x128xf32>
    %1468 = vector.extract_strided_slice %1467 {offsets = [0, 0], sizes = [1, 1], strides = [1, 1]} : vector<1x128xf32> to vector<1x1xf32>
    %1469 = vector.extract_strided_slice %1467 {offsets = [0, 1], sizes = [1, 1], strides = [1, 1]} : vector<1x128xf32> to vector<1x1xf32>
    %1470 = vector.extract_strided_slice %1467 {offsets = [0, 2], sizes = [1, 1], strides = [1, 1]} : vector<1x128xf32> to vector<1x1xf32>
    %1471 = arith.maximumf %1468, %1469 : vector<1x1xf32>
    %1472 = arith.maximumf %1471, %1470 : vector<1x1xf32>
    %1473 = arith.subf %1468, %1472 : vector<1x1xf32>
    %1474 = arith.subf %1469, %1472 : vector<1x1xf32>
    %1475 = arith.subf %1470, %1472 : vector<1x1xf32>
    %1476 = math.exp %1473 : vector<1x1xf32>
    %1477 = math.exp %1474 : vector<1x1xf32>
    %1478 = math.exp %1475 : vector<1x1xf32>
    %1479 = arith.addf %1476, %1477 : vector<1x1xf32>
    %1480 = arith.addf %1479, %1478 : vector<1x1xf32>
    %1481 = vector.broadcast %1432 : f32 to vector<1x1xf32>
    %1482 = arith.mulf %1480, %1481 : vector<1x1xf32>
    %1483 = arith.cmpf olt, %1476, %1482 : vector<1x1xf32>
    %1484 = arith.extui %1483 : vector<1x1xi1> to vector<1x1xi32>
    %1485 = arith.addf %1476, %1477 : vector<1x1xf32>
    %1486 = arith.cmpf olt, %1485, %1482 : vector<1x1xf32>
    %1487 = arith.extui %1486 : vector<1x1xi1> to vector<1x1xi32>
    %1488 = arith.addi %1484, %1487 : vector<1x1xi32>
    %1489 = math.log %1480 : vector<1x1xf32>
    %c1_i32_271 = arith.constant 1 : i32
    %1490 = vector.broadcast %c1_i32_271 : i32 to vector<1x1xi32>
    %1491 = arith.cmpi eq, %1488, %1490 : vector<1x1xi32>
    %1492 = arith.select %1491, %1474, %1475 : vector<1x1xi1>, vector<1x1xf32>
    %c0_i32_272 = arith.constant 0 : i32
    %1493 = vector.broadcast %c0_i32_272 : i32 to vector<1x1xi32>
    %1494 = arith.cmpi eq, %1488, %1493 : vector<1x1xi32>
    %1495 = arith.select %1494, %1473, %1492 : vector<1x1xi1>, vector<1x1xf32>
    %1496 = arith.subf %1495, %1489 : vector<1x1xf32>
    %1497 = arith.mulf %1476, %1473 : vector<1x1xf32>
    %1498 = arith.mulf %1477, %1474 : vector<1x1xf32>
    %1499 = arith.addf %1497, %1498 : vector<1x1xf32>
    %1500 = arith.mulf %1478, %1475 : vector<1x1xf32>
    %1501 = arith.addf %1499, %1500 : vector<1x1xf32>
    %1502 = tpu.reciprocal %1480 {approx = true} : vector<1x1xf32> -> vector<1x1xf32>
    %1503 = arith.mulf %1501, %1502 : vector<1x1xf32>
    %1504 = arith.subf %1489, %1503 : vector<1x1xf32>
    %c2_273 = arith.constant 2 : index
    %c0_274 = arith.constant 0 : index
    %c0_275 = arith.constant 0 : index
    %1505 = vector.load %arg2[%c2_273, %c0_274, %c0_275] : memref<3x3x128xf32, #tpu.memory_space<vmem>>, vector<1x3x128xf32>
    %1506 = vector.shape_cast %1505 : vector<1x3x128xf32> to vector<3x128xf32>
    %1507 = vector.extract_strided_slice %1506 {offsets = [2, 0], sizes = [1, 128], strides = [1, 1]} : vector<3x128xf32> to vector<1x128xf32>
    %c1_i32_276 = arith.constant 1 : i32
    %1508 = vector.broadcast %c1_i32_276 : i32 to vector<1x1xi32>
    %1509 = arith.cmpi eq, %1488, %1508 : vector<1x1xi32>
    %1510 = vector.extract_strided_slice %1506 {offsets = [1, 0], sizes = [1, 128], strides = [1, 1]} : vector<3x128xf32> to vector<1x128xf32>
    %1511 = vector.shape_cast %1509 : vector<1x1xi1> to vector<1x1xi1>
    %1512 = vector.broadcast %1511 : vector<1x1xi1> to vector<1x128xi1>
    %1513 = arith.select %1512, %1510, %1507 : vector<1x128xi1>, vector<1x128xf32>
    %c0_i32_277 = arith.constant 0 : i32
    %1514 = vector.broadcast %c0_i32_277 : i32 to vector<1x1xi32>
    %1515 = arith.cmpi eq, %1488, %1514 : vector<1x1xi32>
    %1516 = vector.extract_strided_slice %1506 {offsets = [0, 0], sizes = [1, 128], strides = [1, 1]} : vector<3x128xf32> to vector<1x128xf32>
    %1517 = vector.shape_cast %1515 : vector<1x1xi1> to vector<1x1xi1>
    %1518 = vector.broadcast %1517 : vector<1x1xi1> to vector<1x128xi1>
    %1519 = arith.select %1518, %1516, %1513 : vector<1x128xi1>, vector<1x128xf32>
    %c15_i32 = arith.constant 15 : i32
    %1520 = vector.broadcast %c15_i32 : i32 to vector<1x128xi32>
    %1521 = arith.cmpi eq, %0, %1520 : vector<1x128xi32>
    %1522 = vector.shape_cast %1488 : vector<1x1xi32> to vector<1x1xi32>
    %1523 = vector.broadcast %1522 : vector<1x1xi32> to vector<1x128xi32>
    %1524 = arith.select %1521, %1523, %1429 : vector<1x128xi1>, vector<1x128xi32>
    %1525 = arith.addf %1430, %1496 : vector<1x1xf32>
    %1526 = arith.addf %1431, %1504 : vector<1x1xf32>
    %c16 = arith.constant 16 : index
    %1527 = memref.load %arg0[%c16] : memref<18xf32, #tpu.memory_space<smem>>
    %1528 = arith.addf %1519, %1463 : vector<1x128xf32>
    %1529 = vector.extract_strided_slice %1528 {offsets = [0, 0], sizes = [1, 32], strides = [1, 1]} : vector<1x128xf32> to vector<1x32xf32>
    %1530 = arith.negf %1529 : vector<1x32xf32>
    %1531 = math.exp %1530 : vector<1x32xf32>
    %cst_278 = arith.constant 1.000000e+00 : f32
    %1532 = vector.broadcast %cst_278 : f32 to vector<1x32xf32>
    %1533 = arith.addf %1532, %1531 : vector<1x32xf32>
    %1534 = arith.divf %1532, %1533 : vector<1x32xf32>
    %1535 = vector.extract_strided_slice %1528 {offsets = [0, 32], sizes = [1, 32], strides = [1, 1]} : vector<1x128xf32> to vector<1x32xf32>
    %1536 = arith.negf %1535 : vector<1x32xf32>
    %1537 = math.exp %1536 : vector<1x32xf32>
    %cst_279 = arith.constant 1.000000e+00 : f32
    %1538 = vector.broadcast %cst_279 : f32 to vector<1x32xf32>
    %1539 = arith.addf %1538, %1537 : vector<1x32xf32>
    %1540 = arith.divf %1538, %1539 : vector<1x32xf32>
    %1541 = vector.extract_strided_slice %1528 {offsets = [0, 64], sizes = [1, 32], strides = [1, 1]} : vector<1x128xf32> to vector<1x32xf32>
    %1542 = math.tanh %1541 : vector<1x32xf32>
    %1543 = vector.extract_strided_slice %1528 {offsets = [0, 96], sizes = [1, 32], strides = [1, 1]} : vector<1x128xf32> to vector<1x32xf32>
    %1544 = arith.negf %1543 : vector<1x32xf32>
    %1545 = math.exp %1544 : vector<1x32xf32>
    %cst_280 = arith.constant 1.000000e+00 : f32
    %1546 = vector.broadcast %cst_280 : f32 to vector<1x32xf32>
    %1547 = arith.addf %1546, %1545 : vector<1x32xf32>
    %1548 = arith.divf %1546, %1547 : vector<1x32xf32>
    %1549 = arith.mulf %1540, %1456 : vector<1x32xf32>
    %1550 = arith.mulf %1534, %1542 : vector<1x32xf32>
    %1551 = arith.addf %1549, %1550 : vector<1x32xf32>
    %1552 = math.tanh %1551 : vector<1x32xf32>
    %1553 = arith.mulf %1548, %1552 : vector<1x32xf32>
    %c1_281 = arith.constant 1 : index
    %c0_282 = arith.constant 0 : index
    %c0_283 = arith.constant 0 : index
    %1554 = vector.load %arg3[%c1_281, %c0_282, %c0_283] : memref<3x32x256xbf16, #tpu.memory_space<vmem>>, vector<1x32x256xbf16>
    %1555 = vector.shape_cast %1554 : vector<1x32x256xbf16> to vector<32x256xbf16>
    %1556 = arith.truncf %1553 : vector<1x32xf32> to vector<1x32xbf16>
    %cst_284 = arith.constant dense<0.000000e+00> : vector<1x256xf32>
    %1557 = tpu.matmul %1556, %1555, %cst_284 {dimension_numbers = #tpu.dot_dimension_numbers<[1], [0], [0], [1], [0, 0, 1, 1], [], []>} : vector<1x32xbf16>, vector<32x256xbf16>, vector<1x256xf32> -> vector<1x256xf32>
    %1558 = vector.extract_strided_slice %1557 {offsets = [0, 128], sizes = [1, 128], strides = [1, 1]} : vector<1x256xf32> to vector<1x128xf32>
    %1559 = vector.extract_strided_slice %1557 {offsets = [0, 0], sizes = [1, 128], strides = [1, 1]} : vector<1x256xf32> to vector<1x128xf32>
    %c1_285 = arith.constant 1 : index
    %c0_286 = arith.constant 0 : index
    %c0_287 = arith.constant 0 : index
    %1560 = vector.load %arg4[%c1_285, %c0_286, %c0_287] : memref<3x1x128xf32, #tpu.memory_space<vmem>>, vector<1x1x128xf32>
    %1561 = vector.shape_cast %1560 : vector<1x1x128xf32> to vector<1x128xf32>
    %1562 = arith.addf %1559, %1561 : vector<1x128xf32>
    %1563 = vector.extract_strided_slice %1562 {offsets = [0, 0], sizes = [1, 1], strides = [1, 1]} : vector<1x128xf32> to vector<1x1xf32>
    %1564 = vector.extract_strided_slice %1562 {offsets = [0, 1], sizes = [1, 1], strides = [1, 1]} : vector<1x128xf32> to vector<1x1xf32>
    %1565 = vector.extract_strided_slice %1562 {offsets = [0, 2], sizes = [1, 1], strides = [1, 1]} : vector<1x128xf32> to vector<1x1xf32>
    %1566 = arith.maximumf %1563, %1564 : vector<1x1xf32>
    %1567 = arith.maximumf %1566, %1565 : vector<1x1xf32>
    %1568 = arith.subf %1563, %1567 : vector<1x1xf32>
    %1569 = arith.subf %1564, %1567 : vector<1x1xf32>
    %1570 = arith.subf %1565, %1567 : vector<1x1xf32>
    %1571 = math.exp %1568 : vector<1x1xf32>
    %1572 = math.exp %1569 : vector<1x1xf32>
    %1573 = math.exp %1570 : vector<1x1xf32>
    %1574 = arith.addf %1571, %1572 : vector<1x1xf32>
    %1575 = arith.addf %1574, %1573 : vector<1x1xf32>
    %1576 = vector.broadcast %1527 : f32 to vector<1x1xf32>
    %1577 = arith.mulf %1575, %1576 : vector<1x1xf32>
    %1578 = arith.cmpf olt, %1571, %1577 : vector<1x1xf32>
    %1579 = arith.extui %1578 : vector<1x1xi1> to vector<1x1xi32>
    %1580 = arith.addf %1571, %1572 : vector<1x1xf32>
    %1581 = arith.cmpf olt, %1580, %1577 : vector<1x1xf32>
    %1582 = arith.extui %1581 : vector<1x1xi1> to vector<1x1xi32>
    %1583 = arith.addi %1579, %1582 : vector<1x1xi32>
    %1584 = math.log %1575 : vector<1x1xf32>
    %c1_i32_288 = arith.constant 1 : i32
    %1585 = vector.broadcast %c1_i32_288 : i32 to vector<1x1xi32>
    %1586 = arith.cmpi eq, %1583, %1585 : vector<1x1xi32>
    %1587 = arith.select %1586, %1569, %1570 : vector<1x1xi1>, vector<1x1xf32>
    %c0_i32_289 = arith.constant 0 : i32
    %1588 = vector.broadcast %c0_i32_289 : i32 to vector<1x1xi32>
    %1589 = arith.cmpi eq, %1583, %1588 : vector<1x1xi32>
    %1590 = arith.select %1589, %1568, %1587 : vector<1x1xi1>, vector<1x1xf32>
    %1591 = arith.subf %1590, %1584 : vector<1x1xf32>
    %1592 = arith.mulf %1571, %1568 : vector<1x1xf32>
    %1593 = arith.mulf %1572, %1569 : vector<1x1xf32>
    %1594 = arith.addf %1592, %1593 : vector<1x1xf32>
    %1595 = arith.mulf %1573, %1570 : vector<1x1xf32>
    %1596 = arith.addf %1594, %1595 : vector<1x1xf32>
    %1597 = tpu.reciprocal %1575 {approx = true} : vector<1x1xf32> -> vector<1x1xf32>
    %1598 = arith.mulf %1596, %1597 : vector<1x1xf32>
    %1599 = arith.subf %1584, %1598 : vector<1x1xf32>
    %c1_290 = arith.constant 1 : index
    %c0_291 = arith.constant 0 : index
    %c0_292 = arith.constant 0 : index
    %1600 = vector.load %arg2[%c1_290, %c0_291, %c0_292] : memref<3x3x128xf32, #tpu.memory_space<vmem>>, vector<1x3x128xf32>
    %1601 = vector.shape_cast %1600 : vector<1x3x128xf32> to vector<3x128xf32>
    %1602 = vector.extract_strided_slice %1601 {offsets = [2, 0], sizes = [1, 128], strides = [1, 1]} : vector<3x128xf32> to vector<1x128xf32>
    %c1_i32_293 = arith.constant 1 : i32
    %1603 = vector.broadcast %c1_i32_293 : i32 to vector<1x1xi32>
    %1604 = arith.cmpi eq, %1583, %1603 : vector<1x1xi32>
    %1605 = vector.extract_strided_slice %1601 {offsets = [1, 0], sizes = [1, 128], strides = [1, 1]} : vector<3x128xf32> to vector<1x128xf32>
    %1606 = vector.shape_cast %1604 : vector<1x1xi1> to vector<1x1xi1>
    %1607 = vector.broadcast %1606 : vector<1x1xi1> to vector<1x128xi1>
    %1608 = arith.select %1607, %1605, %1602 : vector<1x128xi1>, vector<1x128xf32>
    %c0_i32_294 = arith.constant 0 : i32
    %1609 = vector.broadcast %c0_i32_294 : i32 to vector<1x1xi32>
    %1610 = arith.cmpi eq, %1583, %1609 : vector<1x1xi32>
    %1611 = vector.extract_strided_slice %1601 {offsets = [0, 0], sizes = [1, 128], strides = [1, 1]} : vector<3x128xf32> to vector<1x128xf32>
    %1612 = vector.shape_cast %1610 : vector<1x1xi1> to vector<1x1xi1>
    %1613 = vector.broadcast %1612 : vector<1x1xi1> to vector<1x128xi1>
    %1614 = arith.select %1613, %1611, %1608 : vector<1x128xi1>, vector<1x128xf32>
    %c16_i32 = arith.constant 16 : i32
    %1615 = vector.broadcast %c16_i32 : i32 to vector<1x128xi32>
    %1616 = arith.cmpi eq, %0, %1615 : vector<1x128xi32>
    %1617 = vector.shape_cast %1583 : vector<1x1xi32> to vector<1x1xi32>
    %1618 = vector.broadcast %1617 : vector<1x1xi32> to vector<1x128xi32>
    %1619 = arith.select %1616, %1618, %1524 : vector<1x128xi1>, vector<1x128xi32>
    %1620 = arith.addf %1525, %1591 : vector<1x1xf32>
    %1621 = arith.addf %1526, %1599 : vector<1x1xf32>
    %c17 = arith.constant 17 : index
    %1622 = memref.load %arg0[%c17] : memref<18xf32, #tpu.memory_space<smem>>
    %1623 = arith.addf %1614, %1558 : vector<1x128xf32>
    %1624 = vector.extract_strided_slice %1623 {offsets = [0, 0], sizes = [1, 32], strides = [1, 1]} : vector<1x128xf32> to vector<1x32xf32>
    %1625 = arith.negf %1624 : vector<1x32xf32>
    %1626 = math.exp %1625 : vector<1x32xf32>
    %cst_295 = arith.constant 1.000000e+00 : f32
    %1627 = vector.broadcast %cst_295 : f32 to vector<1x32xf32>
    %1628 = arith.addf %1627, %1626 : vector<1x32xf32>
    %1629 = arith.divf %1627, %1628 : vector<1x32xf32>
    %1630 = vector.extract_strided_slice %1623 {offsets = [0, 32], sizes = [1, 32], strides = [1, 1]} : vector<1x128xf32> to vector<1x32xf32>
    %1631 = arith.negf %1630 : vector<1x32xf32>
    %1632 = math.exp %1631 : vector<1x32xf32>
    %cst_296 = arith.constant 1.000000e+00 : f32
    %1633 = vector.broadcast %cst_296 : f32 to vector<1x32xf32>
    %1634 = arith.addf %1633, %1632 : vector<1x32xf32>
    %1635 = arith.divf %1633, %1634 : vector<1x32xf32>
    %1636 = vector.extract_strided_slice %1623 {offsets = [0, 64], sizes = [1, 32], strides = [1, 1]} : vector<1x128xf32> to vector<1x32xf32>
    %1637 = math.tanh %1636 : vector<1x32xf32>
    %1638 = vector.extract_strided_slice %1623 {offsets = [0, 96], sizes = [1, 32], strides = [1, 1]} : vector<1x128xf32> to vector<1x32xf32>
    %1639 = arith.negf %1638 : vector<1x32xf32>
    %1640 = math.exp %1639 : vector<1x32xf32>
    %cst_297 = arith.constant 1.000000e+00 : f32
    %1641 = vector.broadcast %cst_297 : f32 to vector<1x32xf32>
    %1642 = arith.addf %1641, %1640 : vector<1x32xf32>
    %1643 = arith.divf %1641, %1642 : vector<1x32xf32>
    %1644 = arith.mulf %1635, %1551 : vector<1x32xf32>
    %1645 = arith.mulf %1629, %1637 : vector<1x32xf32>
    %1646 = arith.addf %1644, %1645 : vector<1x32xf32>
    %1647 = math.tanh %1646 : vector<1x32xf32>
    %1648 = arith.mulf %1643, %1647 : vector<1x32xf32>
    %c2_298 = arith.constant 2 : index
    %c0_299 = arith.constant 0 : index
    %c0_300 = arith.constant 0 : index
    %1649 = vector.load %arg3[%c2_298, %c0_299, %c0_300] : memref<3x32x256xbf16, #tpu.memory_space<vmem>>, vector<1x32x256xbf16>
    %1650 = vector.shape_cast %1649 : vector<1x32x256xbf16> to vector<32x256xbf16>
    %1651 = arith.truncf %1648 : vector<1x32xf32> to vector<1x32xbf16>
    %cst_301 = arith.constant dense<0.000000e+00> : vector<1x256xf32>
    %1652 = tpu.matmul %1651, %1650, %cst_301 {dimension_numbers = #tpu.dot_dimension_numbers<[1], [0], [0], [1], [0, 0, 1, 1], [], []>} : vector<1x32xbf16>, vector<32x256xbf16>, vector<1x256xf32> -> vector<1x256xf32>
    %1653 = vector.extract_strided_slice %1652 {offsets = [0, 0], sizes = [1, 128], strides = [1, 1]} : vector<1x256xf32> to vector<1x128xf32>
    %c2_302 = arith.constant 2 : index
    %c0_303 = arith.constant 0 : index
    %c0_304 = arith.constant 0 : index
    %1654 = vector.load %arg4[%c2_302, %c0_303, %c0_304] : memref<3x1x128xf32, #tpu.memory_space<vmem>>, vector<1x1x128xf32>
    %1655 = vector.shape_cast %1654 : vector<1x1x128xf32> to vector<1x128xf32>
    %1656 = arith.addf %1653, %1655 : vector<1x128xf32>
    %1657 = vector.extract_strided_slice %1656 {offsets = [0, 0], sizes = [1, 1], strides = [1, 1]} : vector<1x128xf32> to vector<1x1xf32>
    %1658 = vector.extract_strided_slice %1656 {offsets = [0, 1], sizes = [1, 1], strides = [1, 1]} : vector<1x128xf32> to vector<1x1xf32>
    %1659 = vector.extract_strided_slice %1656 {offsets = [0, 2], sizes = [1, 1], strides = [1, 1]} : vector<1x128xf32> to vector<1x1xf32>
    %1660 = arith.maximumf %1657, %1658 : vector<1x1xf32>
    %1661 = arith.maximumf %1660, %1659 : vector<1x1xf32>
    %1662 = arith.subf %1657, %1661 : vector<1x1xf32>
    %1663 = arith.subf %1658, %1661 : vector<1x1xf32>
    %1664 = arith.subf %1659, %1661 : vector<1x1xf32>
    %1665 = math.exp %1662 : vector<1x1xf32>
    %1666 = math.exp %1663 : vector<1x1xf32>
    %1667 = math.exp %1664 : vector<1x1xf32>
    %1668 = arith.addf %1665, %1666 : vector<1x1xf32>
    %1669 = arith.addf %1668, %1667 : vector<1x1xf32>
    %1670 = vector.broadcast %1622 : f32 to vector<1x1xf32>
    %1671 = arith.mulf %1669, %1670 : vector<1x1xf32>
    %1672 = arith.cmpf olt, %1665, %1671 : vector<1x1xf32>
    %1673 = arith.extui %1672 : vector<1x1xi1> to vector<1x1xi32>
    %1674 = arith.addf %1665, %1666 : vector<1x1xf32>
    %1675 = arith.cmpf olt, %1674, %1671 : vector<1x1xf32>
    %1676 = arith.extui %1675 : vector<1x1xi1> to vector<1x1xi32>
    %1677 = arith.addi %1673, %1676 : vector<1x1xi32>
    %1678 = math.log %1669 : vector<1x1xf32>
    %c1_i32_305 = arith.constant 1 : i32
    %1679 = vector.broadcast %c1_i32_305 : i32 to vector<1x1xi32>
    %1680 = arith.cmpi eq, %1677, %1679 : vector<1x1xi32>
    %1681 = arith.select %1680, %1663, %1664 : vector<1x1xi1>, vector<1x1xf32>
    %c0_i32_306 = arith.constant 0 : i32
    %1682 = vector.broadcast %c0_i32_306 : i32 to vector<1x1xi32>
    %1683 = arith.cmpi eq, %1677, %1682 : vector<1x1xi32>
    %1684 = arith.select %1683, %1662, %1681 : vector<1x1xi1>, vector<1x1xf32>
    %1685 = arith.subf %1684, %1678 : vector<1x1xf32>
    %1686 = arith.mulf %1665, %1662 : vector<1x1xf32>
    %1687 = arith.mulf %1666, %1663 : vector<1x1xf32>
    %1688 = arith.addf %1686, %1687 : vector<1x1xf32>
    %1689 = arith.mulf %1667, %1664 : vector<1x1xf32>
    %1690 = arith.addf %1688, %1689 : vector<1x1xf32>
    %1691 = tpu.reciprocal %1669 {approx = true} : vector<1x1xf32> -> vector<1x1xf32>
    %1692 = arith.mulf %1690, %1691 : vector<1x1xf32>
    %1693 = arith.subf %1678, %1692 : vector<1x1xf32>
    %c17_i32 = arith.constant 17 : i32
    %1694 = vector.broadcast %c17_i32 : i32 to vector<1x128xi32>
    %1695 = arith.cmpi eq, %0, %1694 : vector<1x128xi32>
    %1696 = vector.shape_cast %1677 : vector<1x1xi32> to vector<1x1xi32>
    %1697 = vector.broadcast %1696 : vector<1x1xi32> to vector<1x128xi32>
    %1698 = arith.select %1695, %1697, %1619 : vector<1x128xi1>, vector<1x128xi32>
    %1699 = arith.addf %1620, %1685 : vector<1x1xf32>
    %1700 = arith.addf %1621, %1693 : vector<1x1xf32>
    %c0_307 = arith.constant 0 : index
    %c0_308 = arith.constant 0 : index
    %1701 = vector.load %arg5[%c0_307, %c0_308] : memref<1x128xi32, #tpu.memory_space<vmem>>, vector<1x128xi32>
    tpu.vector_store %arg5[%c0_307, %c0_308], %1698 {strides = array<i32>} : memref<1x128xi32, #tpu.memory_space<vmem>>, vector<1x128xi32>,
    %1702 = vector.shape_cast %1699 : vector<1x1xf32> to vector<1x1x1xf32>
    %cst_309 = arith.constant dense<0.000000e+00> : vector<1xf32>
    %1703 = vector.multi_reduction <add>, %1702, %cst_309 [1, 2] : vector<1x1x1xf32> to vector<1xf32>
    %1704 = vector.shape_cast %1703 : vector<1xf32> to vector<1x1x1xf32>
    %1705 = vector.extract %1704[0, 0, 0] : f32 from vector<1x1x1xf32>
    %c0_310 = arith.constant 0 : index
    %1706 = memref.load %arg6[%c0_310] : memref<2xf32, #tpu.memory_space<smem>>
    memref.store %1705, %arg6[%c0_310] : memref<2xf32, #tpu.memory_space<smem>>
    %1707 = vector.shape_cast %1700 : vector<1x1xf32> to vector<1x1x1xf32>
    %cst_311 = arith.constant dense<0.000000e+00> : vector<1xf32>
    %1708 = vector.multi_reduction <add>, %1707, %cst_311 [1, 2] : vector<1x1x1xf32> to vector<1xf32>
    %1709 = vector.shape_cast %1708 : vector<1xf32> to vector<1x1x1xf32>
    %1710 = vector.extract %1709[0, 0, 0] : f32 from vector<1x1x1xf32>
    %c1_312 = arith.constant 1 : index
    %1711 = memref.load %arg6[%c1_312] : memref<2xf32, #tpu.memory_space<smem>>
    memref.store %1710, %arg6[%c1_312] : memref<2xf32, #tpu.memory_space<smem>>
    return
  }
}

</mosaic_0001>

<llo_original>
// kernel: sample.1
$region0: #{sample.1}
  #allocation0 [shape = 'u32[]', space=smem, size = 0x4, offset = 0x4, fixed_abs, tag = 'smem constant byte address 0x4 - core index']
  #allocation1 [shape = 'u32[144,128]{1,0:T(1,128)}', space=vmem, size = 0x12000, scoped, tag = 'internal scratch']
  %s0 = inlined_call_operand.vmem [shape: f32[18], index: 0, kind: input, shape index: {}]
  %s1 = inlined_call_operand.vmem [shape: f32[1,128], index: 1, kind: input, shape index: {}]
  %s2 = inlined_call_operand.vmem [shape: f32[3,3,128], index: 2, kind: input, shape index: {}]
  %s3 = inlined_call_operand.hbm [shape: bf16[3,32,256], index: 3, kind: input, shape index: {}]
  %s4 = inlined_call_operand.vmem [shape: f32[3,1,128], index: 4, kind: input, shape index: {}]
  %s5 = inlined_call_operand.vmem [shape: s32[1,128], index: 5, kind: output, shape index: {0}]
  %s6 = inlined_call_operand.hbm [shape: f32[2], index: 6, kind: output, shape index: {1}]
  %7 = xla_tuple %s5, %s6
  %s8 = sld [smem:[#allocation0]]
  $region46: #{sample.1} parent=0
    _
  %s10 = ssub.s32 1, %s8
  %s11 = scalar_select 0, %s10, %s8
  $region1: #{sample.1} parent=0
    #allocation2 [shape = 'u8[512]{0}', space=smem, size = 0x200, scoped, tag = 'input window, operand 0, single buffered']
    #allocation3 [shape = 's32[1]{0}', space=sflag, size = 0x4, scoped, tag = 'scoped memory for sample.1']
    #allocation4 [shape = 's32[1]{0}', space=sflag, size = 0x4, scoped, tag = 'scoped memory for sample.1']
    #allocation5 [shape = 's32[1]{0}', space=sflag, size = 0x4, scoped, tag = 'scoped memory for sample.1']
    #allocation6 [shape = 'u8[49152]{0}', space=vmem, size = 0xc000, scoped, tag = 'input window, operand 3, single buffered']
    #allocation7 [shape = 'u8[512]{0}', space=smem, size = 0x200, scoped, tag = 'output window, operand 1, single buffered']
    %12 = vsyncpa [#allocation5], 0
    %13 = vsyncpa [#allocation3], 0
    %14 = vsyncpa [#allocation4], 0
    // Predicated region
    $region2: #{sample.1} parent=1 // pred_check
      _
    $region3: #{sample.1} parent=1 // pred_check_branch
      %16 = sbr.rel (0) target = $region5
    $region4: #{sample.1} parent=1 // pred_region
      %s18 = ssub.s32 16, 16
      %19 = vsyncadd [#allocation5], %s18
      %s21 = sshll.u32 %s0, 4
      %s22 = int_to_ptr.vmem [resolvable:$true] %s21
      %24 = dma.vmem_to_smem %s22, 16, [#allocation2], [#allocation5]
    $region5: #{sample.1} parent=1 // pred_fallthru
      _
    // Predicated region
    $region6: #{sample.1} parent=1 // pred_check
      _
    $region7: #{sample.1} parent=1 // pred_check_branch
      %26 = sbr.rel (0) target = $region9
    $region8: #{sample.1} parent=1 // pred_region
      _
    $region9: #{sample.1} parent=1 // pred_fallthru
      _
    // Predicated region
    $region10: #{sample.1} parent=1 // pred_check
      _
    $region11: #{sample.1} parent=1 // pred_check_branch
      %28 = sbr.rel (0) target = $region13
    $region12: #{sample.1} parent=1 // pred_region
      _
    $region13: #{sample.1} parent=1 // pred_fallthru
      _
    // Predicated region
    $region14: #{sample.1} parent=1 // pred_check
      _
    $region15: #{sample.1} parent=1 // pred_check_branch
      %30 = sbr.rel (0) target = $region17
    $region16: #{sample.1} parent=1 // pred_region
      %s32 = ssub.s32 1536, 1536
      %33 = vsyncadd [#allocation3], %s32
      %s34 = sshll.u32 [#allocation6], 4
      %s35 = int_to_ptr.vmem [resolvable:$true] %s34
      %40 = dma.hbm_to_vmem [thread:$0]  %s3, 1536, %s35, [#allocation3], 128, 128, 8
    $region17: #{sample.1} parent=1 // pred_fallthru
      _
    // Predicated region
    $region18: #{sample.1} parent=1 // pred_check
      _
    $region19: #{sample.1} parent=1 // pred_check_branch
      %42 = sbr.rel (0) target = $region21
    $region20: #{sample.1} parent=1 // pred_region
      _
    $region21: #{sample.1} parent=1 // pred_fallthru
      _
    // Predicated region
    $region22: #{sample.1} parent=1 // pred_check
      _
    $region23: #{sample.1} parent=1 // pred_check_branch
      %44 = sbr.rel (0) target = $region25
    $region24: #{sample.1} parent=1 // pred_region
      %45 = dma.done [#allocation5], 16
    $region25: #{sample.1} parent=1 // pred_fallthru
      _
    // Predicated region
    $region26: #{sample.1} parent=1 // pred_check
      _
    $region27: #{sample.1} parent=1 // pred_check_branch
      %47 = sbr.rel (0) target = $region29
    $region28: #{sample.1} parent=1 // pred_region
      %48 = dma.done [#allocation3], 1536
    $region29: #{sample.1} parent=1 // pred_fallthru
      _
    %49 = sfence
    %v51 = vlaneseq
    %v52 = vand.u32 %v51, 127
    %v53 = vld [vmem:[%s1] sm:$0x1]
    %s54 = sld [smem:[#allocation2]]
    %v55 = vadd.f32 %v53, 0.0
    %v56 = vxor.u32 %v55, 2147483648
    %v57 = vmul.f32 %v56, 1.442695
    %v58 = vpow.pop %v57
    %v59 = vadd.f32 %v58, 1.0
    %v60 = vrcp.pop %v59
    %v61 = vmul.f32 1.0, %v60
    %v62 = vtanh.pop %v55
    %v63 = vmul.f32 %v61, 0.0
    %65 = vrot.lane.b32.xlu0 %v62, 64
    %v66 = vpop.permute.xlu0 %65
    %v68 = vmul.f32 %v61, %v66
    %70 = vrot.lane.b32.xlu0 %v68, 32
    %v71 = vpop.permute.xlu0 %70
    %v73 = vadd.f32 %v63, %v71
    %v74 = vtanh.pop %v73
    %76 = vrot.lane.b32.xlu0 %v74, 64
    %v77 = vpop.permute.xlu0 %76
    %v79 = vmul.f32 %v61, %v77
    %v80 = vld [vmem:[#allocation6] sm:$0xff]
    %v81 = vld [vmem:[#allocation6 + $0x8] sm:$0xff]
    %v82 = vld [vmem:[#allocation6 + $0x10] sm:$0xff]
    %v83 = vld [vmem:[#allocation6 + $0x18] sm:$0xff]
    %v84 = vpack.c.bf16 %v79, %v79
    %86 = vrot.lane.b32.xlu0 %v84, 32
    %v87 = vpop.permute.xlu0 %86
    %v92 = vunpack.c.l.b16 %v80
    %v93 = vunpack.c.h.b16 %v80
    %v94 = vunpack.c.l.b16 %v81
    %v95 = vunpack.c.h.b16 %v81
    %v96 = vunpack.c.l.b16 %v82
    %v97 = vunpack.c.h.b16 %v82
    %v98 = vunpack.c.l.b16 %v83
    %v99 = vunpack.c.h.b16 %v83
    %v100 = vpack.c.b16 %v94, %v92
    %v101 = vpack.c.b16 %v95, %v93
    %v102 = vpack.c.b16 %v98, %v96
    %v103 = vpack.c.b16 %v99, %v97
    %vm108 = vcmask 261120
    %v110 = vsel %vm108, %v87, 0
    %112 = vmatprep.subr.bf16.mxu0 0
    %113 = vmatpush1.bf16.msra.mxu0 0
    %114 = vmatprep.subr.bf16.mxu0 0
    %115 = vmatpush1.bf16.msra.mxu0 0
    %116 = vmatprep.subr.bf16.mxu0 0
    %117 = vmatpush1.bf16.msra.mxu0 0
    %118 = vmatprep.subr.bf16.mxu0 0
    %119 = vmatpush1.bf16.msra.mxu0 0
    %120 = vmatprep.subr.bf16.mxu0 0
    %121 = vmatpush1.bf16.msra.mxu0 0
    %122 = vmatprep.subr.bf16.mxu0 0
    %123 = vmatpush1.bf16.msra.mxu0 0
    %124 = vmatprep.subr.bf16.mxu0 %v103
    %125 = vmatpush1.bf16.msra.mxu0 %v102
    %126 = vmatprep.subr.bf16.mxu0 %v101
    %127 = vmatpush1.bf16.msra.mxu0 %v100
    %128 = vmatprep.subr.bf16.mxu0 0
    %129 = vmatpush2.bf16.msra.mxu0 0
    %130 = vmatprep.subr.bf16.mxu0 0
    %131 = vmatpush2.bf16.msra.mxu0 0
    %132 = vmatprep.subr.bf16.mxu0 0
    %133 = vmatpush2.bf16.msra.mxu0 0
    %134 = vmatprep.subr.bf16.mxu0 0
    %135 = vmatpush2.bf16.msra.mxu0 0
    %136 = vmatprep.subr.bf16.mxu0 0
    %137 = vmatpush2.bf16.msra.mxu0 0
    %138 = vmatprep.subr.bf16.mxu0 0
    %139 = vmatpush2.bf16.msra.mxu0 0
    %140 = vmatprep.subr.bf16.mxu0 0
    %141 = vmatpush2.bf16.msra.mxu0 0
    %142 = vmatprep.subr.bf16.mxu0 0
    %143 = vmatpush2.bf16.msra.mxu0 0
    %144 = vmatprep.mubr.bf16.mxu0 0
    %145 = vmatmul.mubr.bf16.gmra.mxu0 %v110
    %v146 = vpop.f32.mrf.mxu0
    %v147 = vadd.f32 0.0, %v146
    %v148 = vpop.f32.mrf.mxu0
    %v149 = vadd.f32 0.0, %v148
    %v150 = vpop.f32.mrf.mxu0
    %v151 = vpop.f32.mrf.mxu0
    %152 = vdwg.mxu0
    %v153 = vld [vmem:[%s4] sm:$0x1]
    %v154 = vadd.f32 %v147, %v153
    %156 = vrot.lane.b32.xlu0 %v154, 127
    %v157 = vpop.permute.xlu0 %156
    %v159 = vmax.f32 %v154, %v157
    %160 = vrot.lane.b32.xlu0 %v154, 126
    %v161 = vpop.permute.xlu0 %160
    %v163 = vmax.f32 %v159, %v161
    %v164 = vsub.f32 %v154, %v163
    %166 = vrot.lane.b32.xlu0 %v163, 1
    %v167 = vpop.permute.xlu0 %166
    %v169 = vsub.f32 %v154, %v167
    %170 = vrot.lane.b32.xlu0 %v163, 2
    %v171 = vpop.permute.xlu0 %170
    %v173 = vsub.f32 %v154, %v171
    %v174 = vmul.f32 %v164, 1.442695
    %v175 = vpow.pop %v174
    %v176 = vmul.f32 %v169, 1.442695
    %v177 = vpow.pop %v176
    %v178 = vmul.f32 %v173, 1.442695
    %v179 = vpow.pop %v178
    %181 = vrot.lane.b32.xlu0 %v177, 127
    %v182 = vpop.permute.xlu0 %181
    %v184 = vadd.f32 %v175, %v182
    %186 = vrot.lane.b32.xlu0 %v179, 126
    %v187 = vpop.permute.xlu0 %186
    %v189 = vadd.f32 %v184, %v187
    %v190 = vstv %s54
    %v191 = vmul.f32 %v189, %v190
    %vm192 = vcmp.lt.f32.partialorder %v175, %v191
    %v193 = vsel %vm192, 1, 0
    %vm194 = vcmp.lt.f32.partialorder %v184, %v191
    %v195 = vsel %vm194, 1, 0
    %v196 = vadd.s32 %v193, %v195
    %v197 = vlog2.pop %v189
    %v198 = vmul.f32 %v197, 0.6931472
    %vm199 = vcmp.eq.s32.totalorder %v196, 1
    %201 = vrot.lane.b32.xlu0 %v169, 127
    %v202 = vpop.permute.xlu0 %201
    %205 = vrot.lane.b32.xlu0 %v173, 126
    %v206 = vpop.permute.xlu0 %205
    %v208 = vsel %vm199, %v202, %v206
    %vm209 = vcmp.eq.s32.totalorder %v196, 0
    %v210 = vsel %vm209, %v164, %v208
    %v211 = vsub.f32 %v210, %v198
    %v212 = vmul.f32 %v175, %v164
    %v213 = vmul.f32 %v177, %v169
    %215 = vrot.lane.b32.xlu0 %v213, 127
    %v216 = vpop.permute.xlu0 %215
    %v218 = vadd.f32 %v212, %v216
    %v219 = vmul.f32 %v179, %v173
    %221 = vrot.lane.b32.xlu0 %v219, 126
    %v222 = vpop.permute.xlu0 %221
    %v224 = vadd.f32 %v218, %v222
    %v225 = vrcp.pop %v189
    %v226 = vmul.f32 %v224, %v225
    %v227 = vsub.f32 %v198, %v226
    %v228 = vld [vmem:[%s2] sm:$0x7]
    %v229 = vsel %vm199, 1, 0
    %230 = vset.pattern.permute.xlu0 0
    %231 = vperm.xlu0 %230, %v229
    %v232 = vpop.permute.xlu0 %231
    %vm233 = vcmp.eq.s32.totalorder %v232, 1
    %v235 = vrot.slane %v228, 1
    %v237 = vrot.slane %v228, 2
    %v239 = vsel %vm233, %v235, %v237
    %v240 = vsel %vm209, 1, 0
    %241 = vset.pattern.permute.xlu0 0
    %242 = vperm.xlu0 %241, %v240
    %v243 = vpop.permute.xlu0 %242
    %vm244 = vcmp.eq.s32.totalorder %v243, 1
    %v245 = vsel %vm244, %v228, %v239
    %vm246 = vcmp.eq.s32.totalorder %v52, 0
    %247 = vset.pattern.permute.xlu0 0
    %248 = vperm.xlu0 %247, %v196
    %v249 = vpop.permute.xlu0 %248
    %v250 = vsel %vm246, %v249, 0
    %v251 = vadd.f32 %v211, 0.0
    %v252 = vadd.f32 %v227, 0.0
    %s253 = sld [smem:[#allocation2 + $0x1]]
    %v254 = vadd.f32 %v245, %v149
    %v255 = vxor.u32 %v254, 2147483648
    %v256 = vmul.f32 %v255, 1.442695
    %v257 = vpow.pop %v256
    %v258 = vadd.f32 %v257, 1.0
    %v259 = vrcp.pop %v258
    %v260 = vmul.f32 1.0, %v259
    %v261 = vtanh.pop %v254
    %v262 = vmul.f32 %v260, %v73
    %264 = vrot.lane.b32.xlu0 %v261, 64
    %v265 = vpop.permute.xlu0 %264
    %v267 = vmul.f32 %v260, %v265
    %269 = vrot.lane.b32.xlu0 %v267, 32
    %v270 = vpop.permute.xlu0 %269
    %v272 = vadd.f32 %v262, %v270
    %v273 = vtanh.pop %v272
    %275 = vrot.lane.b32.xlu0 %v273, 64
    %v276 = vpop.permute.xlu0 %275
    %v278 = vmul.f32 %v260, %v276
    %s279 = scalar_lea.vmem [#allocation6], 32
    %v280 = vld [vmem:[%s279] sm:$0xff]
    %v281 = vld [vmem:[%s279 + $0x8] sm:$0xff]
    %v282 = vld [vmem:[%s279 + $0x10] sm:$0xff]
    %v283 = vld [vmem:[%s279 + $0x18] sm:$0xff]
    %v284 = vpack.c.bf16 %v278, %v278
    %286 = vrot.lane.b32.xlu0 %v284, 32
    %v287 = vpop.permute.xlu0 %286
    %v292 = vunpack.c.l.b16 %v280
    %v293 = vunpack.c.h.b16 %v280
    %v294 = vunpack.c.l.b16 %v281
    %v295 = vunpack.c.h.b16 %v281
    %v296 = vunpack.c.l.b16 %v282
    %v297 = vunpack.c.h.b16 %v282
    %v298 = vunpack.c.l.b16 %v283
    %v299 = vunpack.c.h.b16 %v283
    %v300 = vpack.c.b16 %v294, %v292
    %v301 = vpack.c.b16 %v295, %v293
    %v302 = vpack.c.b16 %v298, %v296
    %v303 = vpack.c.b16 %v299, %v297
    %v309 = vsel %vm108, %v287, 0
    %311 = vmatprep.subr.bf16.mxu0 0
    %312 = vmatpush1.bf16.msra.mxu0 0
    %313 = vmatprep.subr.bf16.mxu0 0
    %314 = vmatpush1.bf16.msra.mxu0 0
    %315 = vmatprep.subr.bf16.mxu0 0
    %316 = vmatpush1.bf16.msra.mxu0 0
    %317 = vmatprep.subr.bf16.mxu0 0
    %318 = vmatpush1.bf16.msra.mxu0 0
    %319 = vmatprep.subr.bf16.mxu0 0
    %320 = vmatpush1.bf16.msra.mxu0 0
    %321 = vmatprep.subr.bf16.mxu0 0
    %322 = vmatpush1.bf16.msra.mxu0 0
    %323 = vmatprep.subr.bf16.mxu0 %v303
    %324 = vmatpush1.bf16.msra.mxu0 %v302
    %325 = vmatprep.subr.bf16.mxu0 %v301
    %326 = vmatpush1.bf16.msra.mxu0 %v300
    %327 = vmatprep.subr.bf16.mxu0 0
    %328 = vmatpush2.bf16.msra.mxu0 0
    %329 = vmatprep.subr.bf16.mxu0 0
    %330 = vmatpush2.bf16.msra.mxu0 0
    %331 = vmatprep.subr.bf16.mxu0 0
    %332 = vmatpush2.bf16.msra.mxu0 0
    %333 = vmatprep.subr.bf16.mxu0 0
    %334 = vmatpush2.bf16.msra.mxu0 0
    %335 = vmatprep.subr.bf16.mxu0 0
    %336 = vmatpush2.bf16.msra.mxu0 0
    %337 = vmatprep.subr.bf16.mxu0 0
    %338 = vmatpush2.bf16.msra.mxu0 0
    %339 = vmatprep.subr.bf16.mxu0 0
    %340 = vmatpush2.bf16.msra.mxu0 0
    %341 = vmatprep.subr.bf16.mxu0 0
    %342 = vmatpush2.bf16.msra.mxu0 0
    %343 = vmatprep.mubr.bf16.mxu0 0
    %344 = vmatmul.mubr.bf16.gmra.mxu0 %v309
    %v345 = vpop.f32.mrf.mxu0
    %v346 = vadd.f32 0.0, %v345
    %v347 = vpop.f32.mrf.mxu0
    %v348 = vadd.f32 0.0, %v347
    %v349 = vpop.f32.mrf.mxu0
    %v350 = vpop.f32.mrf.mxu0
    %351 = vdwg.mxu0
    %s352 = scalar_lea.vmem %s4, 1
    %v353 = vld [vmem:[%s352] sm:$0x1]
    %v354 = vadd.f32 %v346, %v353
    %356 = vrot.lane.b32.xlu0 %v354, 127
    %v357 = vpop.permute.xlu0 %356
    %v359 = vmax.f32 %v354, %v357
    %360 = vrot.lane.b32.xlu0 %v354, 126
    %v361 = vpop.permute.xlu0 %360
    %v363 = vmax.f32 %v359, %v361
    %v364 = vsub.f32 %v354, %v363
    %366 = vrot.lane.b32.xlu0 %v363, 1
    %v367 = vpop.permute.xlu0 %366
    %v369 = vsub.f32 %v354, %v367
    %370 = vrot.lane.b32.xlu0 %v363, 2
    %v371 = vpop.permute.xlu0 %370
    %v373 = vsub.f32 %v354, %v371
    %v374 = vmul.f32 %v364, 1.442695
    %v375 = vpow.pop %v374
    %v376 = vmul.f32 %v369, 1.442695
    %v377 = vpow.pop %v376
    %v378 = vmul.f32 %v373, 1.442695
    %v379 = vpow.pop %v378
    %381 = vrot.lane.b32.xlu0 %v377, 127
    %v382 = vpop.permute.xlu0 %381
    %v384 = vadd.f32 %v375, %v382
    %386 = vrot.lane.b32.xlu0 %v379, 126
    %v387 = vpop.permute.xlu0 %386
    %v389 = vadd.f32 %v384, %v387
    %v390 = vstv %s253
    %v391 = vmul.f32 %v389, %v390
    %vm392 = vcmp.lt.f32.partialorder %v375, %v391
    %v393 = vsel %vm392, 1, 0
    %vm394 = vcmp.lt.f32.partialorder %v384, %v391
    %v395 = vsel %vm394, 1, 0
    %v396 = vadd.s32 %v393, %v395
    %v397 = vlog2.pop %v389
    %v398 = vmul.f32 %v397, 0.6931472
    %vm399 = vcmp.eq.s32.totalorder %v396, 1
    %401 = vrot.lane.b32.xlu0 %v369, 127
    %v402 = vpop.permute.xlu0 %401
    %405 = vrot.lane.b32.xlu0 %v373, 126
    %v406 = vpop.permute.xlu0 %405
    %v408 = vsel %vm399, %v402, %v406
    %vm409 = vcmp.eq.s32.totalorder %v396, 0
    %v410 = vsel %vm409, %v364, %v408
    %v411 = vsub.f32 %v410, %v398
    %v412 = vmul.f32 %v375, %v364
    %v413 = vmul.f32 %v377, %v369
    %415 = vrot.lane.b32.xlu0 %v413, 127
    %v416 = vpop.permute.xlu0 %415
    %v418 = vadd.f32 %v412, %v416
    %v419 = vmul.f32 %v379, %v373
    %421 = vrot.lane.b32.xlu0 %v419, 126
    %v422 = vpop.permute.xlu0 %421
    %v424 = vadd.f32 %v418, %v422
    %v425 = vrcp.pop %v389
    %v426 = vmul.f32 %v424, %v425
    %v427 = vsub.f32 %v398, %v426
    %s428 = scalar_lea.vmem %s2, 4
    %v429 = vld [vmem:[%s428] sm:$0x7]
    %v430 = vsel %vm399, 1, 0
    %431 = vset.pattern.permute.xlu0 0
    %432 = vperm.xlu0 %431, %v430
    %v433 = vpop.permute.xlu0 %432
    %vm434 = vcmp.eq.s32.totalorder %v433, 1
    %v436 = vrot.slane %v429, 1
    %v438 = vrot.slane %v429, 2
    %v440 = vsel %vm434, %v436, %v438
    %v441 = vsel %vm409, 1, 0
    %442 = vset.pattern.permute.xlu0 0
    %443 = vperm.xlu0 %442, %v441
    %v444 = vpop.permute.xlu0 %443
    %vm445 = vcmp.eq.s32.totalorder %v444, 1
    %v446 = vsel %vm445, %v429, %v440
    %vm447 = vcmp.eq.s32.totalorder %v52, 1
    %448 = vset.pattern.permute.xlu0 0
    %449 = vperm.xlu0 %448, %v396
    %v450 = vpop.permute.xlu0 %449
    %v451 = vsel %vm447, %v450, %v250
    %v452 = vadd.f32 %v251, %v411
    %v453 = vadd.f32 %v252, %v427
    %s454 = sld [smem:[#allocation2 + $0x2]]
    %v455 = vadd.f32 %v446, %v348
    %v456 = vxor.u32 %v455, 2147483648
    %v457 = vmul.f32 %v456, 1.442695
    %v458 = vpow.pop %v457
    %v459 = vadd.f32 %v458, 1.0
    %v460 = vrcp.pop %v459
    %v461 = vmul.f32 1.0, %v460
    %v462 = vtanh.pop %v455
    %v463 = vmul.f32 %v461, %v272
    %465 = vrot.lane.b32.xlu0 %v462, 64
    %v466 = vpop.permute.xlu0 %465
    %v468 = vmul.f32 %v461, %v466
    %470 = vrot.lane.b32.xlu0 %v468, 32
    %v471 = vpop.permute.xlu0 %470
    %v473 = vadd.f32 %v463, %v471
    %v474 = vtanh.pop %v473
    %476 = vrot.lane.b32.xlu0 %v474, 64
    %v477 = vpop.permute.xlu0 %476
    %v479 = vmul.f32 %v461, %v477
    %s480 = scalar_lea.vmem [#allocation6], 64
    %v481 = vld [vmem:[%s480] sm:$0xff]
    %v482 = vld [vmem:[%s480 + $0x8] sm:$0xff]
    %v483 = vld [vmem:[%s480 + $0x10] sm:$0xff]
    %v484 = vld [vmem:[%s480 + $0x18] sm:$0xff]
    %v485 = vpack.c.bf16 %v479, %v479
    %487 = vrot.lane.b32.xlu0 %v485, 32
    %v488 = vpop.permute.xlu0 %487
    %v493 = vunpack.c.l.b16 %v481
    %v494 = vunpack.c.h.b16 %v481
    %v495 = vunpack.c.l.b16 %v482
    %v496 = vunpack.c.h.b16 %v482
    %v497 = vunpack.c.l.b16 %v483
    %v498 = vunpack.c.h.b16 %v483
    %v499 = vunpack.c.l.b16 %v484
    %v500 = vunpack.c.h.b16 %v484
    %v501 = vpack.c.b16 %v495, %v493
    %v502 = vpack.c.b16 %v496, %v494
    %v503 = vpack.c.b16 %v499, %v497
    %v504 = vpack.c.b16 %v500, %v498
    %v510 = vsel %vm108, %v488, 0
    %512 = vmatprep.subr.bf16.mxu0 0
    %513 = vmatpush1.bf16.msra.mxu0 0
    %514 = vmatprep.subr.bf16.mxu0 0
    %515 = vmatpush1.bf16.msra.mxu0 0
    %516 = vmatprep.subr.bf16.mxu0 0
    %517 = vmatpush1.bf16.msra.mxu0 0
    %518 = vmatprep.subr.bf16.mxu0 0
    %519 = vmatpush1.bf16.msra.mxu0 0
    %520 = vmatprep.subr.bf16.mxu0 0
    %521 = vmatpush1.bf16.msra.mxu0 0
    %522 = vmatprep.subr.bf16.mxu0 0
    %523 = vmatpush1.bf16.msra.mxu0 0
    %524 = vmatprep.subr.bf16.mxu0 %v504
    %525 = vmatpush1.bf16.msra.mxu0 %v503
    %526 = vmatprep.subr.bf16.mxu0 %v502
    %527 = vmatpush1.bf16.msra.mxu0 %v501
    %528 = vmatprep.subr.bf16.mxu0 0
    %529 = vmatpush2.bf16.msra.mxu0 0
    %530 = vmatprep.subr.bf16.mxu0 0
    %531 = vmatpush2.bf16.msra.mxu0 0
    %532 = vmatprep.subr.bf16.mxu0 0
    %533 = vmatpush2.bf16.msra.mxu0 0
    %534 = vmatprep.subr.bf16.mxu0 0
    %535 = vmatpush2.bf16.msra.mxu0 0
    %536 = vmatprep.subr.bf16.mxu0 0
    %537 = vmatpush2.bf16.msra.mxu0 0
    %538 = vmatprep.subr.bf16.mxu0 0
    %539 = vmatpush2.bf16.msra.mxu0 0
    %540 = vmatprep.subr.bf16.mxu0 0
    %541 = vmatpush2.bf16.msra.mxu0 0
    %542 = vmatprep.subr.bf16.mxu0 0
    %543 = vmatpush2.bf16.msra.mxu0 0
    %544 = vmatprep.mubr.bf16.mxu0 0
    %545 = vmatmul.mubr.bf16.gmra.mxu0 %v510
    %v546 = vpop.f32.mrf.mxu0
    %v547 = vadd.f32 0.0, %v546
    %v548 = vpop.f32.mrf.mxu0
    %v549 = vadd.f32 0.0, %v548
    %v550 = vpop.f32.mrf.mxu0
    %v551 = vpop.f32.mrf.mxu0
    %552 = vdwg.mxu0
    %s553 = scalar_lea.vmem %s4, 2
    %v554 = vld [vmem:[%s553] sm:$0x1]
    %v555 = vadd.f32 %v547, %v554
    %557 = vrot.lane.b32.xlu0 %v555, 127
    %v558 = vpop.permute.xlu0 %557
    %v560 = vmax.f32 %v555, %v558
    %561 = vrot.lane.b32.xlu0 %v555, 126
    %v562 = vpop.permute.xlu0 %561
    %v564 = vmax.f32 %v560, %v562
    %v565 = vsub.f32 %v555, %v564
    %567 = vrot.lane.b32.xlu0 %v564, 1
    %v568 = vpop.permute.xlu0 %567
    %v570 = vsub.f32 %v555, %v568
    %571 = vrot.lane.b32.xlu0 %v564, 2
    %v572 = vpop.permute.xlu0 %571
    %v574 = vsub.f32 %v555, %v572
    %v575 = vmul.f32 %v565, 1.442695
    %v576 = vpow.pop %v575
    %v577 = vmul.f32 %v570, 1.442695
    %v578 = vpow.pop %v577
    %v579 = vmul.f32 %v574, 1.442695
    %v580 = vpow.pop %v579
    %582 = vrot.lane.b32.xlu0 %v578, 127
    %v583 = vpop.permute.xlu0 %582
    %v585 = vadd.f32 %v576, %v583
    %587 = vrot.lane.b32.xlu0 %v580, 126
    %v588 = vpop.permute.xlu0 %587
    %v590 = vadd.f32 %v585, %v588
    %v591 = vstv %s454
    %v592 = vmul.f32 %v590, %v591
    %vm593 = vcmp.lt.f32.partialorder %v576, %v592
    %v594 = vsel %vm593, 1, 0
    %vm595 = vcmp.lt.f32.partialorder %v585, %v592
    %v596 = vsel %vm595, 1, 0
    %v597 = vadd.s32 %v594, %v596
    %v598 = vlog2.pop %v590
    %v599 = vmul.f32 %v598, 0.6931472
    %vm600 = vcmp.eq.s32.totalorder %v597, 1
    %602 = vrot.lane.b32.xlu0 %v570, 127
    %v603 = vpop.permute.xlu0 %602
    %606 = vrot.lane.b32.xlu0 %v574, 126
    %v607 = vpop.permute.xlu0 %606
    %v609 = vsel %vm600, %v603, %v607
    %vm610 = vcmp.eq.s32.totalorder %v597, 0
    %v611 = vsel %vm610, %v565, %v609
    %v612 = vsub.f32 %v611, %v599
    %v613 = vmul.f32 %v576, %v565
    %v614 = vmul.f32 %v578, %v570
    %616 = vrot.lane.b32.xlu0 %v614, 127
    %v617 = vpop.permute.xlu0 %616
    %v619 = vadd.f32 %v613, %v617
    %v620 = vmul.f32 %v580, %v574
    %622 = vrot.lane.b32.xlu0 %v620, 126
    %v623 = vpop.permute.xlu0 %622
    %v625 = vadd.f32 %v619, %v623
    %v626 = vrcp.pop %v590
    %v627 = vmul.f32 %v625, %v626
    %v628 = vsub.f32 %v599, %v627
    %s629 = scalar_lea.vmem %s2, 8
    %v630 = vld [vmem:[%s629] sm:$0x7]
    %v631 = vsel %vm600, 1, 0
    %632 = vset.pattern.permute.xlu0 0
    %633 = vperm.xlu0 %632, %v631
    %v634 = vpop.permute.xlu0 %633
    %vm635 = vcmp.eq.s32.totalorder %v634, 1
    %v637 = vrot.slane %v630, 1
    %v639 = vrot.slane %v630, 2
    %v641 = vsel %vm635, %v637, %v639
    %v642 = vsel %vm610, 1, 0
    %643 = vset.pattern.permute.xlu0 0
    %644 = vperm.xlu0 %643, %v642
    %v645 = vpop.permute.xlu0 %644
    %vm646 = vcmp.eq.s32.totalorder %v645, 1
    %v647 = vsel %vm646, %v630, %v641
    %vm648 = vcmp.eq.s32.totalorder %v52, 2
    %649 = vset.pattern.permute.xlu0 0
    %650 = vperm.xlu0 %649, %v597
    %v651 = vpop.permute.xlu0 %650
    %v652 = vsel %vm648, %v651, %v451
    %v653 = vadd.f32 %v452, %v612
    %v654 = vadd.f32 %v453, %v628
    %s655 = sld [smem:[#allocation2 + $0x3]]
    %v656 = vadd.f32 %v647, %v549
    %v657 = vxor.u32 %v656, 2147483648
    %v658 = vmul.f32 %v657, 1.442695
    %v659 = vpow.pop %v658
    %v660 = vadd.f32 %v659, 1.0
    %v661 = vrcp.pop %v660
    %v662 = vmul.f32 1.0, %v661
    %v663 = vtanh.pop %v656
    %v664 = vmul.f32 %v662, %v473
    %666 = vrot.lane.b32.xlu0 %v663, 64
    %v667 = vpop.permute.xlu0 %666
    %v669 = vmul.f32 %v662, %v667
    %671 = vrot.lane.b32.xlu0 %v669, 32
    %v672 = vpop.permute.xlu0 %671
    %v674 = vadd.f32 %v664, %v672
    %v675 = vtanh.pop %v674
    %677 = vrot.lane.b32.xlu0 %v675, 64
    %v678 = vpop.permute.xlu0 %677
    %v680 = vmul.f32 %v662, %v678
    %v681 = vpack.c.bf16 %v680, %v680
    %683 = vrot.lane.b32.xlu0 %v681, 32
    %v684 = vpop.permute.xlu0 %683
    %v686 = vsel %vm108, %v684, 0
    %688 = vmatprep.subr.bf16.mxu0 0
    %689 = vmatpush1.bf16.msra.mxu0 0
    %690 = vmatprep.subr.bf16.mxu0 0
    %691 = vmatpush1.bf16.msra.mxu0 0
    %692 = vmatprep.subr.bf16.mxu0 0
    %693 = vmatpush1.bf16.msra.mxu0 0
    %694 = vmatprep.subr.bf16.mxu0 0
    %695 = vmatpush1.bf16.msra.mxu0 0
    %696 = vmatprep.subr.bf16.mxu0 0
    %697 = vmatpush1.bf16.msra.mxu0 0
    %698 = vmatprep.subr.bf16.mxu0 0
    %699 = vmatpush1.bf16.msra.mxu0 0
    %700 = vmatprep.subr.bf16.mxu0 %v303
    %701 = vmatpush1.bf16.msra.mxu0 %v302
    %702 = vmatprep.subr.bf16.mxu0 %v301
    %703 = vmatpush1.bf16.msra.mxu0 %v300
    %704 = vmatprep.subr.bf16.mxu0 0
    %705 = vmatpush2.bf16.msra.mxu0 0
    %706 = vmatprep.subr.bf16.mxu0 0
    %707 = vmatpush2.bf16.msra.mxu0 0
    %708 = vmatprep.subr.bf16.mxu0 0
    %709 = vmatpush2.bf16.msra.mxu0 0
    %710 = vmatprep.subr.bf16.mxu0 0
    %711 = vmatpush2.bf16.msra.mxu0 0
    %712 = vmatprep.subr.bf16.mxu0 0
    %713 = vmatpush2.bf16.msra.mxu0 0
    %714 = vmatprep.subr.bf16.mxu0 0
    %715 = vmatpush2.bf16.msra.mxu0 0
    %716 = vmatprep.subr.bf16.mxu0 0
    %717 = vmatpush2.bf16.msra.mxu0 0
    %718 = vmatprep.subr.bf16.mxu0 0
    %719 = vmatpush2.bf16.msra.mxu0 0
    %720 = vmatprep.mubr.bf16.mxu0 0
    %721 = vmatmul.mubr.bf16.gmra.mxu0 %v686
    %v722 = vpop.f32.mrf.mxu0
    %v723 = vadd.f32 0.0, %v722
    %v724 = vpop.f32.mrf.mxu0
    %v725 = vadd.f32 0.0, %v724
    %v726 = vpop.f32.mrf.mxu0
    %v727 = vpop.f32.mrf.mxu0
    %728 = vdwg.mxu0
    %v729 = vadd.f32 %v723, %v353
    %731 = vrot.lane.b32.xlu0 %v729, 127
    %v732 = vpop.permute.xlu0 %731
    %v734 = vmax.f32 %v729, %v732
    %735 = vrot.lane.b32.xlu0 %v729, 126
    %v736 = vpop.permute.xlu0 %735
    %v738 = vmax.f32 %v734, %v736
    %v739 = vsub.f32 %v729, %v738
    %741 = vrot.lane.b32.xlu0 %v738, 1
    %v742 = vpop.permute.xlu0 %741
    %v744 = vsub.f32 %v729, %v742
    %745 = vrot.lane.b32.xlu0 %v738, 2
    %v746 = vpop.permute.xlu0 %745
    %v748 = vsub.f32 %v729, %v746
    %v749 = vmul.f32 %v739, 1.442695
    %v750 = vpow.pop %v749
    %v751 = vmul.f32 %v744, 1.442695
    %v752 = vpow.pop %v751
    %v753 = vmul.f32 %v748, 1.442695
    %v754 = vpow.pop %v753
    %756 = vrot.lane.b32.xlu0 %v752, 127
    %v757 = vpop.permute.xlu0 %756
    %v759 = vadd.f32 %v750, %v757
    %761 = vrot.lane.b32.xlu0 %v754, 126
    %v762 = vpop.permute.xlu0 %761
    %v764 = vadd.f32 %v759, %v762
    %v765 = vstv %s655
    %v766 = vmul.f32 %v764, %v765
    %vm767 = vcmp.lt.f32.partialorder %v750, %v766
    %v768 = vsel %vm767, 1, 0
    %vm769 = vcmp.lt.f32.partialorder %v759, %v766
    %v770 = vsel %vm769, 1, 0
    %v771 = vadd.s32 %v768, %v770
    %v772 = vlog2.pop %v764
    %v773 = vmul.f32 %v772, 0.6931472
    %vm774 = vcmp.eq.s32.totalorder %v771, 1
    %776 = vrot.lane.b32.xlu0 %v744, 127
    %v777 = vpop.permute.xlu0 %776
    %780 = vrot.lane.b32.xlu0 %v748, 126
    %v781 = vpop.permute.xlu0 %780
    %v783 = vsel %vm774, %v777, %v781
    %vm784 = vcmp.eq.s32.totalorder %v771, 0
    %v785 = vsel %vm784, %v739, %v783
    %v786 = vsub.f32 %v785, %v773
    %v787 = vmul.f32 %v750, %v739
    %v788 = vmul.f32 %v752, %v744
    %790 = vrot.lane.b32.xlu0 %v788, 127
    %v791 = vpop.permute.xlu0 %790
    %v793 = vadd.f32 %v787, %v791
    %v794 = vmul.f32 %v754, %v748
    %796 = vrot.lane.b32.xlu0 %v794, 126
    %v797 = vpop.permute.xlu0 %796
    %v799 = vadd.f32 %v793, %v797
    %v800 = vrcp.pop %v764
    %v801 = vmul.f32 %v799, %v800
    %v802 = vsub.f32 %v773, %v801
    %v803 = vsel %vm774, 1, 0
    %804 = vset.pattern.permute.xlu0 0
    %805 = vperm.xlu0 %804, %v803
    %v806 = vpop.permute.xlu0 %805
    %vm807 = vcmp.eq.s32.totalorder %v806, 1
    %v808 = vsel %vm807, %v436, %v438
    %v809 = vsel %vm784, 1, 0
    %810 = vset.pattern.permute.xlu0 0
    %811 = vperm.xlu0 %810, %v809
    %v812 = vpop.permute.xlu0 %811
    %vm813 = vcmp.eq.s32.totalorder %v812, 1
    %v814 = vsel %vm813, %v429, %v808
    %vm815 = vcmp.eq.s32.totalorder %v52, 3
    %816 = vset.pattern.permute.xlu0 0
    %817 = vperm.xlu0 %816, %v771
    %v818 = vpop.permute.xlu0 %817
    %v819 = vsel %vm815, %v818, %v652
    %v820 = vadd.f32 %v653, %v786
    %v821 = vadd.f32 %v654, %v802
    %s822 = sld [smem:[#allocation2 + $0x4]]
    %v823 = vadd.f32 %v814, %v725
    %v824 = vxor.u32 %v823, 2147483648
    %v825 = vmul.f32 %v824, 1.442695
    %v826 = vpow.pop %v825
    %v827 = vadd.f32 %v826, 1.0
    %v828 = vrcp.pop %v827
    %v829 = vmul.f32 1.0, %v828
    %v830 = vtanh.pop %v823
    %v831 = vmul.f32 %v829, %v674
    %833 = vrot.lane.b32.xlu0 %v830, 64
    %v834 = vpop.permute.xlu0 %833
    %v836 = vmul.f32 %v829, %v834
    %838 = vrot.lane.b32.xlu0 %v836, 32
    %v839 = vpop.permute.xlu0 %838
    %v841 = vadd.f32 %v831, %v839
    %v842 = vtanh.pop %v841
    %844 = vrot.lane.b32.xlu0 %v842, 64
    %v845 = vpop.permute.xlu0 %844
    %v847 = vmul.f32 %v829, %v845
    %v848 = vpack.c.bf16 %v847, %v847
    %850 = vrot.lane.b32.xlu0 %v848, 32
    %v851 = vpop.permute.xlu0 %850
    %v853 = vsel %vm108, %v851, 0
    %855 = vmatprep.subr.bf16.mxu0 0
    %856 = vmatpush1.bf16.msra.mxu0 0
    %857 = vmatprep.subr.bf16.mxu0 0
    %858 = vmatpush1.bf16.msra.mxu0 0
    %859 = vmatprep.subr.bf16.mxu0 0
    %860 = vmatpush1.bf16.msra.mxu0 0
    %861 = vmatprep.subr.bf16.mxu0 0
    %862 = vmatpush1.bf16.msra.mxu0 0
    %863 = vmatprep.subr.bf16.mxu0 0
    %864 = vmatpush1.bf16.msra.mxu0 0
    %865 = vmatprep.subr.bf16.mxu0 0
    %866 = vmatpush1.bf16.msra.mxu0 0
    %867 = vmatprep.subr.bf16.mxu0 %v504
    %868 = vmatpush1.bf16.msra.mxu0 %v503
    %869 = vmatprep.subr.bf16.mxu0 %v502
    %870 = vmatpush1.bf16.msra.mxu0 %v501
    %871 = vmatprep.subr.bf16.mxu0 0
    %872 = vmatpush2.bf16.msra.mxu0 0
    %873 = vmatprep.subr.bf16.mxu0 0
    %874 = vmatpush2.bf16.msra.mxu0 0
    %875 = vmatprep.subr.bf16.mxu0 0
    %876 = vmatpush2.bf16.msra.mxu0 0
    %877 = vmatprep.subr.bf16.mxu0 0
    %878 = vmatpush2.bf16.msra.mxu0 0
    %879 = vmatprep.subr.bf16.mxu0 0
    %880 = vmatpush2.bf16.msra.mxu0 0
    %881 = vmatprep.subr.bf16.mxu0 0
    %882 = vmatpush2.bf16.msra.mxu0 0
    %883 = vmatprep.subr.bf16.mxu0 0
    %884 = vmatpush2.bf16.msra.mxu0 0
    %885 = vmatprep.subr.bf16.mxu0 0
    %886 = vmatpush2.bf16.msra.mxu0 0
    %887 = vmatprep.mubr.bf16.mxu0 0
    %888 = vmatmul.mubr.bf16.gmra.mxu0 %v853
    %v889 = vpop.f32.mrf.mxu0
    %v890 = vadd.f32 0.0, %v889
    %v891 = vpop.f32.mrf.mxu0
    %v892 = vadd.f32 0.0, %v891
    %v893 = vpop.f32.mrf.mxu0
    %v894 = vpop.f32.mrf.mxu0
    %895 = vdwg.mxu0
    %v896 = vadd.f32 %v890, %v554
    %898 = vrot.lane.b32.xlu0 %v896, 127
    %v899 = vpop.permute.xlu0 %898
    %v901 = vmax.f32 %v896, %v899
    %902 = vrot.lane.b32.xlu0 %v896, 126
    %v903 = vpop.permute.xlu0 %902
    %v905 = vmax.f32 %v901, %v903
    %v906 = vsub.f32 %v896, %v905
    %908 = vrot.lane.b32.xlu0 %v905, 1
    %v909 = vpop.permute.xlu0 %908
    %v911 = vsub.f32 %v896, %v909
    %912 = vrot.lane.b32.xlu0 %v905, 2
    %v913 = vpop.permute.xlu0 %912
    %v915 = vsub.f32 %v896, %v913
    %v916 = vmul.f32 %v906, 1.442695
    %v917 = vpow.pop %v916
    %v918 = vmul.f32 %v911, 1.442695
    %v919 = vpow.pop %v918
    %v920 = vmul.f32 %v915, 1.442695
    %v921 = vpow.pop %v920
    %923 = vrot.lane.b32.xlu0 %v919, 127
    %v924 = vpop.permute.xlu0 %923
    %v926 = vadd.f32 %v917, %v924
    %928 = vrot.lane.b32.xlu0 %v921, 126
    %v929 = vpop.permute.xlu0 %928
    %v931 = vadd.f32 %v926, %v929
    %v932 = vstv %s822
    %v933 = vmul.f32 %v931, %v932
    %vm934 = vcmp.lt.f32.partialorder %v917, %v933
    %v935 = vsel %vm934, 1, 0
    %vm936 = vcmp.lt.f32.partialorder %v926, %v933
    %v937 = vsel %vm936, 1, 0
    %v938 = vadd.s32 %v935, %v937
    %v939 = vlog2.pop %v931
    %v940 = vmul.f32 %v939, 0.6931472
    %vm941 = vcmp.eq.s32.totalorder %v938, 1
    %943 = vrot.lane.b32.xlu0 %v911, 127
    %v944 = vpop.permute.xlu0 %943
    %947 = vrot.lane.b32.xlu0 %v915, 126
    %v948 = vpop.permute.xlu0 %947
    %v950 = vsel %vm941, %v944, %v948
    %vm951 = vcmp.eq.s32.totalorder %v938, 0
    %v952 = vsel %vm951, %v906, %v950
    %v953 = vsub.f32 %v952, %v940
    %v954 = vmul.f32 %v917, %v906
    %v955 = vmul.f32 %v919, %v911
    %957 = vrot.lane.b32.xlu0 %v955, 127
    %v958 = vpop.permute.xlu0 %957
    %v960 = vadd.f32 %v954, %v958
    %v961 = vmul.f32 %v921, %v915
    %963 = vrot.lane.b32.xlu0 %v961, 126
    %v964 = vpop.permute.xlu0 %963
    %v966 = vadd.f32 %v960, %v964
    %v967 = vrcp.pop %v931
    %v968 = vmul.f32 %v966, %v967
    %v969 = vsub.f32 %v940, %v968
    %v970 = vsel %vm941, 1, 0
    %971 = vset.pattern.permute.xlu0 0
    %972 = vperm.xlu0 %971, %v970
    %v973 = vpop.permute.xlu0 %972
    %vm974 = vcmp.eq.s32.totalorder %v973, 1
    %v975 = vsel %vm974, %v637, %v639
    %v976 = vsel %vm951, 1, 0
    %977 = vset.pattern.permute.xlu0 0
    %978 = vperm.xlu0 %977, %v976
    %v979 = vpop.permute.xlu0 %978
    %vm980 = vcmp.eq.s32.totalorder %v979, 1
    %v981 = vsel %vm980, %v630, %v975
    %vm982 = vcmp.eq.s32.totalorder %v52, 4
    %983 = vset.pattern.permute.xlu0 0
    %984 = vperm.xlu0 %983, %v938
    %v985 = vpop.permute.xlu0 %984
    %v986 = vsel %vm982, %v985, %v819
    %v987 = vadd.f32 %v820, %v953
    %v988 = vadd.f32 %v821, %v969
    %s989 = sld [smem:[#allocation2 + $0x5]]
    %v990 = vadd.f32 %v981, %v892
    %v991 = vxor.u32 %v990, 2147483648
    %v992 = vmul.f32 %v991, 1.442695
    %v993 = vpow.pop %v992
    %v994 = vadd.f32 %v993, 1.0
    %v995 = vrcp.pop %v994
    %v996 = vmul.f32 1.0, %v995
    %v997 = vtanh.pop %v990
    %v998 = vmul.f32 %v996, %v841
    %1000 = vrot.lane.b32.xlu0 %v997, 64
    %v1001 = vpop.permute.xlu0 %1000
    %v1003 = vmul.f32 %v996, %v1001
    %1005 = vrot.lane.b32.xlu0 %v1003, 32
    %v1006 = vpop.permute.xlu0 %1005
    %v1008 = vadd.f32 %v998, %v1006
    %v1009 = vtanh.pop %v1008
    %1011 = vrot.lane.b32.xlu0 %v1009, 64
    %v1012 = vpop.permute.xlu0 %1011
    %v1014 = vmul.f32 %v996, %v1012
    %v1015 = vpack.c.bf16 %v1014, %v1014
    %1017 = vrot.lane.b32.xlu0 %v1015, 32
    %v1018 = vpop.permute.xlu0 %1017
    %v1020 = vsel %vm108, %v1018, 0
    %1022 = vmatprep.subr.bf16.mxu0 0
    %1023 = vmatpush1.bf16.msra.mxu0 0
    %1024 = vmatprep.subr.bf16.mxu0 0
    %1025 = vmatpush1.bf16.msra.mxu0 0
    %1026 = vmatprep.subr.bf16.mxu0 0
    %1027 = vmatpush1.bf16.msra.mxu0 0
    %1028 = vmatprep.subr.bf16.mxu0 0
    %1029 = vmatpush1.bf16.msra.mxu0 0
    %1030 = vmatprep.subr.bf16.mxu0 0
    %1031 = vmatpush1.bf16.msra.mxu0 0
    %1032 = vmatprep.subr.bf16.mxu0 0
    %1033 = vmatpush1.bf16.msra.mxu0 0
    %1034 = vmatprep.subr.bf16.mxu0 %v303
    %1035 = vmatpush1.bf16.msra.mxu0 %v302
    %1036 = vmatprep.subr.bf16.mxu0 %v301
    %1037 = vmatpush1.bf16.msra.mxu0 %v300
    %1038 = vmatprep.subr.bf16.mxu0 0
    %1039 = vmatpush2.bf16.msra.mxu0 0
    %1040 = vmatprep.subr.bf16.mxu0 0
    %1041 = vmatpush2.bf16.msra.mxu0 0
    %1042 = vmatprep.subr.bf16.mxu0 0
    %1043 = vmatpush2.bf16.msra.mxu0 0
    %1044 = vmatprep.subr.bf16.mxu0 0
    %1045 = vmatpush2.bf16.msra.mxu0 0
    %1046 = vmatprep.subr.bf16.mxu0 0
    %1047 = vmatpush2.bf16.msra.mxu0 0
    %1048 = vmatprep.subr.bf16.mxu0 0
    %1049 = vmatpush2.bf16.msra.mxu0 0
    %1050 = vmatprep.subr.bf16.mxu0 0
    %1051 = vmatpush2.bf16.msra.mxu0 0
    %1052 = vmatprep.subr.bf16.mxu0 0
    %1053 = vmatpush2.bf16.msra.mxu0 0
    %1054 = vmatprep.mubr.bf16.mxu0 0
    %1055 = vmatmul.mubr.bf16.gmra.mxu0 %v1020
    %v1056 = vpop.f32.mrf.mxu0
    %v1057 = vadd.f32 0.0, %v1056
    %v1058 = vpop.f32.mrf.mxu0
    %v1059 = vadd.f32 0.0, %v1058
    %v1060 = vpop.f32.mrf.mxu0
    %v1061 = vpop.f32.mrf.mxu0
    %1062 = vdwg.mxu0
    %v1063 = vadd.f32 %v1057, %v353
    %1065 = vrot.lane.b32.xlu0 %v1063, 127
    %v1066 = vpop.permute.xlu0 %1065
    %v1068 = vmax.f32 %v1063, %v1066
    %1069 = vrot.lane.b32.xlu0 %v1063, 126
    %v1070 = vpop.permute.xlu0 %1069
    %v1072 = vmax.f32 %v1068, %v1070
    %v1073 = vsub.f32 %v1063, %v1072
    %1075 = vrot.lane.b32.xlu0 %v1072, 1
    %v1076 = vpop.permute.xlu0 %1075
    %v1078 = vsub.f32 %v1063, %v1076
    %1079 = vrot.lane.b32.xlu0 %v1072, 2
    %v1080 = vpop.permute.xlu0 %1079
    %v1082 = vsub.f32 %v1063, %v1080
    %v1083 = vmul.f32 %v1073, 1.442695
    %v1084 = vpow.pop %v1083
    %v1085 = vmul.f32 %v1078, 1.442695
    %v1086 = vpow.pop %v1085
    %v1087 = vmul.f32 %v1082, 1.442695
    %v1088 = vpow.pop %v1087
    %1090 = vrot.lane.b32.xlu0 %v1086, 127
    %v1091 = vpop.permute.xlu0 %1090
    %v1093 = vadd.f32 %v1084, %v1091
    %1095 = vrot.lane.b32.xlu0 %v1088, 126
    %v1096 = vpop.permute.xlu0 %1095
    %v1098 = vadd.f32 %v1093, %v1096
    %v1099 = vstv %s989
    %v1100 = vmul.f32 %v1098, %v1099
    %vm1101 = vcmp.lt.f32.partialorder %v1084, %v1100
    %v1102 = vsel %vm1101, 1, 0
    %vm1103 = vcmp.lt.f32.partialorder %v1093, %v1100
    %v1104 = vsel %vm1103, 1, 0
    %v1105 = vadd.s32 %v1102, %v1104
    %v1106 = vlog2.pop %v1098
    %v1107 = vmul.f32 %v1106, 0.6931472
    %vm1108 = vcmp.eq.s32.totalorder %v1105, 1
    %1110 = vrot.lane.b32.xlu0 %v1078, 127
    %v1111 = vpop.permute.xlu0 %1110
    %1114 = vrot.lane.b32.xlu0 %v1082, 126
    %v1115 = vpop.permute.xlu0 %1114
    %v1117 = vsel %vm1108, %v1111, %v1115
    %vm1118 = vcmp.eq.s32.totalorder %v1105, 0
    %v1119 = vsel %vm1118, %v1073, %v1117
    %v1120 = vsub.f32 %v1119, %v1107
    %v1121 = vmul.f32 %v1084, %v1073
    %v1122 = vmul.f32 %v1086, %v1078
    %1124 = vrot.lane.b32.xlu0 %v1122, 127
    %v1125 = vpop.permute.xlu0 %1124
    %v1127 = vadd.f32 %v1121, %v1125
    %v1128 = vmul.f32 %v1088, %v1082
    %1130 = vrot.lane.b32.xlu0 %v1128, 126
    %v1131 = vpop.permute.xlu0 %1130
    %v1133 = vadd.f32 %v1127, %v1131
    %v1134 = vrcp.pop %v1098
    %v1135 = vmul.f32 %v1133, %v1134
    %v1136 = vsub.f32 %v1107, %v1135
    %v1137 = vsel %vm1108, 1, 0
    %1138 = vset.pattern.permute.xlu0 0
    %1139 = vperm.xlu0 %1138, %v1137
    %v1140 = vpop.permute.xlu0 %1139
    %vm1141 = vcmp.eq.s32.totalorder %v1140, 1
    %v1142 = vsel %vm1141, %v436, %v438
    %v1143 = vsel %vm1118, 1, 0
    %1144 = vset.pattern.permute.xlu0 0
    %1145 = vperm.xlu0 %1144, %v1143
    %v1146 = vpop.permute.xlu0 %1145
    %vm1147 = vcmp.eq.s32.totalorder %v1146, 1
    %v1148 = vsel %vm1147, %v429, %v1142
    %vm1149 = vcmp.eq.s32.totalorder %v52, 5
    %1150 = vset.pattern.permute.xlu0 0
    %1151 = vperm.xlu0 %1150, %v1105
    %v1152 = vpop.permute.xlu0 %1151
    %v1153 = vsel %vm1149, %v1152, %v986
    %v1154 = vadd.f32 %v987, %v1120
    %v1155 = vadd.f32 %v988, %v1136
    %s1156 = sld [smem:[#allocation2 + $0x6]]
    %v1157 = vadd.f32 %v1148, %v1059
    %v1158 = vxor.u32 %v1157, 2147483648
    %v1159 = vmul.f32 %v1158, 1.442695
    %v1160 = vpow.pop %v1159
    %v1161 = vadd.f32 %v1160, 1.0
    %v1162 = vrcp.pop %v1161
    %v1163 = vmul.f32 1.0, %v1162
    %v1164 = vtanh.pop %v1157
    %v1165 = vmul.f32 %v1163, %v1008
    %1167 = vrot.lane.b32.xlu0 %v1164, 64
    %v1168 = vpop.permute.xlu0 %1167
    %v1170 = vmul.f32 %v1163, %v1168
    %1172 = vrot.lane.b32.xlu0 %v1170, 32
    %v1173 = vpop.permute.xlu0 %1172
    %v1175 = vadd.f32 %v1165, %v1173
    %v1176 = vtanh.pop %v1175
    %1178 = vrot.lane.b32.xlu0 %v1176, 64
    %v1179 = vpop.permute.xlu0 %1178
    %v1181 = vmul.f32 %v1163, %v1179
    %v1182 = vpack.c.bf16 %v1181, %v1181
    %1184 = vrot.lane.b32.xlu0 %v1182, 32
    %v1185 = vpop.permute.xlu0 %1184
    %v1187 = vsel %vm108, %v1185, 0
    %1189 = vmatprep.subr.bf16.mxu0 0
    %1190 = vmatpush1.bf16.msra.mxu0 0
    %1191 = vmatprep.subr.bf16.mxu0 0
    %1192 = vmatpush1.bf16.msra.mxu0 0
    %1193 = vmatprep.subr.bf16.mxu0 0
    %1194 = vmatpush1.bf16.msra.mxu0 0
    %1195 = vmatprep.subr.bf16.mxu0 0
    %1196 = vmatpush1.bf16.msra.mxu0 0
    %1197 = vmatprep.subr.bf16.mxu0 0
    %1198 = vmatpush1.bf16.msra.mxu0 0
    %1199 = vmatprep.subr.bf16.mxu0 0
    %1200 = vmatpush1.bf16.msra.mxu0 0
    %1201 = vmatprep.subr.bf16.mxu0 %v504
    %1202 = vmatpush1.bf16.msra.mxu0 %v503
    %1203 = vmatprep.subr.bf16.mxu0 %v502
    %1204 = vmatpush1.bf16.msra.mxu0 %v501
    %1205 = vmatprep.subr.bf16.mxu0 0
    %1206 = vmatpush2.bf16.msra.mxu0 0
    %1207 = vmatprep.subr.bf16.mxu0 0
    %1208 = vmatpush2.bf16.msra.mxu0 0
    %1209 = vmatprep.subr.bf16.mxu0 0
    %1210 = vmatpush2.bf16.msra.mxu0 0
    %1211 = vmatprep.subr.bf16.mxu0 0
    %1212 = vmatpush2.bf16.msra.mxu0 0
    %1213 = vmatprep.subr.bf16.mxu0 0
    %1214 = vmatpush2.bf16.msra.mxu0 0
    %1215 = vmatprep.subr.bf16.mxu0 0
    %1216 = vmatpush2.bf16.msra.mxu0 0
    %1217 = vmatprep.subr.bf16.mxu0 0
    %1218 = vmatpush2.bf16.msra.mxu0 0
    %1219 = vmatprep.subr.bf16.mxu0 0
    %1220 = vmatpush2.bf16.msra.mxu0 0
    %1221 = vmatprep.mubr.bf16.mxu0 0
    %1222 = vmatmul.mubr.bf16.gmra.mxu0 %v1187
    %v1223 = vpop.f32.mrf.mxu0
    %v1224 = vadd.f32 0.0, %v1223
    %v1225 = vpop.f32.mrf.mxu0
    %v1226 = vadd.f32 0.0, %v1225
    %v1227 = vpop.f32.mrf.mxu0
    %v1228 = vpop.f32.mrf.mxu0
    %1229 = vdwg.mxu0
    %v1230 = vadd.f32 %v1224, %v554
    %1232 = vrot.lane.b32.xlu0 %v1230, 127
    %v1233 = vpop.permute.xlu0 %1232
    %v1235 = vmax.f32 %v1230, %v1233
    %1236 = vrot.lane.b32.xlu0 %v1230, 126
    %v1237 = vpop.permute.xlu0 %1236
    %v1239 = vmax.f32 %v1235, %v1237
    %v1240 = vsub.f32 %v1230, %v1239
    %1242 = vrot.lane.b32.xlu0 %v1239, 1
    %v1243 = vpop.permute.xlu0 %1242
    %v1245 = vsub.f32 %v1230, %v1243
    %1246 = vrot.lane.b32.xlu0 %v1239, 2
    %v1247 = vpop.permute.xlu0 %1246
    %v1249 = vsub.f32 %v1230, %v1247
    %v1250 = vmul.f32 %v1240, 1.442695
    %v1251 = vpow.pop %v1250
    %v1252 = vmul.f32 %v1245, 1.442695
    %v1253 = vpow.pop %v1252
    %v1254 = vmul.f32 %v1249, 1.442695
    %v1255 = vpow.pop %v1254
    %1257 = vrot.lane.b32.xlu0 %v1253, 127
    %v1258 = vpop.permute.xlu0 %1257
    %v1260 = vadd.f32 %v1251, %v1258
    %1262 = vrot.lane.b32.xlu0 %v1255, 126
    %v1263 = vpop.permute.xlu0 %1262
    %v1265 = vadd.f32 %v1260, %v1263
    %v1266 = vstv %s1156
    %v1267 = vmul.f32 %v1265, %v1266
    %vm1268 = vcmp.lt.f32.partialorder %v1251, %v1267
    %v1269 = vsel %vm1268, 1, 0
    %vm1270 = vcmp.lt.f32.partialorder %v1260, %v1267
    %v1271 = vsel %vm1270, 1, 0
    %v1272 = vadd.s32 %v1269, %v1271
    %v1273 = vlog2.pop %v1265
    %v1274 = vmul.f32 %v1273, 0.6931472
    %vm1275 = vcmp.eq.s32.totalorder %v1272, 1
    %1277 = vrot.lane.b32.xlu0 %v1245, 127
    %v1278 = vpop.permute.xlu0 %1277
    %1281 = vrot.lane.b32.xlu0 %v1249, 126
    %v1282 = vpop.permute.xlu0 %1281
    %v1284 = vsel %vm1275, %v1278, %v1282
    %vm1285 = vcmp.eq.s32.totalorder %v1272, 0
    %v1286 = vsel %vm1285, %v1240, %v1284
    %v1287 = vsub.f32 %v1286, %v1274
    %v1288 = vmul.f32 %v1251, %v1240
    %v1289 = vmul.f32 %v1253, %v1245
    %1291 = vrot.lane.b32.xlu0 %v1289, 127
    %v1292 = vpop.permute.xlu0 %1291
    %v1294 = vadd.f32 %v1288, %v1292
    %v1295 = vmul.f32 %v1255, %v1249
    %1297 = vrot.lane.b32.xlu0 %v1295, 126
    %v1298 = vpop.permute.xlu0 %1297
    %v1300 = vadd.f32 %v1294, %v1298
    %v1301 = vrcp.pop %v1265
    %v1302 = vmul.f32 %v1300, %v1301
    %v1303 = vsub.f32 %v1274, %v1302
    %v1304 = vsel %vm1275, 1, 0
    %1305 = vset.pattern.permute.xlu0 0
    %1306 = vperm.xlu0 %1305, %v1304
    %v1307 = vpop.permute.xlu0 %1306
    %vm1308 = vcmp.eq.s32.totalorder %v1307, 1
    %v1309 = vsel %vm1308, %v637, %v639
    %v1310 = vsel %vm1285, 1, 0
    %1311 = vset.pattern.permute.xlu0 0
    %1312 = vperm.xlu0 %1311, %v1310
    %v1313 = vpop.permute.xlu0 %1312
    %vm1314 = vcmp.eq.s32.totalorder %v1313, 1
    %v1315 = vsel %vm1314, %v630, %v1309
    %vm1316 = vcmp.eq.s32.totalorder %v52, 6
    %1317 = vset.pattern.permute.xlu0 0
    %1318 = vperm.xlu0 %1317, %v1272
    %v1319 = vpop.permute.xlu0 %1318
    %v1320 = vsel %vm1316, %v1319, %v1153
    %v1321 = vadd.f32 %v1154, %v1287
    %v1322 = vadd.f32 %v1155, %v1303
    %s1323 = sld [smem:[#allocation2 + $0x7]]
    %v1324 = vadd.f32 %v1315, %v1226
    %v1325 = vxor.u32 %v1324, 2147483648
    %v1326 = vmul.f32 %v1325, 1.442695
    %v1327 = vpow.pop %v1326
    %v1328 = vadd.f32 %v1327, 1.0
    %v1329 = vrcp.pop %v1328
    %v1330 = vmul.f32 1.0, %v1329
    %v1331 = vtanh.pop %v1324
    %v1332 = vmul.f32 %v1330, %v1175
    %1334 = vrot.lane.b32.xlu0 %v1331, 64
    %v1335 = vpop.permute.xlu0 %1334
    %v1337 = vmul.f32 %v1330, %v1335
    %1339 = vrot.lane.b32.xlu0 %v1337, 32
    %v1340 = vpop.permute.xlu0 %1339
    %v1342 = vadd.f32 %v1332, %v1340
    %v1343 = vtanh.pop %v1342
    %1345 = vrot.lane.b32.xlu0 %v1343, 64
    %v1346 = vpop.permute.xlu0 %1345
    %v1348 = vmul.f32 %v1330, %v1346
    %v1349 = vpack.c.bf16 %v1348, %v1348
    %1351 = vrot.lane.b32.xlu0 %v1349, 32
    %v1352 = vpop.permute.xlu0 %1351
    %v1354 = vsel %vm108, %v1352, 0
    %1356 = vmatprep.subr.bf16.mxu0 0
    %1357 = vmatpush1.bf16.msra.mxu0 0
    %1358 = vmatprep.subr.bf16.mxu0 0
    %1359 = vmatpush1.bf16.msra.mxu0 0
    %1360 = vmatprep.subr.bf16.mxu0 0
    %1361 = vmatpush1.bf16.msra.mxu0 0
    %1362 = vmatprep.subr.bf16.mxu0 0
    %1363 = vmatpush1.bf16.msra.mxu0 0
    %1364 = vmatprep.subr.bf16.mxu0 0
    %1365 = vmatpush1.bf16.msra.mxu0 0
    %1366 = vmatprep.subr.bf16.mxu0 0
    %1367 = vmatpush1.bf16.msra.mxu0 0
    %1368 = vmatprep.subr.bf16.mxu0 %v303
    %1369 = vmatpush1.bf16.msra.mxu0 %v302
    %1370 = vmatprep.subr.bf16.mxu0 %v301
    %1371 = vmatpush1.bf16.msra.mxu0 %v300
    %1372 = vmatprep.subr.bf16.mxu0 0
    %1373 = vmatpush2.bf16.msra.mxu0 0
    %1374 = vmatprep.subr.bf16.mxu0 0
    %1375 = vmatpush2.bf16.msra.mxu0 0
    %1376 = vmatprep.subr.bf16.mxu0 0
    %1377 = vmatpush2.bf16.msra.mxu0 0
    %1378 = vmatprep.subr.bf16.mxu0 0
    %1379 = vmatpush2.bf16.msra.mxu0 0
    %1380 = vmatprep.subr.bf16.mxu0 0
    %1381 = vmatpush2.bf16.msra.mxu0 0
    %1382 = vmatprep.subr.bf16.mxu0 0
    %1383 = vmatpush2.bf16.msra.mxu0 0
    %1384 = vmatprep.subr.bf16.mxu0 0
    %1385 = vmatpush2.bf16.msra.mxu0 0
    %1386 = vmatprep.subr.bf16.mxu0 0
    %1387 = vmatpush2.bf16.msra.mxu0 0
    %1388 = vmatprep.mubr.bf16.mxu0 0
    %1389 = vmatmul.mubr.bf16.gmra.mxu0 %v1354
    %v1390 = vpop.f32.mrf.mxu0
    %v1391 = vadd.f32 0.0, %v1390
    %v1392 = vpop.f32.mrf.mxu0
    %v1393 = vadd.f32 0.0, %v1392
    %v1394 = vpop.f32.mrf.mxu0
    %v1395 = vpop.f32.mrf.mxu0
    %1396 = vdwg.mxu0
    %v1397 = vadd.f32 %v1391, %v353
    %1399 = vrot.lane.b32.xlu0 %v1397, 127
    %v1400 = vpop.permute.xlu0 %1399
    %v1402 = vmax.f32 %v1397, %v1400
    %1403 = vrot.lane.b32.xlu0 %v1397, 126
    %v1404 = vpop.permute.xlu0 %1403
    %v1406 = vmax.f32 %v1402, %v1404
    %v1407 = vsub.f32 %v1397, %v1406
    %1409 = vrot.lane.b32.xlu0 %v1406, 1
    %v1410 = vpop.permute.xlu0 %1409
    %v1412 = vsub.f32 %v1397, %v1410
    %1413 = vrot.lane.b32.xlu0 %v1406, 2
    %v1414 = vpop.permute.xlu0 %1413
    %v1416 = vsub.f32 %v1397, %v1414
    %v1417 = vmul.f32 %v1407, 1.442695
    %v1418 = vpow.pop %v1417
    %v1419 = vmul.f32 %v1412, 1.442695
    %v1420 = vpow.pop %v1419
    %v1421 = vmul.f32 %v1416, 1.442695
    %v1422 = vpow.pop %v1421
    %1424 = vrot.lane.b32.xlu0 %v1420, 127
    %v1425 = vpop.permute.xlu0 %1424
    %v1427 = vadd.f32 %v1418, %v1425
    %1429 = vrot.lane.b32.xlu0 %v1422, 126
    %v1430 = vpop.permute.xlu0 %1429
    %v1432 = vadd.f32 %v1427, %v1430
    %v1433 = vstv %s1323
    %v1434 = vmul.f32 %v1432, %v1433
    %vm1435 = vcmp.lt.f32.partialorder %v1418, %v1434
    %v1436 = vsel %vm1435, 1, 0
    %vm1437 = vcmp.lt.f32.partialorder %v1427, %v1434
    %v1438 = vsel %vm1437, 1, 0
    %v1439 = vadd.s32 %v1436, %v1438
    %v1440 = vlog2.pop %v1432
    %v1441 = vmul.f32 %v1440, 0.6931472
    %vm1442 = vcmp.eq.s32.totalorder %v1439, 1
    %1444 = vrot.lane.b32.xlu0 %v1412, 127
    %v1445 = vpop.permute.xlu0 %1444
    %1448 = vrot.lane.b32.xlu0 %v1416, 126
    %v1449 = vpop.permute.xlu0 %1448
    %v1451 = vsel %vm1442, %v1445, %v1449
    %vm1452 = vcmp.eq.s32.totalorder %v1439, 0
    %v1453 = vsel %vm1452, %v1407, %v1451
    %v1454 = vsub.f32 %v1453, %v1441
    %v1455 = vmul.f32 %v1418, %v1407
    %v1456 = vmul.f32 %v1420, %v1412
    %1458 = vrot.lane.b32.xlu0 %v1456, 127
    %v1459 = vpop.permute.xlu0 %1458
    %v1461 = vadd.f32 %v1455, %v1459
    %v1462 = vmul.f32 %v1422, %v1416
    %1464 = vrot.lane.b32.xlu0 %v1462, 126
    %v1465 = vpop.permute.xlu0 %1464
    %v1467 = vadd.f32 %v1461, %v1465
    %v1468 = vrcp.pop %v1432
    %v1469 = vmul.f32 %v1467, %v1468
    %v1470 = vsub.f32 %v1441, %v1469
    %v1471 = vsel %vm1442, 1, 0
    %1472 = vset.pattern.permute.xlu0 0
    %1473 = vperm.xlu0 %1472, %v1471
    %v1474 = vpop.permute.xlu0 %1473
    %vm1475 = vcmp.eq.s32.totalorder %v1474, 1
    %v1476 = vsel %vm1475, %v436, %v438
    %v1477 = vsel %vm1452, 1, 0
    %1478 = vset.pattern.permute.xlu0 0
    %1479 = vperm.xlu0 %1478, %v1477
    %v1480 = vpop.permute.xlu0 %1479
    %vm1481 = vcmp.eq.s32.totalorder %v1480, 1
    %v1482 = vsel %vm1481, %v429, %v1476
    %vm1483 = vcmp.eq.s32.totalorder %v52, 7
    %1484 = vset.pattern.permute.xlu0 0
    %1485 = vperm.xlu0 %1484, %v1439
    %v1486 = vpop.permute.xlu0 %1485
    %v1487 = vsel %vm1483, %v1486, %v1320
    %v1488 = vadd.f32 %v1321, %v1454
    %v1489 = vadd.f32 %v1322, %v1470
    %s1490 = sld [smem:[#allocation2 + $0x8]]
    %v1491 = vadd.f32 %v1482, %v1393
    %v1492 = vxor.u32 %v1491, 2147483648
    %v1493 = vmul.f32 %v1492, 1.442695
    %v1494 = vpow.pop %v1493
    %v1495 = vadd.f32 %v1494, 1.0
    %v1496 = vrcp.pop %v1495
    %v1497 = vmul.f32 1.0, %v1496
    %v1498 = vtanh.pop %v1491
    %v1499 = vmul.f32 %v1497, %v1342
    %1501 = vrot.lane.b32.xlu0 %v1498, 64
    %v1502 = vpop.permute.xlu0 %1501
    %v1504 = vmul.f32 %v1497, %v1502
    %1506 = vrot.lane.b32.xlu0 %v1504, 32
    %v1507 = vpop.permute.xlu0 %1506
    %v1509 = vadd.f32 %v1499, %v1507
    %v1510 = vtanh.pop %v1509
    %1512 = vrot.lane.b32.xlu0 %v1510, 64
    %v1513 = vpop.permute.xlu0 %1512
    %v1515 = vmul.f32 %v1497, %v1513
    %v1516 = vpack.c.bf16 %v1515, %v1515
    %1518 = vrot.lane.b32.xlu0 %v1516, 32
    %v1519 = vpop.permute.xlu0 %1518
    %v1521 = vsel %vm108, %v1519, 0
    %1523 = vmatprep.subr.bf16.mxu0 0
    %1524 = vmatpush1.bf16.msra.mxu0 0
    %1525 = vmatprep.subr.bf16.mxu0 0
    %1526 = vmatpush1.bf16.msra.mxu0 0
    %1527 = vmatprep.subr.bf16.mxu0 0
    %1528 = vmatpush1.bf16.msra.mxu0 0
    %1529 = vmatprep.subr.bf16.mxu0 0
    %1530 = vmatpush1.bf16.msra.mxu0 0
    %1531 = vmatprep.subr.bf16.mxu0 0
    %1532 = vmatpush1.bf16.msra.mxu0 0
    %1533 = vmatprep.subr.bf16.mxu0 0
    %1534 = vmatpush1.bf16.msra.mxu0 0
    %1535 = vmatprep.subr.bf16.mxu0 %v504
    %1536 = vmatpush1.bf16.msra.mxu0 %v503
    %1537 = vmatprep.subr.bf16.mxu0 %v502
    %1538 = vmatpush1.bf16.msra.mxu0 %v501
    %1539 = vmatprep.subr.bf16.mxu0 0
    %1540 = vmatpush2.bf16.msra.mxu0 0
    %1541 = vmatprep.subr.bf16.mxu0 0
    %1542 = vmatpush2.bf16.msra.mxu0 0
    %1543 = vmatprep.subr.bf16.mxu0 0
    %1544 = vmatpush2.bf16.msra.mxu0 0
    %1545 = vmatprep.subr.bf16.mxu0 0
    %1546 = vmatpush2.bf16.msra.mxu0 0
    %1547 = vmatprep.subr.bf16.mxu0 0
    %1548 = vmatpush2.bf16.msra.mxu0 0
    %1549 = vmatprep.subr.bf16.mxu0 0
    %1550 = vmatpush2.bf16.msra.mxu0 0
    %1551 = vmatprep.subr.bf16.mxu0 0
    %1552 = vmatpush2.bf16.msra.mxu0 0
    %1553 = vmatprep.subr.bf16.mxu0 0
    %1554 = vmatpush2.bf16.msra.mxu0 0
    %1555 = vmatprep.mubr.bf16.mxu0 0
    %1556 = vmatmul.mubr.bf16.gmra.mxu0 %v1521
    %v1557 = vpop.f32.mrf.mxu0
    %v1558 = vadd.f32 0.0, %v1557
    %v1559 = vpop.f32.mrf.mxu0
    %v1560 = vadd.f32 0.0, %v1559
    %v1561 = vpop.f32.mrf.mxu0
    %v1562 = vpop.f32.mrf.mxu0
    %1563 = vdwg.mxu0
    %v1564 = vadd.f32 %v1558, %v554
    %1566 = vrot.lane.b32.xlu0 %v1564, 127
    %v1567 = vpop.permute.xlu0 %1566
    %v1569 = vmax.f32 %v1564, %v1567
    %1570 = vrot.lane.b32.xlu0 %v1564, 126
    %v1571 = vpop.permute.xlu0 %1570
    %v1573 = vmax.f32 %v1569, %v1571
    %v1574 = vsub.f32 %v1564, %v1573
    %1576 = vrot.lane.b32.xlu0 %v1573, 1
    %v1577 = vpop.permute.xlu0 %1576
    %v1579 = vsub.f32 %v1564, %v1577
    %1580 = vrot.lane.b32.xlu0 %v1573, 2
    %v1581 = vpop.permute.xlu0 %1580
    %v1583 = vsub.f32 %v1564, %v1581
    %v1584 = vmul.f32 %v1574, 1.442695
    %v1585 = vpow.pop %v1584
    %v1586 = vmul.f32 %v1579, 1.442695
    %v1587 = vpow.pop %v1586
    %v1588 = vmul.f32 %v1583, 1.442695
    %v1589 = vpow.pop %v1588
    %1591 = vrot.lane.b32.xlu0 %v1587, 127
    %v1592 = vpop.permute.xlu0 %1591
    %v1594 = vadd.f32 %v1585, %v1592
    %1596 = vrot.lane.b32.xlu0 %v1589, 126
    %v1597 = vpop.permute.xlu0 %1596
    %v1599 = vadd.f32 %v1594, %v1597
    %v1600 = vstv %s1490
    %v1601 = vmul.f32 %v1599, %v1600
    %vm1602 = vcmp.lt.f32.partialorder %v1585, %v1601
    %v1603 = vsel %vm1602, 1, 0
    %vm1604 = vcmp.lt.f32.partialorder %v1594, %v1601
    %v1605 = vsel %vm1604, 1, 0
    %v1606 = vadd.s32 %v1603, %v1605
    %v1607 = vlog2.pop %v1599
    %v1608 = vmul.f32 %v1607, 0.6931472
    %vm1609 = vcmp.eq.s32.totalorder %v1606, 1
    %1611 = vrot.lane.b32.xlu0 %v1579, 127
    %v1612 = vpop.permute.xlu0 %1611
    %1615 = vrot.lane.b32.xlu0 %v1583, 126
    %v1616 = vpop.permute.xlu0 %1615
    %v1618 = vsel %vm1609, %v1612, %v1616
    %vm1619 = vcmp.eq.s32.totalorder %v1606, 0
    %v1620 = vsel %vm1619, %v1574, %v1618
    %v1621 = vsub.f32 %v1620, %v1608
    %v1622 = vmul.f32 %v1585, %v1574
    %v1623 = vmul.f32 %v1587, %v1579
    %1625 = vrot.lane.b32.xlu0 %v1623, 127
    %v1626 = vpop.permute.xlu0 %1625
    %v1628 = vadd.f32 %v1622, %v1626
    %v1629 = vmul.f32 %v1589, %v1583
    %1631 = vrot.lane.b32.xlu0 %v1629, 126
    %v1632 = vpop.permute.xlu0 %1631
    %v1634 = vadd.f32 %v1628, %v1632
    %v1635 = vrcp.pop %v1599
    %v1636 = vmul.f32 %v1634, %v1635
    %v1637 = vsub.f32 %v1608, %v1636
    %v1638 = vsel %vm1609, 1, 0
    %1639 = vset.pattern.permute.xlu0 0
    %1640 = vperm.xlu0 %1639, %v1638
    %v1641 = vpop.permute.xlu0 %1640
    %vm1642 = vcmp.eq.s32.totalorder %v1641, 1
    %v1643 = vsel %vm1642, %v637, %v639
    %v1644 = vsel %vm1619, 1, 0
    %1645 = vset.pattern.permute.xlu0 0
    %1646 = vperm.xlu0 %1645, %v1644
    %v1647 = vpop.permute.xlu0 %1646
    %vm1648 = vcmp.eq.s32.totalorder %v1647, 1
    %v1649 = vsel %vm1648, %v630, %v1643
    %vm1650 = vcmp.eq.s32.totalorder %v52, 8
    %1651 = vset.pattern.permute.xlu0 0
    %1652 = vperm.xlu0 %1651, %v1606
    %v1653 = vpop.permute.xlu0 %1652
    %v1654 = vsel %vm1650, %v1653, %v1487
    %v1655 = vadd.f32 %v1488, %v1621
    %v1656 = vadd.f32 %v1489, %v1637
    %s1657 = sld [smem:[#allocation2 + $0x9]]
    %v1658 = vadd.f32 %v1649, %v1560
    %v1659 = vxor.u32 %v1658, 2147483648
    %v1660 = vmul.f32 %v1659, 1.442695
    %v1661 = vpow.pop %v1660
    %v1662 = vadd.f32 %v1661, 1.0
    %v1663 = vrcp.pop %v1662
    %v1664 = vmul.f32 1.0, %v1663
    %v1665 = vtanh.pop %v1658
    %v1666 = vmul.f32 %v1664, %v1509
    %1668 = vrot.lane.b32.xlu0 %v1665, 64
    %v1669 = vpop.permute.xlu0 %1668
    %v1671 = vmul.f32 %v1664, %v1669
    %1673 = vrot.lane.b32.xlu0 %v1671, 32
    %v1674 = vpop.permute.xlu0 %1673
    %v1676 = vadd.f32 %v1666, %v1674
    %v1677 = vtanh.pop %v1676
    %1679 = vrot.lane.b32.xlu0 %v1677, 64
    %v1680 = vpop.permute.xlu0 %1679
    %v1682 = vmul.f32 %v1664, %v1680
    %v1683 = vpack.c.bf16 %v1682, %v1682
    %1685 = vrot.lane.b32.xlu0 %v1683, 32
    %v1686 = vpop.permute.xlu0 %1685
    %v1688 = vsel %vm108, %v1686, 0
    %1690 = vmatprep.subr.bf16.mxu0 0
    %1691 = vmatpush1.bf16.msra.mxu0 0
    %1692 = vmatprep.subr.bf16.mxu0 0
    %1693 = vmatpush1.bf16.msra.mxu0 0
    %1694 = vmatprep.subr.bf16.mxu0 0
    %1695 = vmatpush1.bf16.msra.mxu0 0
    %1696 = vmatprep.subr.bf16.mxu0 0
    %1697 = vmatpush1.bf16.msra.mxu0 0
    %1698 = vmatprep.subr.bf16.mxu0 0
    %1699 = vmatpush1.bf16.msra.mxu0 0
    %1700 = vmatprep.subr.bf16.mxu0 0
    %1701 = vmatpush1.bf16.msra.mxu0 0
    %1702 = vmatprep.subr.bf16.mxu0 %v103
    %1703 = vmatpush1.bf16.msra.mxu0 %v102
    %1704 = vmatprep.subr.bf16.mxu0 %v101
    %1705 = vmatpush1.bf16.msra.mxu0 %v100
    %1706 = vmatprep.subr.bf16.mxu0 0
    %1707 = vmatpush2.bf16.msra.mxu0 0
    %1708 = vmatprep.subr.bf16.mxu0 0
    %1709 = vmatpush2.bf16.msra.mxu0 0
    %1710 = vmatprep.subr.bf16.mxu0 0
    %1711 = vmatpush2.bf16.msra.mxu0 0
    %1712 = vmatprep.subr.bf16.mxu0 0
    %1713 = vmatpush2.bf16.msra.mxu0 0
    %1714 = vmatprep.subr.bf16.mxu0 0
    %1715 = vmatpush2.bf16.msra.mxu0 0
    %1716 = vmatprep.subr.bf16.mxu0 0
    %1717 = vmatpush2.bf16.msra.mxu0 0
    %1718 = vmatprep.subr.bf16.mxu0 0
    %1719 = vmatpush2.bf16.msra.mxu0 0
    %1720 = vmatprep.subr.bf16.mxu0 0
    %1721 = vmatpush2.bf16.msra.mxu0 0
    %1722 = vmatprep.mubr.bf16.mxu0 0
    %1723 = vmatmul.mubr.bf16.gmra.mxu0 %v1688
    %v1724 = vpop.f32.mrf.mxu0
    %v1725 = vadd.f32 0.0, %v1724
    %v1726 = vpop.f32.mrf.mxu0
    %v1727 = vadd.f32 0.0, %v1726
    %v1728 = vpop.f32.mrf.mxu0
    %v1729 = vpop.f32.mrf.mxu0
    %1730 = vdwg.mxu0
    %v1731 = vadd.f32 %v1725, %v153
    %1733 = vrot.lane.b32.xlu0 %v1731, 127
    %v1734 = vpop.permute.xlu0 %1733
    %v1736 = vmax.f32 %v1731, %v1734
    %1737 = vrot.lane.b32.xlu0 %v1731, 126
    %v1738 = vpop.permute.xlu0 %1737
    %v1740 = vmax.f32 %v1736, %v1738
    %v1741 = vsub.f32 %v1731, %v1740
    %1743 = vrot.lane.b32.xlu0 %v1740, 1
    %v1744 = vpop.permute.xlu0 %1743
    %v1746 = vsub.f32 %v1731, %v1744
    %1747 = vrot.lane.b32.xlu0 %v1740, 2
    %v1748 = vpop.permute.xlu0 %1747
    %v1750 = vsub.f32 %v1731, %v1748
    %v1751 = vmul.f32 %v1741, 1.442695
    %v1752 = vpow.pop %v1751
    %v1753 = vmul.f32 %v1746, 1.442695
    %v1754 = vpow.pop %v1753
    %v1755 = vmul.f32 %v1750, 1.442695
    %v1756 = vpow.pop %v1755
    %1758 = vrot.lane.b32.xlu0 %v1754, 127
    %v1759 = vpop.permute.xlu0 %1758
    %v1761 = vadd.f32 %v1752, %v1759
    %1763 = vrot.lane.b32.xlu0 %v1756, 126
    %v1764 = vpop.permute.xlu0 %1763
    %v1766 = vadd.f32 %v1761, %v1764
    %v1767 = vstv %s1657
    %v1768 = vmul.f32 %v1766, %v1767
    %vm1769 = vcmp.lt.f32.partialorder %v1752, %v1768
    %v1770 = vsel %vm1769, 1, 0
    %vm1771 = vcmp.lt.f32.partialorder %v1761, %v1768
    %v1772 = vsel %vm1771, 1, 0
    %v1773 = vadd.s32 %v1770, %v1772
    %v1774 = vlog2.pop %v1766
    %v1775 = vmul.f32 %v1774, 0.6931472
    %vm1776 = vcmp.eq.s32.totalorder %v1773, 1
    %1778 = vrot.lane.b32.xlu0 %v1746, 127
    %v1779 = vpop.permute.xlu0 %1778
    %1782 = vrot.lane.b32.xlu0 %v1750, 126
    %v1783 = vpop.permute.xlu0 %1782
    %v1785 = vsel %vm1776, %v1779, %v1783
    %vm1786 = vcmp.eq.s32.totalorder %v1773, 0
    %v1787 = vsel %vm1786, %v1741, %v1785
    %v1788 = vsub.f32 %v1787, %v1775
    %v1789 = vmul.f32 %v1752, %v1741
    %v1790 = vmul.f32 %v1754, %v1746
    %1792 = vrot.lane.b32.xlu0 %v1790, 127
    %v1793 = vpop.permute.xlu0 %1792
    %v1795 = vadd.f32 %v1789, %v1793
    %v1796 = vmul.f32 %v1756, %v1750
    %1798 = vrot.lane.b32.xlu0 %v1796, 126
    %v1799 = vpop.permute.xlu0 %1798
    %v1801 = vadd.f32 %v1795, %v1799
    %v1802 = vrcp.pop %v1766
    %v1803 = vmul.f32 %v1801, %v1802
    %v1804 = vsub.f32 %v1775, %v1803
    %v1805 = vsel %vm1776, 1, 0
    %1806 = vset.pattern.permute.xlu0 0
    %1807 = vperm.xlu0 %1806, %v1805
    %v1808 = vpop.permute.xlu0 %1807
    %vm1809 = vcmp.eq.s32.totalorder %v1808, 1
    %v1810 = vsel %vm1809, %v235, %v237
    %v1811 = vsel %vm1786, 1, 0
    %1812 = vset.pattern.permute.xlu0 0
    %1813 = vperm.xlu0 %1812, %v1811
    %v1814 = vpop.permute.xlu0 %1813
    %vm1815 = vcmp.eq.s32.totalorder %v1814, 1
    %v1816 = vsel %vm1815, %v228, %v1810
    %vm1817 = vcmp.eq.s32.totalorder %v52, 9
    %1818 = vset.pattern.permute.xlu0 0
    %1819 = vperm.xlu0 %1818, %v1773
    %v1820 = vpop.permute.xlu0 %1819
    %v1821 = vsel %vm1817, %v1820, %v1654
    %v1822 = vadd.f32 %v1655, %v1788
    %v1823 = vadd.f32 %v1656, %v1804
    %s1824 = sld [smem:[#allocation2 + $0xa]]
    %v1825 = vadd.f32 %v1816, %v1727
    %v1826 = vxor.u32 %v1825, 2147483648
    %v1827 = vmul.f32 %v1826, 1.442695
    %v1828 = vpow.pop %v1827
    %v1829 = vadd.f32 %v1828, 1.0
    %v1830 = vrcp.pop %v1829
    %v1831 = vmul.f32 1.0, %v1830
    %v1832 = vtanh.pop %v1825
    %v1833 = vmul.f32 %v1831, %v1676
    %1835 = vrot.lane.b32.xlu0 %v1832, 64
    %v1836 = vpop.permute.xlu0 %1835
    %v1838 = vmul.f32 %v1831, %v1836
    %1840 = vrot.lane.b32.xlu0 %v1838, 32
    %v1841 = vpop.permute.xlu0 %1840
    %v1843 = vadd.f32 %v1833, %v1841
    %v1844 = vtanh.pop %v1843
    %1846 = vrot.lane.b32.xlu0 %v1844, 64
    %v1847 = vpop.permute.xlu0 %1846
    %v1849 = vmul.f32 %v1831, %v1847
    %v1850 = vpack.c.bf16 %v1849, %v1849
    %1852 = vrot.lane.b32.xlu0 %v1850, 32
    %v1853 = vpop.permute.xlu0 %1852
    %v1855 = vsel %vm108, %v1853, 0
    %1857 = vmatprep.subr.bf16.mxu0 0
    %1858 = vmatpush1.bf16.msra.mxu0 0
    %1859 = vmatprep.subr.bf16.mxu0 0
    %1860 = vmatpush1.bf16.msra.mxu0 0
    %1861 = vmatprep.subr.bf16.mxu0 0
    %1862 = vmatpush1.bf16.msra.mxu0 0
    %1863 = vmatprep.subr.bf16.mxu0 0
    %1864 = vmatpush1.bf16.msra.mxu0 0
    %1865 = vmatprep.subr.bf16.mxu0 0
    %1866 = vmatpush1.bf16.msra.mxu0 0
    %1867 = vmatprep.subr.bf16.mxu0 0
    %1868 = vmatpush1.bf16.msra.mxu0 0
    %1869 = vmatprep.subr.bf16.mxu0 %v303
    %1870 = vmatpush1.bf16.msra.mxu0 %v302
    %1871 = vmatprep.subr.bf16.mxu0 %v301
    %1872 = vmatpush1.bf16.msra.mxu0 %v300
    %1873 = vmatprep.subr.bf16.mxu0 0
    %1874 = vmatpush2.bf16.msra.mxu0 0
    %1875 = vmatprep.subr.bf16.mxu0 0
    %1876 = vmatpush2.bf16.msra.mxu0 0
    %1877 = vmatprep.subr.bf16.mxu0 0
    %1878 = vmatpush2.bf16.msra.mxu0 0
    %1879 = vmatprep.subr.bf16.mxu0 0
    %1880 = vmatpush2.bf16.msra.mxu0 0
    %1881 = vmatprep.subr.bf16.mxu0 0
    %1882 = vmatpush2.bf16.msra.mxu0 0
    %1883 = vmatprep.subr.bf16.mxu0 0
    %1884 = vmatpush2.bf16.msra.mxu0 0
    %1885 = vmatprep.subr.bf16.mxu0 0
    %1886 = vmatpush2.bf16.msra.mxu0 0
    %1887 = vmatprep.subr.bf16.mxu0 0
    %1888 = vmatpush2.bf16.msra.mxu0 0
    %1889 = vmatprep.mubr.bf16.mxu0 0
    %1890 = vmatmul.mubr.bf16.gmra.mxu0 %v1855
    %v1891 = vpop.f32.mrf.mxu0
    %v1892 = vadd.f32 0.0, %v1891
    %v1893 = vpop.f32.mrf.mxu0
    %v1894 = vadd.f32 0.0, %v1893
    %v1895 = vpop.f32.mrf.mxu0
    %v1896 = vpop.f32.mrf.mxu0
    %1897 = vdwg.mxu0
    %v1898 = vadd.f32 %v1892, %v353
    %1900 = vrot.lane.b32.xlu0 %v1898, 127
    %v1901 = vpop.permute.xlu0 %1900
    %v1903 = vmax.f32 %v1898, %v1901
    %1904 = vrot.lane.b32.xlu0 %v1898, 126
    %v1905 = vpop.permute.xlu0 %1904
    %v1907 = vmax.f32 %v1903, %v1905
    %v1908 = vsub.f32 %v1898, %v1907
    %1910 = vrot.lane.b32.xlu0 %v1907, 1
    %v1911 = vpop.permute.xlu0 %1910
    %v1913 = vsub.f32 %v1898, %v1911
    %1914 = vrot.lane.b32.xlu0 %v1907, 2
    %v1915 = vpop.permute.xlu0 %1914
    %v1917 = vsub.f32 %v1898, %v1915
    %v1918 = vmul.f32 %v1908, 1.442695
    %v1919 = vpow.pop %v1918
    %v1920 = vmul.f32 %v1913, 1.442695
    %v1921 = vpow.pop %v1920
    %v1922 = vmul.f32 %v1917, 1.442695
    %v1923 = vpow.pop %v1922
    %1925 = vrot.lane.b32.xlu0 %v1921, 127
    %v1926 = vpop.permute.xlu0 %1925
    %v1928 = vadd.f32 %v1919, %v1926
    %1930 = vrot.lane.b32.xlu0 %v1923, 126
    %v1931 = vpop.permute.xlu0 %1930
    %v1933 = vadd.f32 %v1928, %v1931
    %v1934 = vstv %s1824
    %v1935 = vmul.f32 %v1933, %v1934
    %vm1936 = vcmp.lt.f32.partialorder %v1919, %v1935
    %v1937 = vsel %vm1936, 1, 0
    %vm1938 = vcmp.lt.f32.partialorder %v1928, %v1935
    %v1939 = vsel %vm1938, 1, 0
    %v1940 = vadd.s32 %v1937, %v1939
    %v1941 = vlog2.pop %v1933
    %v1942 = vmul.f32 %v1941, 0.6931472
    %vm1943 = vcmp.eq.s32.totalorder %v1940, 1
    %1945 = vrot.lane.b32.xlu0 %v1913, 127
    %v1946 = vpop.permute.xlu0 %1945
    %1949 = vrot.lane.b32.xlu0 %v1917, 126
    %v1950 = vpop.permute.xlu0 %1949
    %v1952 = vsel %vm1943, %v1946, %v1950
    %vm1953 = vcmp.eq.s32.totalorder %v1940, 0
    %v1954 = vsel %vm1953, %v1908, %v1952
    %v1955 = vsub.f32 %v1954, %v1942
    %v1956 = vmul.f32 %v1919, %v1908
    %v1957 = vmul.f32 %v1921, %v1913
    %1959 = vrot.lane.b32.xlu0 %v1957, 127
    %v1960 = vpop.permute.xlu0 %1959
    %v1962 = vadd.f32 %v1956, %v1960
    %v1963 = vmul.f32 %v1923, %v1917
    %1965 = vrot.lane.b32.xlu0 %v1963, 126
    %v1966 = vpop.permute.xlu0 %1965
    %v1968 = vadd.f32 %v1962, %v1966
    %v1969 = vrcp.pop %v1933
    %v1970 = vmul.f32 %v1968, %v1969
    %v1971 = vsub.f32 %v1942, %v1970
    %v1972 = vsel %vm1943, 1, 0
    %1973 = vset.pattern.permute.xlu0 0
    %1974 = vperm.xlu0 %1973, %v1972
    %v1975 = vpop.permute.xlu0 %1974
    %vm1976 = vcmp.eq.s32.totalorder %v1975, 1
    %v1977 = vsel %vm1976, %v436, %v438
    %v1978 = vsel %vm1953, 1, 0
    %1979 = vset.pattern.permute.xlu0 0
    %1980 = vperm.xlu0 %1979, %v1978
    %v1981 = vpop.permute.xlu0 %1980
    %vm1982 = vcmp.eq.s32.totalorder %v1981, 1
    %v1983 = vsel %vm1982, %v429, %v1977
    %vm1984 = vcmp.eq.s32.totalorder %v52, 10
    %1985 = vset.pattern.permute.xlu0 0
    %1986 = vperm.xlu0 %1985, %v1940
    %v1987 = vpop.permute.xlu0 %1986
    %v1988 = vsel %vm1984, %v1987, %v1821
    %v1989 = vadd.f32 %v1822, %v1955
    %v1990 = vadd.f32 %v1823, %v1971
    %s1991 = sld [smem:[#allocation2 + $0xb]]
    %v1992 = vadd.f32 %v1983, %v1894
    %v1993 = vxor.u32 %v1992, 2147483648
    %v1994 = vmul.f32 %v1993, 1.442695
    %v1995 = vpow.pop %v1994
    %v1996 = vadd.f32 %v1995, 1.0
    %v1997 = vrcp.pop %v1996
    %v1998 = vmul.f32 1.0, %v1997
    %v1999 = vtanh.pop %v1992
    %v2000 = vmul.f32 %v1998, %v1843
    %2002 = vrot.lane.b32.xlu0 %v1999, 64
    %v2003 = vpop.permute.xlu0 %2002
    %v2005 = vmul.f32 %v1998, %v2003
    %2007 = vrot.lane.b32.xlu0 %v2005, 32
    %v2008 = vpop.permute.xlu0 %2007
    %v2010 = vadd.f32 %v2000, %v2008
    %v2011 = vtanh.pop %v2010
    %2013 = vrot.lane.b32.xlu0 %v2011, 64
    %v2014 = vpop.permute.xlu0 %2013
    %v2016 = vmul.f32 %v1998, %v2014
    %v2017 = vpack.c.bf16 %v2016, %v2016
    %2019 = vrot.lane.b32.xlu0 %v2017, 32
    %v2020 = vpop.permute.xlu0 %2019
    %v2022 = vsel %vm108, %v2020, 0
    %2024 = vmatprep.subr.bf16.mxu0 0
    %2025 = vmatpush1.bf16.msra.mxu0 0
    %2026 = vmatprep.subr.bf16.mxu0 0
    %2027 = vmatpush1.bf16.msra.mxu0 0
    %2028 = vmatprep.subr.bf16.mxu0 0
    %2029 = vmatpush1.bf16.msra.mxu0 0
    %2030 = vmatprep.subr.bf16.mxu0 0
    %2031 = vmatpush1.bf16.msra.mxu0 0
    %2032 = vmatprep.subr.bf16.mxu0 0
    %2033 = vmatpush1.bf16.msra.mxu0 0
    %2034 = vmatprep.subr.bf16.mxu0 0
    %2035 = vmatpush1.bf16.msra.mxu0 0
    %2036 = vmatprep.subr.bf16.mxu0 %v504
    %2037 = vmatpush1.bf16.msra.mxu0 %v503
    %2038 = vmatprep.subr.bf16.mxu0 %v502
    %2039 = vmatpush1.bf16.msra.mxu0 %v501
    %2040 = vmatprep.subr.bf16.mxu0 0
    %2041 = vmatpush2.bf16.msra.mxu0 0
    %2042 = vmatprep.subr.bf16.mxu0 0
    %2043 = vmatpush2.bf16.msra.mxu0 0
    %2044 = vmatprep.subr.bf16.mxu0 0
    %2045 = vmatpush2.bf16.msra.mxu0 0
    %2046 = vmatprep.subr.bf16.mxu0 0
    %2047 = vmatpush2.bf16.msra.mxu0 0
    %2048 = vmatprep.subr.bf16.mxu0 0
    %2049 = vmatpush2.bf16.msra.mxu0 0
    %2050 = vmatprep.subr.bf16.mxu0 0
    %2051 = vmatpush2.bf16.msra.mxu0 0
    %2052 = vmatprep.subr.bf16.mxu0 0
    %2053 = vmatpush2.bf16.msra.mxu0 0
    %2054 = vmatprep.subr.bf16.mxu0 0
    %2055 = vmatpush2.bf16.msra.mxu0 0
    %2056 = vmatprep.mubr.bf16.mxu0 0
    %2057 = vmatmul.mubr.bf16.gmra.mxu0 %v2022
    %v2058 = vpop.f32.mrf.mxu0
    %v2059 = vadd.f32 0.0, %v2058
    %v2060 = vpop.f32.mrf.mxu0
    %v2061 = vadd.f32 0.0, %v2060
    %v2062 = vpop.f32.mrf.mxu0
    %v2063 = vpop.f32.mrf.mxu0
    %2064 = vdwg.mxu0
    %v2065 = vadd.f32 %v2059, %v554
    %2067 = vrot.lane.b32.xlu0 %v2065, 127
    %v2068 = vpop.permute.xlu0 %2067
    %v2070 = vmax.f32 %v2065, %v2068
    %2071 = vrot.lane.b32.xlu0 %v2065, 126
    %v2072 = vpop.permute.xlu0 %2071
    %v2074 = vmax.f32 %v2070, %v2072
    %v2075 = vsub.f32 %v2065, %v2074
    %2077 = vrot.lane.b32.xlu0 %v2074, 1
    %v2078 = vpop.permute.xlu0 %2077
    %v2080 = vsub.f32 %v2065, %v2078
    %2081 = vrot.lane.b32.xlu0 %v2074, 2
    %v2082 = vpop.permute.xlu0 %2081
    %v2084 = vsub.f32 %v2065, %v2082
    %v2085 = vmul.f32 %v2075, 1.442695
    %v2086 = vpow.pop %v2085
    %v2087 = vmul.f32 %v2080, 1.442695
    %v2088 = vpow.pop %v2087
    %v2089 = vmul.f32 %v2084, 1.442695
    %v2090 = vpow.pop %v2089
    %2092 = vrot.lane.b32.xlu0 %v2088, 127
    %v2093 = vpop.permute.xlu0 %2092
    %v2095 = vadd.f32 %v2086, %v2093
    %2097 = vrot.lane.b32.xlu0 %v2090, 126
    %v2098 = vpop.permute.xlu0 %2097
    %v2100 = vadd.f32 %v2095, %v2098
    %v2101 = vstv %s1991
    %v2102 = vmul.f32 %v2100, %v2101
    %vm2103 = vcmp.lt.f32.partialorder %v2086, %v2102
    %v2104 = vsel %vm2103, 1, 0
    %vm2105 = vcmp.lt.f32.partialorder %v2095, %v2102
    %v2106 = vsel %vm2105, 1, 0
    %v2107 = vadd.s32 %v2104, %v2106
    %v2108 = vlog2.pop %v2100
    %v2109 = vmul.f32 %v2108, 0.6931472
    %vm2110 = vcmp.eq.s32.totalorder %v2107, 1
    %2112 = vrot.lane.b32.xlu0 %v2080, 127
    %v2113 = vpop.permute.xlu0 %2112
    %2116 = vrot.lane.b32.xlu0 %v2084, 126
    %v2117 = vpop.permute.xlu0 %2116
    %v2119 = vsel %vm2110, %v2113, %v2117
    %vm2120 = vcmp.eq.s32.totalorder %v2107, 0
    %v2121 = vsel %vm2120, %v2075, %v2119
    %v2122 = vsub.f32 %v2121, %v2109
    %v2123 = vmul.f32 %v2086, %v2075
    %v2124 = vmul.f32 %v2088, %v2080
    %2126 = vrot.lane.b32.xlu0 %v2124, 127
    %v2127 = vpop.permute.xlu0 %2126
    %v2129 = vadd.f32 %v2123, %v2127
    %v2130 = vmul.f32 %v2090, %v2084
    %2132 = vrot.lane.b32.xlu0 %v2130, 126
    %v2133 = vpop.permute.xlu0 %2132
    %v2135 = vadd.f32 %v2129, %v2133
    %v2136 = vrcp.pop %v2100
    %v2137 = vmul.f32 %v2135, %v2136
    %v2138 = vsub.f32 %v2109, %v2137
    %v2139 = vsel %vm2110, 1, 0
    %2140 = vset.pattern.permute.xlu0 0
    %2141 = vperm.xlu0 %2140, %v2139
    %v2142 = vpop.permute.xlu0 %2141
    %vm2143 = vcmp.eq.s32.totalorder %v2142, 1
    %v2144 = vsel %vm2143, %v637, %v639
    %v2145 = vsel %vm2120, 1, 0
    %2146 = vset.pattern.permute.xlu0 0
    %2147 = vperm.xlu0 %2146, %v2145
    %v2148 = vpop.permute.xlu0 %2147
    %vm2149 = vcmp.eq.s32.totalorder %v2148, 1
    %v2150 = vsel %vm2149, %v630, %v2144
    %vm2151 = vcmp.eq.s32.totalorder %v52, 11
    %2152 = vset.pattern.permute.xlu0 0
    %2153 = vperm.xlu0 %2152, %v2107
    %v2154 = vpop.permute.xlu0 %2153
    %v2155 = vsel %vm2151, %v2154, %v1988
    %v2156 = vadd.f32 %v1989, %v2122
    %v2157 = vadd.f32 %v1990, %v2138
    %s2158 = sld [smem:[#allocation2 + $0xc]]
    %v2159 = vadd.f32 %v2150, %v2061
    %v2160 = vxor.u32 %v2159, 2147483648
    %v2161 = vmul.f32 %v2160, 1.442695
    %v2162 = vpow.pop %v2161
    %v2163 = vadd.f32 %v2162, 1.0
    %v2164 = vrcp.pop %v2163
    %v2165 = vmul.f32 1.0, %v2164
    %v2166 = vtanh.pop %v2159
    %v2167 = vmul.f32 %v2165, %v2010
    %2169 = vrot.lane.b32.xlu0 %v2166, 64
    %v2170 = vpop.permute.xlu0 %2169
    %v2172 = vmul.f32 %v2165, %v2170
    %2174 = vrot.lane.b32.xlu0 %v2172, 32
    %v2175 = vpop.permute.xlu0 %2174
    %v2177 = vadd.f32 %v2167, %v2175
    %v2178 = vtanh.pop %v2177
    %2180 = vrot.lane.b32.xlu0 %v2178, 64
    %v2181 = vpop.permute.xlu0 %2180
    %v2183 = vmul.f32 %v2165, %v2181
    %v2184 = vpack.c.bf16 %v2183, %v2183
    %2186 = vrot.lane.b32.xlu0 %v2184, 32
    %v2187 = vpop.permute.xlu0 %2186
    %v2189 = vsel %vm108, %v2187, 0
    %2191 = vmatprep.subr.bf16.mxu0 0
    %2192 = vmatpush1.bf16.msra.mxu0 0
    %2193 = vmatprep.subr.bf16.mxu0 0
    %2194 = vmatpush1.bf16.msra.mxu0 0
    %2195 = vmatprep.subr.bf16.mxu0 0
    %2196 = vmatpush1.bf16.msra.mxu0 0
    %2197 = vmatprep.subr.bf16.mxu0 0
    %2198 = vmatpush1.bf16.msra.mxu0 0
    %2199 = vmatprep.subr.bf16.mxu0 0
    %2200 = vmatpush1.bf16.msra.mxu0 0
    %2201 = vmatprep.subr.bf16.mxu0 0
    %2202 = vmatpush1.bf16.msra.mxu0 0
    %2203 = vmatprep.subr.bf16.mxu0 %v303
    %2204 = vmatpush1.bf16.msra.mxu0 %v302
    %2205 = vmatprep.subr.bf16.mxu0 %v301
    %2206 = vmatpush1.bf16.msra.mxu0 %v300
    %2207 = vmatprep.subr.bf16.mxu0 0
    %2208 = vmatpush2.bf16.msra.mxu0 0
    %2209 = vmatprep.subr.bf16.mxu0 0
    %2210 = vmatpush2.bf16.msra.mxu0 0
    %2211 = vmatprep.subr.bf16.mxu0 0
    %2212 = vmatpush2.bf16.msra.mxu0 0
    %2213 = vmatprep.subr.bf16.mxu0 0
    %2214 = vmatpush2.bf16.msra.mxu0 0
    %2215 = vmatprep.subr.bf16.mxu0 0
    %2216 = vmatpush2.bf16.msra.mxu0 0
    %2217 = vmatprep.subr.bf16.mxu0 0
    %2218 = vmatpush2.bf16.msra.mxu0 0
    %2219 = vmatprep.subr.bf16.mxu0 0
    %2220 = vmatpush2.bf16.msra.mxu0 0
    %2221 = vmatprep.subr.bf16.mxu0 0
    %2222 = vmatpush2.bf16.msra.mxu0 0
    %2223 = vmatprep.mubr.bf16.mxu0 0
    %2224 = vmatmul.mubr.bf16.gmra.mxu0 %v2189
    %v2225 = vpop.f32.mrf.mxu0
    %v2226 = vadd.f32 0.0, %v2225
    %v2227 = vpop.f32.mrf.mxu0
    %v2228 = vadd.f32 0.0, %v2227
    %v2229 = vpop.f32.mrf.mxu0
    %v2230 = vpop.f32.mrf.mxu0
    %2231 = vdwg.mxu0
    %v2232 = vadd.f32 %v2226, %v353
    %2234 = vrot.lane.b32.xlu0 %v2232, 127
    %v2235 = vpop.permute.xlu0 %2234
    %v2237 = vmax.f32 %v2232, %v2235
    %2238 = vrot.lane.b32.xlu0 %v2232, 126
    %v2239 = vpop.permute.xlu0 %2238
    %v2241 = vmax.f32 %v2237, %v2239
    %v2242 = vsub.f32 %v2232, %v2241
    %2244 = vrot.lane.b32.xlu0 %v2241, 1
    %v2245 = vpop.permute.xlu0 %2244
    %v2247 = vsub.f32 %v2232, %v2245
    %2248 = vrot.lane.b32.xlu0 %v2241, 2
    %v2249 = vpop.permute.xlu0 %2248
    %v2251 = vsub.f32 %v2232, %v2249
    %v2252 = vmul.f32 %v2242, 1.442695
    %v2253 = vpow.pop %v2252
    %v2254 = vmul.f32 %v2247, 1.442695
    %v2255 = vpow.pop %v2254
    %v2256 = vmul.f32 %v2251, 1.442695
    %v2257 = vpow.pop %v2256
    %2259 = vrot.lane.b32.xlu0 %v2255, 127
    %v2260 = vpop.permute.xlu0 %2259
    %v2262 = vadd.f32 %v2253, %v2260
    %2264 = vrot.lane.b32.xlu0 %v2257, 126
    %v2265 = vpop.permute.xlu0 %2264
    %v2267 = vadd.f32 %v2262, %v2265
    %v2268 = vstv %s2158
    %v2269 = vmul.f32 %v2267, %v2268
    %vm2270 = vcmp.lt.f32.partialorder %v2253, %v2269
    %v2271 = vsel %vm2270, 1, 0
    %vm2272 = vcmp.lt.f32.partialorder %v2262, %v2269
    %v2273 = vsel %vm2272, 1, 0
    %v2274 = vadd.s32 %v2271, %v2273
    %v2275 = vlog2.pop %v2267
    %v2276 = vmul.f32 %v2275, 0.6931472
    %vm2277 = vcmp.eq.s32.totalorder %v2274, 1
    %2279 = vrot.lane.b32.xlu0 %v2247, 127
    %v2280 = vpop.permute.xlu0 %2279
    %2283 = vrot.lane.b32.xlu0 %v2251, 126
    %v2284 = vpop.permute.xlu0 %2283
    %v2286 = vsel %vm2277, %v2280, %v2284
    %vm2287 = vcmp.eq.s32.totalorder %v2274, 0
    %v2288 = vsel %vm2287, %v2242, %v2286
    %v2289 = vsub.f32 %v2288, %v2276
    %v2290 = vmul.f32 %v2253, %v2242
    %v2291 = vmul.f32 %v2255, %v2247
    %2293 = vrot.lane.b32.xlu0 %v2291, 127
    %v2294 = vpop.permute.xlu0 %2293
    %v2296 = vadd.f32 %v2290, %v2294
    %v2297 = vmul.f32 %v2257, %v2251
    %2299 = vrot.lane.b32.xlu0 %v2297, 126
    %v2300 = vpop.permute.xlu0 %2299
    %v2302 = vadd.f32 %v2296, %v2300
    %v2303 = vrcp.pop %v2267
    %v2304 = vmul.f32 %v2302, %v2303
    %v2305 = vsub.f32 %v2276, %v2304
    %v2306 = vsel %vm2277, 1, 0
    %2307 = vset.pattern.permute.xlu0 0
    %2308 = vperm.xlu0 %2307, %v2306
    %v2309 = vpop.permute.xlu0 %2308
    %vm2310 = vcmp.eq.s32.totalorder %v2309, 1
    %v2311 = vsel %vm2310, %v436, %v438
    %v2312 = vsel %vm2287, 1, 0
    %2313 = vset.pattern.permute.xlu0 0
    %2314 = vperm.xlu0 %2313, %v2312
    %v2315 = vpop.permute.xlu0 %2314
    %vm2316 = vcmp.eq.s32.totalorder %v2315, 1
    %v2317 = vsel %vm2316, %v429, %v2311
    %vm2318 = vcmp.eq.s32.totalorder %v52, 12
    %2319 = vset.pattern.permute.xlu0 0
    %2320 = vperm.xlu0 %2319, %v2274
    %v2321 = vpop.permute.xlu0 %2320
    %v2322 = vsel %vm2318, %v2321, %v2155
    %v2323 = vadd.f32 %v2156, %v2289
    %v2324 = vadd.f32 %v2157, %v2305
    %s2325 = sld [smem:[#allocation2 + $0xd]]
    %v2326 = vadd.f32 %v2317, %v2228
    %v2327 = vxor.u32 %v2326, 2147483648
    %v2328 = vmul.f32 %v2327, 1.442695
    %v2329 = vpow.pop %v2328
    %v2330 = vadd.f32 %v2329, 1.0
    %v2331 = vrcp.pop %v2330
    %v2332 = vmul.f32 1.0, %v2331
    %v2333 = vtanh.pop %v2326
    %v2334 = vmul.f32 %v2332, %v2177
    %2336 = vrot.lane.b32.xlu0 %v2333, 64
    %v2337 = vpop.permute.xlu0 %2336
    %v2339 = vmul.f32 %v2332, %v2337
    %2341 = vrot.lane.b32.xlu0 %v2339, 32
    %v2342 = vpop.permute.xlu0 %2341
    %v2344 = vadd.f32 %v2334, %v2342
    %v2345 = vtanh.pop %v2344
    %2347 = vrot.lane.b32.xlu0 %v2345, 64
    %v2348 = vpop.permute.xlu0 %2347
    %v2350 = vmul.f32 %v2332, %v2348
    %v2351 = vpack.c.bf16 %v2350, %v2350
    %2353 = vrot.lane.b32.xlu0 %v2351, 32
    %v2354 = vpop.permute.xlu0 %2353
    %v2356 = vsel %vm108, %v2354, 0
    %2358 = vmatprep.subr.bf16.mxu0 0
    %2359 = vmatpush1.bf16.msra.mxu0 0
    %2360 = vmatprep.subr.bf16.mxu0 0
    %2361 = vmatpush1.bf16.msra.mxu0 0
    %2362 = vmatprep.subr.bf16.mxu0 0
    %2363 = vmatpush1.bf16.msra.mxu0 0
    %2364 = vmatprep.subr.bf16.mxu0 0
    %2365 = vmatpush1.bf16.msra.mxu0 0
    %2366 = vmatprep.subr.bf16.mxu0 0
    %2367 = vmatpush1.bf16.msra.mxu0 0
    %2368 = vmatprep.subr.bf16.mxu0 0
    %2369 = vmatpush1.bf16.msra.mxu0 0
    %2370 = vmatprep.subr.bf16.mxu0 %v504
    %2371 = vmatpush1.bf16.msra.mxu0 %v503
    %2372 = vmatprep.subr.bf16.mxu0 %v502
    %2373 = vmatpush1.bf16.msra.mxu0 %v501
    %2374 = vmatprep.subr.bf16.mxu0 0
    %2375 = vmatpush2.bf16.msra.mxu0 0
    %2376 = vmatprep.subr.bf16.mxu0 0
    %2377 = vmatpush2.bf16.msra.mxu0 0
    %2378 = vmatprep.subr.bf16.mxu0 0
    %2379 = vmatpush2.bf16.msra.mxu0 0
    %2380 = vmatprep.subr.bf16.mxu0 0
    %2381 = vmatpush2.bf16.msra.mxu0 0
    %2382 = vmatprep.subr.bf16.mxu0 0
    %2383 = vmatpush2.bf16.msra.mxu0 0
    %2384 = vmatprep.subr.bf16.mxu0 0
    %2385 = vmatpush2.bf16.msra.mxu0 0
    %2386 = vmatprep.subr.bf16.mxu0 0
    %2387 = vmatpush2.bf16.msra.mxu0 0
    %2388 = vmatprep.subr.bf16.mxu0 0
    %2389 = vmatpush2.bf16.msra.mxu0 0
    %2390 = vmatprep.mubr.bf16.mxu0 0
    %2391 = vmatmul.mubr.bf16.gmra.mxu0 %v2356
    %v2392 = vpop.f32.mrf.mxu0
    %v2393 = vadd.f32 0.0, %v2392
    %v2394 = vpop.f32.mrf.mxu0
    %v2395 = vadd.f32 0.0, %v2394
    %v2396 = vpop.f32.mrf.mxu0
    %v2397 = vpop.f32.mrf.mxu0
    %2398 = vdwg.mxu0
    %v2399 = vadd.f32 %v2393, %v554
    %2401 = vrot.lane.b32.xlu0 %v2399, 127
    %v2402 = vpop.permute.xlu0 %2401
    %v2404 = vmax.f32 %v2399, %v2402
    %2405 = vrot.lane.b32.xlu0 %v2399, 126
    %v2406 = vpop.permute.xlu0 %2405
    %v2408 = vmax.f32 %v2404, %v2406
    %v2409 = vsub.f32 %v2399, %v2408
    %2411 = vrot.lane.b32.xlu0 %v2408, 1
    %v2412 = vpop.permute.xlu0 %2411
    %v2414 = vsub.f32 %v2399, %v2412
    %2415 = vrot.lane.b32.xlu0 %v2408, 2
    %v2416 = vpop.permute.xlu0 %2415
    %v2418 = vsub.f32 %v2399, %v2416
    %v2419 = vmul.f32 %v2409, 1.442695
    %v2420 = vpow.pop %v2419
    %v2421 = vmul.f32 %v2414, 1.442695
    %v2422 = vpow.pop %v2421
    %v2423 = vmul.f32 %v2418, 1.442695
    %v2424 = vpow.pop %v2423
    %2426 = vrot.lane.b32.xlu0 %v2422, 127
    %v2427 = vpop.permute.xlu0 %2426
    %v2429 = vadd.f32 %v2420, %v2427
    %2431 = vrot.lane.b32.xlu0 %v2424, 126
    %v2432 = vpop.permute.xlu0 %2431
    %v2434 = vadd.f32 %v2429, %v2432
    %v2435 = vstv %s2325
    %v2436 = vmul.f32 %v2434, %v2435
    %vm2437 = vcmp.lt.f32.partialorder %v2420, %v2436
    %v2438 = vsel %vm2437, 1, 0
    %vm2439 = vcmp.lt.f32.partialorder %v2429, %v2436
    %v2440 = vsel %vm2439, 1, 0
    %v2441 = vadd.s32 %v2438, %v2440
    %v2442 = vlog2.pop %v2434
    %v2443 = vmul.f32 %v2442, 0.6931472
    %vm2444 = vcmp.eq.s32.totalorder %v2441, 1
    %2446 = vrot.lane.b32.xlu0 %v2414, 127
    %v2447 = vpop.permute.xlu0 %2446
    %2450 = vrot.lane.b32.xlu0 %v2418, 126
    %v2451 = vpop.permute.xlu0 %2450
    %v2453 = vsel %vm2444, %v2447, %v2451
    %vm2454 = vcmp.eq.s32.totalorder %v2441, 0
    %v2455 = vsel %vm2454, %v2409, %v2453
    %v2456 = vsub.f32 %v2455, %v2443
    %v2457 = vmul.f32 %v2420, %v2409
    %v2458 = vmul.f32 %v2422, %v2414
    %2460 = vrot.lane.b32.xlu0 %v2458, 127
    %v2461 = vpop.permute.xlu0 %2460
    %v2463 = vadd.f32 %v2457, %v2461
    %v2464 = vmul.f32 %v2424, %v2418
    %2466 = vrot.lane.b32.xlu0 %v2464, 126
    %v2467 = vpop.permute.xlu0 %2466
    %v2469 = vadd.f32 %v2463, %v2467
    %v2470 = vrcp.pop %v2434
    %v2471 = vmul.f32 %v2469, %v2470
    %v2472 = vsub.f32 %v2443, %v2471
    %v2473 = vsel %vm2444, 1, 0
    %2474 = vset.pattern.permute.xlu0 0
    %2475 = vperm.xlu0 %2474, %v2473
    %v2476 = vpop.permute.xlu0 %2475
    %vm2477 = vcmp.eq.s32.totalorder %v2476, 1
    %v2478 = vsel %vm2477, %v637, %v639
    %v2479 = vsel %vm2454, 1, 0
    %2480 = vset.pattern.permute.xlu0 0
    %2481 = vperm.xlu0 %2480, %v2479
    %v2482 = vpop.permute.xlu0 %2481
    %vm2483 = vcmp.eq.s32.totalorder %v2482, 1
    %v2484 = vsel %vm2483, %v630, %v2478
    %vm2485 = vcmp.eq.s32.totalorder %v52, 13
    %2486 = vset.pattern.permute.xlu0 0
    %2487 = vperm.xlu0 %2486, %v2441
    %v2488 = vpop.permute.xlu0 %2487
    %v2489 = vsel %vm2485, %v2488, %v2322
    %v2490 = vadd.f32 %v2323, %v2456
    %v2491 = vadd.f32 %v2324, %v2472
    %s2492 = sld [smem:[#allocation2 + $0xe]]
    %v2493 = vadd.f32 %v2484, %v2395
    %v2494 = vxor.u32 %v2493, 2147483648
    %v2495 = vmul.f32 %v2494, 1.442695
    %v2496 = vpow.pop %v2495
    %v2497 = vadd.f32 %v2496, 1.0
    %v2498 = vrcp.pop %v2497
    %v2499 = vmul.f32 1.0, %v2498
    %v2500 = vtanh.pop %v2493
    %v2501 = vmul.f32 %v2499, %v2344
    %2503 = vrot.lane.b32.xlu0 %v2500, 64
    %v2504 = vpop.permute.xlu0 %2503
    %v2506 = vmul.f32 %v2499, %v2504
    %2508 = vrot.lane.b32.xlu0 %v2506, 32
    %v2509 = vpop.permute.xlu0 %2508
    %v2511 = vadd.f32 %v2501, %v2509
    %v2512 = vtanh.pop %v2511
    %2514 = vrot.lane.b32.xlu0 %v2512, 64
    %v2515 = vpop.permute.xlu0 %2514
    %v2517 = vmul.f32 %v2499, %v2515
    %v2518 = vpack.c.bf16 %v2517, %v2517
    %2520 = vrot.lane.b32.xlu0 %v2518, 32
    %v2521 = vpop.permute.xlu0 %2520
    %v2523 = vsel %vm108, %v2521, 0
    %2525 = vmatprep.subr.bf16.mxu0 0
    %2526 = vmatpush1.bf16.msra.mxu0 0
    %2527 = vmatprep.subr.bf16.mxu0 0
    %2528 = vmatpush1.bf16.msra.mxu0 0
    %2529 = vmatprep.subr.bf16.mxu0 0
    %2530 = vmatpush1.bf16.msra.mxu0 0
    %2531 = vmatprep.subr.bf16.mxu0 0
    %2532 = vmatpush1.bf16.msra.mxu0 0
    %2533 = vmatprep.subr.bf16.mxu0 0
    %2534 = vmatpush1.bf16.msra.mxu0 0
    %2535 = vmatprep.subr.bf16.mxu0 0
    %2536 = vmatpush1.bf16.msra.mxu0 0
    %2537 = vmatprep.subr.bf16.mxu0 %v303
    %2538 = vmatpush1.bf16.msra.mxu0 %v302
    %2539 = vmatprep.subr.bf16.mxu0 %v301
    %2540 = vmatpush1.bf16.msra.mxu0 %v300
    %2541 = vmatprep.subr.bf16.mxu0 0
    %2542 = vmatpush2.bf16.msra.mxu0 0
    %2543 = vmatprep.subr.bf16.mxu0 0
    %2544 = vmatpush2.bf16.msra.mxu0 0
    %2545 = vmatprep.subr.bf16.mxu0 0
    %2546 = vmatpush2.bf16.msra.mxu0 0
    %2547 = vmatprep.subr.bf16.mxu0 0
    %2548 = vmatpush2.bf16.msra.mxu0 0
    %2549 = vmatprep.subr.bf16.mxu0 0
    %2550 = vmatpush2.bf16.msra.mxu0 0
    %2551 = vmatprep.subr.bf16.mxu0 0
    %2552 = vmatpush2.bf16.msra.mxu0 0
    %2553 = vmatprep.subr.bf16.mxu0 0
    %2554 = vmatpush2.bf16.msra.mxu0 0
    %2555 = vmatprep.subr.bf16.mxu0 0
    %2556 = vmatpush2.bf16.msra.mxu0 0
    %2557 = vmatprep.mubr.bf16.mxu0 0
    %2558 = vmatmul.mubr.bf16.gmra.mxu0 %v2523
    %v2559 = vpop.f32.mrf.mxu0
    %v2560 = vadd.f32 0.0, %v2559
    %v2561 = vpop.f32.mrf.mxu0
    %v2562 = vadd.f32 0.0, %v2561
    %v2563 = vpop.f32.mrf.mxu0
    %v2564 = vpop.f32.mrf.mxu0
    %2565 = vdwg.mxu0
    %v2566 = vadd.f32 %v2560, %v353
    %2568 = vrot.lane.b32.xlu0 %v2566, 127
    %v2569 = vpop.permute.xlu0 %2568
    %v2571 = vmax.f32 %v2566, %v2569
    %2572 = vrot.lane.b32.xlu0 %v2566, 126
    %v2573 = vpop.permute.xlu0 %2572
    %v2575 = vmax.f32 %v2571, %v2573
    %v2576 = vsub.f32 %v2566, %v2575
    %2578 = vrot.lane.b32.xlu0 %v2575, 1
    %v2579 = vpop.permute.xlu0 %2578
    %v2581 = vsub.f32 %v2566, %v2579
    %2582 = vrot.lane.b32.xlu0 %v2575, 2
    %v2583 = vpop.permute.xlu0 %2582
    %v2585 = vsub.f32 %v2566, %v2583
    %v2586 = vmul.f32 %v2576, 1.442695
    %v2587 = vpow.pop %v2586
    %v2588 = vmul.f32 %v2581, 1.442695
    %v2589 = vpow.pop %v2588
    %v2590 = vmul.f32 %v2585, 1.442695
    %v2591 = vpow.pop %v2590
    %2593 = vrot.lane.b32.xlu0 %v2589, 127
    %v2594 = vpop.permute.xlu0 %2593
    %v2596 = vadd.f32 %v2587, %v2594
    %2598 = vrot.lane.b32.xlu0 %v2591, 126
    %v2599 = vpop.permute.xlu0 %2598
    %v2601 = vadd.f32 %v2596, %v2599
    %v2602 = vstv %s2492
    %v2603 = vmul.f32 %v2601, %v2602
    %vm2604 = vcmp.lt.f32.partialorder %v2587, %v2603
    %v2605 = vsel %vm2604, 1, 0
    %vm2606 = vcmp.lt.f32.partialorder %v2596, %v2603
    %v2607 = vsel %vm2606, 1, 0
    %v2608 = vadd.s32 %v2605, %v2607
    %v2609 = vlog2.pop %v2601
    %v2610 = vmul.f32 %v2609, 0.6931472
    %vm2611 = vcmp.eq.s32.totalorder %v2608, 1
    %2613 = vrot.lane.b32.xlu0 %v2581, 127
    %v2614 = vpop.permute.xlu0 %2613
    %2617 = vrot.lane.b32.xlu0 %v2585, 126
    %v2618 = vpop.permute.xlu0 %2617
    %v2620 = vsel %vm2611, %v2614, %v2618
    %vm2621 = vcmp.eq.s32.totalorder %v2608, 0
    %v2622 = vsel %vm2621, %v2576, %v2620
    %v2623 = vsub.f32 %v2622, %v2610
    %v2624 = vmul.f32 %v2587, %v2576
    %v2625 = vmul.f32 %v2589, %v2581
    %2627 = vrot.lane.b32.xlu0 %v2625, 127
    %v2628 = vpop.permute.xlu0 %2627
    %v2630 = vadd.f32 %v2624, %v2628
    %v2631 = vmul.f32 %v2591, %v2585
    %2633 = vrot.lane.b32.xlu0 %v2631, 126
    %v2634 = vpop.permute.xlu0 %2633
    %v2636 = vadd.f32 %v2630, %v2634
    %v2637 = vrcp.pop %v2601
    %v2638 = vmul.f32 %v2636, %v2637
    %v2639 = vsub.f32 %v2610, %v2638
    %v2640 = vsel %vm2611, 1, 0
    %2641 = vset.pattern.permute.xlu0 0
    %2642 = vperm.xlu0 %2641, %v2640
    %v2643 = vpop.permute.xlu0 %2642
    %vm2644 = vcmp.eq.s32.totalorder %v2643, 1
    %v2645 = vsel %vm2644, %v436, %v438
    %v2646 = vsel %vm2621, 1, 0
    %2647 = vset.pattern.permute.xlu0 0
    %2648 = vperm.xlu0 %2647, %v2646
    %v2649 = vpop.permute.xlu0 %2648
    %vm2650 = vcmp.eq.s32.totalorder %v2649, 1
    %v2651 = vsel %vm2650, %v429, %v2645
    %vm2652 = vcmp.eq.s32.totalorder %v52, 14
    %2653 = vset.pattern.permute.xlu0 0
    %2654 = vperm.xlu0 %2653, %v2608
    %v2655 = vpop.permute.xlu0 %2654
    %v2656 = vsel %vm2652, %v2655, %v2489
    %v2657 = vadd.f32 %v2490, %v2623
    %v2658 = vadd.f32 %v2491, %v2639
    %s2659 = sld [smem:[#allocation2 + $0xf]]
    %v2660 = vadd.f32 %v2651, %v2562
    %v2661 = vxor.u32 %v2660, 2147483648
    %v2662 = vmul.f32 %v2661, 1.442695
    %v2663 = vpow.pop %v2662
    %v2664 = vadd.f32 %v2663, 1.0
    %v2665 = vrcp.pop %v2664
    %v2666 = vmul.f32 1.0, %v2665
    %v2667 = vtanh.pop %v2660
    %v2668 = vmul.f32 %v2666, %v2511
    %2670 = vrot.lane.b32.xlu0 %v2667, 64
    %v2671 = vpop.permute.xlu0 %2670
    %v2673 = vmul.f32 %v2666, %v2671
    %2675 = vrot.lane.b32.xlu0 %v2673, 32
    %v2676 = vpop.permute.xlu0 %2675
    %v2678 = vadd.f32 %v2668, %v2676
    %v2679 = vtanh.pop %v2678
    %2681 = vrot.lane.b32.xlu0 %v2679, 64
    %v2682 = vpop.permute.xlu0 %2681
    %v2684 = vmul.f32 %v2666, %v2682
    %v2685 = vpack.c.bf16 %v2684, %v2684
    %2687 = vrot.lane.b32.xlu0 %v2685, 32
    %v2688 = vpop.permute.xlu0 %2687
    %v2690 = vsel %vm108, %v2688, 0
    %2692 = vmatprep.subr.bf16.mxu0 0
    %2693 = vmatpush1.bf16.msra.mxu0 0
    %2694 = vmatprep.subr.bf16.mxu0 0
    %2695 = vmatpush1.bf16.msra.mxu0 0
    %2696 = vmatprep.subr.bf16.mxu0 0
    %2697 = vmatpush1.bf16.msra.mxu0 0
    %2698 = vmatprep.subr.bf16.mxu0 0
    %2699 = vmatpush1.bf16.msra.mxu0 0
    %2700 = vmatprep.subr.bf16.mxu0 0
    %2701 = vmatpush1.bf16.msra.mxu0 0
    %2702 = vmatprep.subr.bf16.mxu0 0
    %2703 = vmatpush1.bf16.msra.mxu0 0
    %2704 = vmatprep.subr.bf16.mxu0 %v504
    %2705 = vmatpush1.bf16.msra.mxu0 %v503
    %2706 = vmatprep.subr.bf16.mxu0 %v502
    %2707 = vmatpush1.bf16.msra.mxu0 %v501
    %2708 = vmatprep.subr.bf16.mxu0 0
    %2709 = vmatpush2.bf16.msra.mxu0 0
    %2710 = vmatprep.subr.bf16.mxu0 0
    %2711 = vmatpush2.bf16.msra.mxu0 0
    %2712 = vmatprep.subr.bf16.mxu0 0
    %2713 = vmatpush2.bf16.msra.mxu0 0
    %2714 = vmatprep.subr.bf16.mxu0 0
    %2715 = vmatpush2.bf16.msra.mxu0 0
    %2716 = vmatprep.subr.bf16.mxu0 0
    %2717 = vmatpush2.bf16.msra.mxu0 0
    %2718 = vmatprep.subr.bf16.mxu0 0
    %2719 = vmatpush2.bf16.msra.mxu0 0
    %2720 = vmatprep.subr.bf16.mxu0 0
    %2721 = vmatpush2.bf16.msra.mxu0 0
    %2722 = vmatprep.subr.bf16.mxu0 0
    %2723 = vmatpush2.bf16.msra.mxu0 0
    %2724 = vmatprep.mubr.bf16.mxu0 0
    %2725 = vmatmul.mubr.bf16.gmra.mxu0 %v2690
    %v2726 = vpop.f32.mrf.mxu0
    %v2727 = vadd.f32 0.0, %v2726
    %v2728 = vpop.f32.mrf.mxu0
    %v2729 = vadd.f32 0.0, %v2728
    %v2730 = vpop.f32.mrf.mxu0
    %v2731 = vpop.f32.mrf.mxu0
    %2732 = vdwg.mxu0
    %v2733 = vadd.f32 %v2727, %v554
    %2735 = vrot.lane.b32.xlu0 %v2733, 127
    %v2736 = vpop.permute.xlu0 %2735
    %v2738 = vmax.f32 %v2733, %v2736
    %2739 = vrot.lane.b32.xlu0 %v2733, 126
    %v2740 = vpop.permute.xlu0 %2739
    %v2742 = vmax.f32 %v2738, %v2740
    %v2743 = vsub.f32 %v2733, %v2742
    %2745 = vrot.lane.b32.xlu0 %v2742, 1
    %v2746 = vpop.permute.xlu0 %2745
    %v2748 = vsub.f32 %v2733, %v2746
    %2749 = vrot.lane.b32.xlu0 %v2742, 2
    %v2750 = vpop.permute.xlu0 %2749
    %v2752 = vsub.f32 %v2733, %v2750
    %v2753 = vmul.f32 %v2743, 1.442695
    %v2754 = vpow.pop %v2753
    %v2755 = vmul.f32 %v2748, 1.442695
    %v2756 = vpow.pop %v2755
    %v2757 = vmul.f32 %v2752, 1.442695
    %v2758 = vpow.pop %v2757
    %2760 = vrot.lane.b32.xlu0 %v2756, 127
    %v2761 = vpop.permute.xlu0 %2760
    %v2763 = vadd.f32 %v2754, %v2761
    %2765 = vrot.lane.b32.xlu0 %v2758, 126
    %v2766 = vpop.permute.xlu0 %2765
    %v2768 = vadd.f32 %v2763, %v2766
    %v2769 = vstv %s2659
    %v2770 = vmul.f32 %v2768, %v2769
    %vm2771 = vcmp.lt.f32.partialorder %v2754, %v2770
    %v2772 = vsel %vm2771, 1, 0
    %vm2773 = vcmp.lt.f32.partialorder %v2763, %v2770
    %v2774 = vsel %vm2773, 1, 0
    %v2775 = vadd.s32 %v2772, %v2774
    %v2776 = vlog2.pop %v2768
    %v2777 = vmul.f32 %v2776, 0.6931472
    %vm2778 = vcmp.eq.s32.totalorder %v2775, 1
    %2780 = vrot.lane.b32.xlu0 %v2748, 127
    %v2781 = vpop.permute.xlu0 %2780
    %2784 = vrot.lane.b32.xlu0 %v2752, 126
    %v2785 = vpop.permute.xlu0 %2784
    %v2787 = vsel %vm2778, %v2781, %v2785
    %vm2788 = vcmp.eq.s32.totalorder %v2775, 0
    %v2789 = vsel %vm2788, %v2743, %v2787
    %v2790 = vsub.f32 %v2789, %v2777
    %v2791 = vmul.f32 %v2754, %v2743
    %v2792 = vmul.f32 %v2756, %v2748
    %2794 = vrot.lane.b32.xlu0 %v2792, 127
    %v2795 = vpop.permute.xlu0 %2794
    %v2797 = vadd.f32 %v2791, %v2795
    %v2798 = vmul.f32 %v2758, %v2752
    %2800 = vrot.lane.b32.xlu0 %v2798, 126
    %v2801 = vpop.permute.xlu0 %2800
    %v2803 = vadd.f32 %v2797, %v2801
    %v2804 = vrcp.pop %v2768
    %v2805 = vmul.f32 %v2803, %v2804
    %v2806 = vsub.f32 %v2777, %v2805
    %v2807 = vsel %vm2778, 1, 0
    %2808 = vset.pattern.permute.xlu0 0
    %2809 = vperm.xlu0 %2808, %v2807
    %v2810 = vpop.permute.xlu0 %2809
    %vm2811 = vcmp.eq.s32.totalorder %v2810, 1
    %v2812 = vsel %vm2811, %v637, %v639
    %v2813 = vsel %vm2788, 1, 0
    %2814 = vset.pattern.permute.xlu0 0
    %2815 = vperm.xlu0 %2814, %v2813
    %v2816 = vpop.permute.xlu0 %2815
    %vm2817 = vcmp.eq.s32.totalorder %v2816, 1
    %v2818 = vsel %vm2817, %v630, %v2812
    %vm2819 = vcmp.eq.s32.totalorder %v52, 15
    %2820 = vset.pattern.permute.xlu0 0
    %2821 = vperm.xlu0 %2820, %v2775
    %v2822 = vpop.permute.xlu0 %2821
    %v2823 = vsel %vm2819, %v2822, %v2656
    %v2824 = vadd.f32 %v2657, %v2790
    %v2825 = vadd.f32 %v2658, %v2806
    %s2826 = sld [smem:[#allocation2 + $0x10]]
    %v2827 = vadd.f32 %v2818, %v2729
    %v2828 = vxor.u32 %v2827, 2147483648
    %v2829 = vmul.f32 %v2828, 1.442695
    %v2830 = vpow.pop %v2829
    %v2831 = vadd.f32 %v2830, 1.0
    %v2832 = vrcp.pop %v2831
    %v2833 = vmul.f32 1.0, %v2832
    %v2834 = vtanh.pop %v2827
    %v2835 = vmul.f32 %v2833, %v2678
    %2837 = vrot.lane.b32.xlu0 %v2834, 64
    %v2838 = vpop.permute.xlu0 %2837
    %v2840 = vmul.f32 %v2833, %v2838
    %2842 = vrot.lane.b32.xlu0 %v2840, 32
    %v2843 = vpop.permute.xlu0 %2842
    %v2845 = vadd.f32 %v2835, %v2843
    %v2846 = vtanh.pop %v2845
    %2848 = vrot.lane.b32.xlu0 %v2846, 64
    %v2849 = vpop.permute.xlu0 %2848
    %v2851 = vmul.f32 %v2833, %v2849
    %v2852 = vpack.c.bf16 %v2851, %v2851
    %2854 = vrot.lane.b32.xlu0 %v2852, 32
    %v2855 = vpop.permute.xlu0 %2854
    %v2857 = vsel %vm108, %v2855, 0
    %2859 = vmatprep.subr.bf16.mxu0 0
    %2860 = vmatpush1.bf16.msra.mxu0 0
    %2861 = vmatprep.subr.bf16.mxu0 0
    %2862 = vmatpush1.bf16.msra.mxu0 0
    %2863 = vmatprep.subr.bf16.mxu0 0
    %2864 = vmatpush1.bf16.msra.mxu0 0
    %2865 = vmatprep.subr.bf16.mxu0 0
    %2866 = vmatpush1.bf16.msra.mxu0 0
    %2867 = vmatprep.subr.bf16.mxu0 0
    %2868 = vmatpush1.bf16.msra.mxu0 0
    %2869 = vmatprep.subr.bf16.mxu0 0
    %2870 = vmatpush1.bf16.msra.mxu0 0
    %2871 = vmatprep.subr.bf16.mxu0 %v303
    %2872 = vmatpush1.bf16.msra.mxu0 %v302
    %2873 = vmatprep.subr.bf16.mxu0 %v301
    %2874 = vmatpush1.bf16.msra.mxu0 %v300
    %2875 = vmatprep.subr.bf16.mxu0 0
    %2876 = vmatpush2.bf16.msra.mxu0 0
    %2877 = vmatprep.subr.bf16.mxu0 0
    %2878 = vmatpush2.bf16.msra.mxu0 0
    %2879 = vmatprep.subr.bf16.mxu0 0
    %2880 = vmatpush2.bf16.msra.mxu0 0
    %2881 = vmatprep.subr.bf16.mxu0 0
    %2882 = vmatpush2.bf16.msra.mxu0 0
    %2883 = vmatprep.subr.bf16.mxu0 0
    %2884 = vmatpush2.bf16.msra.mxu0 0
    %2885 = vmatprep.subr.bf16.mxu0 0
    %2886 = vmatpush2.bf16.msra.mxu0 0
    %2887 = vmatprep.subr.bf16.mxu0 0
    %2888 = vmatpush2.bf16.msra.mxu0 0
    %2889 = vmatprep.subr.bf16.mxu0 0
    %2890 = vmatpush2.bf16.msra.mxu0 0
    %2891 = vmatprep.mubr.bf16.mxu0 0
    %2892 = vmatmul.mubr.bf16.gmra.mxu0 %v2857
    %v2893 = vpop.f32.mrf.mxu0
    %v2894 = vadd.f32 0.0, %v2893
    %v2895 = vpop.f32.mrf.mxu0
    %v2896 = vadd.f32 0.0, %v2895
    %v2897 = vpop.f32.mrf.mxu0
    %v2898 = vpop.f32.mrf.mxu0
    %2899 = vdwg.mxu0
    %v2900 = vadd.f32 %v2894, %v353
    %2902 = vrot.lane.b32.xlu0 %v2900, 127
    %v2903 = vpop.permute.xlu0 %2902
    %v2905 = vmax.f32 %v2900, %v2903
    %2906 = vrot.lane.b32.xlu0 %v2900, 126
    %v2907 = vpop.permute.xlu0 %2906
    %v2909 = vmax.f32 %v2905, %v2907
    %v2910 = vsub.f32 %v2900, %v2909
    %2912 = vrot.lane.b32.xlu0 %v2909, 1
    %v2913 = vpop.permute.xlu0 %2912
    %v2915 = vsub.f32 %v2900, %v2913
    %2916 = vrot.lane.b32.xlu0 %v2909, 2
    %v2917 = vpop.permute.xlu0 %2916
    %v2919 = vsub.f32 %v2900, %v2917
    %v2920 = vmul.f32 %v2910, 1.442695
    %v2921 = vpow.pop %v2920
    %v2922 = vmul.f32 %v2915, 1.442695
    %v2923 = vpow.pop %v2922
    %v2924 = vmul.f32 %v2919, 1.442695
    %v2925 = vpow.pop %v2924
    %2927 = vrot.lane.b32.xlu0 %v2923, 127
    %v2928 = vpop.permute.xlu0 %2927
    %v2930 = vadd.f32 %v2921, %v2928
    %2932 = vrot.lane.b32.xlu0 %v2925, 126
    %v2933 = vpop.permute.xlu0 %2932
    %v2935 = vadd.f32 %v2930, %v2933
    %v2936 = vstv %s2826
    %v2937 = vmul.f32 %v2935, %v2936
    %vm2938 = vcmp.lt.f32.partialorder %v2921, %v2937
    %v2939 = vsel %vm2938, 1, 0
    %vm2940 = vcmp.lt.f32.partialorder %v2930, %v2937
    %v2941 = vsel %vm2940, 1, 0
    %v2942 = vadd.s32 %v2939, %v2941
    %v2943 = vlog2.pop %v2935
    %v2944 = vmul.f32 %v2943, 0.6931472
    %vm2945 = vcmp.eq.s32.totalorder %v2942, 1
    %2947 = vrot.lane.b32.xlu0 %v2915, 127
    %v2948 = vpop.permute.xlu0 %2947
    %2951 = vrot.lane.b32.xlu0 %v2919, 126
    %v2952 = vpop.permute.xlu0 %2951
    %v2954 = vsel %vm2945, %v2948, %v2952
    %vm2955 = vcmp.eq.s32.totalorder %v2942, 0
    %v2956 = vsel %vm2955, %v2910, %v2954
    %v2957 = vsub.f32 %v2956, %v2944
    %v2958 = vmul.f32 %v2921, %v2910
    %v2959 = vmul.f32 %v2923, %v2915
    %2961 = vrot.lane.b32.xlu0 %v2959, 127
    %v2962 = vpop.permute.xlu0 %2961
    %v2964 = vadd.f32 %v2958, %v2962
    %v2965 = vmul.f32 %v2925, %v2919
    %2967 = vrot.lane.b32.xlu0 %v2965, 126
    %v2968 = vpop.permute.xlu0 %2967
    %v2970 = vadd.f32 %v2964, %v2968
    %v2971 = vrcp.pop %v2935
    %v2972 = vmul.f32 %v2970, %v2971
    %v2973 = vsub.f32 %v2944, %v2972
    %v2974 = vsel %vm2945, 1, 0
    %2975 = vset.pattern.permute.xlu0 0
    %2976 = vperm.xlu0 %2975, %v2974
    %v2977 = vpop.permute.xlu0 %2976
    %vm2978 = vcmp.eq.s32.totalorder %v2977, 1
    %v2979 = vsel %vm2978, %v436, %v438
    %v2980 = vsel %vm2955, 1, 0
    %2981 = vset.pattern.permute.xlu0 0
    %2982 = vperm.xlu0 %2981, %v2980
    %v2983 = vpop.permute.xlu0 %2982
    %vm2984 = vcmp.eq.s32.totalorder %v2983, 1
    %v2985 = vsel %vm2984, %v429, %v2979
    %vm2986 = vcmp.eq.s32.totalorder %v52, 16
    %2987 = vset.pattern.permute.xlu0 0
    %2988 = vperm.xlu0 %2987, %v2942
    %v2989 = vpop.permute.xlu0 %2988
    %v2990 = vsel %vm2986, %v2989, %v2823
    %v2991 = vadd.f32 %v2824, %v2957
    %v2992 = vadd.f32 %v2825, %v2973
    %s2993 = sld [smem:[#allocation2 + $0x11]]
    %v2994 = vadd.f32 %v2985, %v2896
    %v2995 = vxor.u32 %v2994, 2147483648
    %v2996 = vmul.f32 %v2995, 1.442695
    %v2997 = vpow.pop %v2996
    %v2998 = vadd.f32 %v2997, 1.0
    %v2999 = vrcp.pop %v2998
    %v3000 = vmul.f32 1.0, %v2999
    %v3001 = vtanh.pop %v2994
    %v3002 = vmul.f32 %v3000, %v2845
    %3004 = vrot.lane.b32.xlu0 %v3001, 64
    %v3005 = vpop.permute.xlu0 %3004
    %v3007 = vmul.f32 %v3000, %v3005
    %3009 = vrot.lane.b32.xlu0 %v3007, 32
    %v3010 = vpop.permute.xlu0 %3009
    %v3012 = vadd.f32 %v3002, %v3010
    %v3013 = vtanh.pop %v3012
    %3015 = vrot.lane.b32.xlu0 %v3013, 64
    %v3016 = vpop.permute.xlu0 %3015
    %v3018 = vmul.f32 %v3000, %v3016
    %v3019 = vpack.c.bf16 %v3018, %v3018
    %3021 = vrot.lane.b32.xlu0 %v3019, 32
    %v3022 = vpop.permute.xlu0 %3021
    %v3024 = vsel %vm108, %v3022, 0
    %3026 = vmatprep.subr.bf16.mxu0 0
    %3027 = vmatpush1.bf16.msra.mxu0 0
    %3028 = vmatprep.subr.bf16.mxu0 0
    %3029 = vmatpush1.bf16.msra.mxu0 0
    %3030 = vmatprep.subr.bf16.mxu0 0
    %3031 = vmatpush1.bf16.msra.mxu0 0
    %3032 = vmatprep.subr.bf16.mxu0 0
    %3033 = vmatpush1.bf16.msra.mxu0 0
    %3034 = vmatprep.subr.bf16.mxu0 0
    %3035 = vmatpush1.bf16.msra.mxu0 0
    %3036 = vmatprep.subr.bf16.mxu0 0
    %3037 = vmatpush1.bf16.msra.mxu0 0
    %3038 = vmatprep.subr.bf16.mxu0 %v504
    %3039 = vmatpush1.bf16.msra.mxu0 %v503
    %3040 = vmatprep.subr.bf16.mxu0 %v502
    %3041 = vmatpush1.bf16.msra.mxu0 %v501
    %3042 = vmatprep.subr.bf16.mxu0 0
    %3043 = vmatpush2.bf16.msra.mxu0 0
    %3044 = vmatprep.subr.bf16.mxu0 0
    %3045 = vmatpush2.bf16.msra.mxu0 0
    %3046 = vmatprep.subr.bf16.mxu0 0
    %3047 = vmatpush2.bf16.msra.mxu0 0
    %3048 = vmatprep.subr.bf16.mxu0 0
    %3049 = vmatpush2.bf16.msra.mxu0 0
    %3050 = vmatprep.subr.bf16.mxu0 0
    %3051 = vmatpush2.bf16.msra.mxu0 0
    %3052 = vmatprep.subr.bf16.mxu0 0
    %3053 = vmatpush2.bf16.msra.mxu0 0
    %3054 = vmatprep.subr.bf16.mxu0 0
    %3055 = vmatpush2.bf16.msra.mxu0 0
    %3056 = vmatprep.subr.bf16.mxu0 0
    %3057 = vmatpush2.bf16.msra.mxu0 0
    %3058 = vmatprep.mubr.bf16.mxu0 0
    %3059 = vmatmul.mubr.bf16.gmra.mxu0 %v3024
    %v3060 = vpop.f32.mrf.mxu0
    %v3061 = vadd.f32 0.0, %v3060
    %v3062 = vpop.f32.mrf.mxu0
    %v3063 = vpop.f32.mrf.mxu0
    %v3064 = vpop.f32.mrf.mxu0
    %3065 = vdwg.mxu0
    %v3066 = vadd.f32 %v3061, %v554
    %3068 = vrot.lane.b32.xlu0 %v3066, 127
    %v3069 = vpop.permute.xlu0 %3068
    %v3071 = vmax.f32 %v3066, %v3069
    %3072 = vrot.lane.b32.xlu0 %v3066, 126
    %v3073 = vpop.permute.xlu0 %3072
    %v3075 = vmax.f32 %v3071, %v3073
    %v3076 = vsub.f32 %v3066, %v3075
    %3078 = vrot.lane.b32.xlu0 %v3075, 1
    %v3079 = vpop.permute.xlu0 %3078
    %v3081 = vsub.f32 %v3066, %v3079
    %3082 = vrot.lane.b32.xlu0 %v3075, 2
    %v3083 = vpop.permute.xlu0 %3082
    %v3085 = vsub.f32 %v3066, %v3083
    %v3086 = vmul.f32 %v3076, 1.442695
    %v3087 = vpow.pop %v3086
    %v3088 = vmul.f32 %v3081, 1.442695
    %v3089 = vpow.pop %v3088
    %v3090 = vmul.f32 %v3085, 1.442695
    %v3091 = vpow.pop %v3090
    %3093 = vrot.lane.b32.xlu0 %v3089, 127
    %v3094 = vpop.permute.xlu0 %3093
    %v3096 = vadd.f32 %v3087, %v3094
    %3098 = vrot.lane.b32.xlu0 %v3091, 126
    %v3099 = vpop.permute.xlu0 %3098
    %v3101 = vadd.f32 %v3096, %v3099
    %v3102 = vstv %s2993
    %v3103 = vmul.f32 %v3101, %v3102
    %vm3104 = vcmp.lt.f32.partialorder %v3087, %v3103
    %v3105 = vsel %vm3104, 1, 0
    %vm3106 = vcmp.lt.f32.partialorder %v3096, %v3103
    %v3107 = vsel %vm3106, 1, 0
    %v3108 = vadd.s32 %v3105, %v3107
    %v3109 = vlog2.pop %v3101
    %v3110 = vmul.f32 %v3109, 0.6931472
    %vm3111 = vcmp.eq.s32.totalorder %v3108, 1
    %3113 = vrot.lane.b32.xlu0 %v3081, 127
    %v3114 = vpop.permute.xlu0 %3113
    %3117 = vrot.lane.b32.xlu0 %v3085, 126
    %v3118 = vpop.permute.xlu0 %3117
    %v3120 = vsel %vm3111, %v3114, %v3118
    %vm3121 = vcmp.eq.s32.totalorder %v3108, 0
    %v3122 = vsel %vm3121, %v3076, %v3120
    %v3123 = vsub.f32 %v3122, %v3110
    %v3124 = vmul.f32 %v3087, %v3076
    %v3125 = vmul.f32 %v3089, %v3081
    %3127 = vrot.lane.b32.xlu0 %v3125, 127
    %v3128 = vpop.permute.xlu0 %3127
    %v3130 = vadd.f32 %v3124, %v3128
    %v3131 = vmul.f32 %v3091, %v3085
    %3133 = vrot.lane.b32.xlu0 %v3131, 126
    %v3134 = vpop.permute.xlu0 %3133
    %v3136 = vadd.f32 %v3130, %v3134
    %v3137 = vrcp.pop %v3101
    %v3138 = vmul.f32 %v3136, %v3137
    %v3139 = vsub.f32 %v3110, %v3138
    %vm3140 = vcmp.eq.s32.totalorder %v52, 17
    %3141 = vset.pattern.permute.xlu0 0
    %3142 = vperm.xlu0 %3141, %v3108
    %v3143 = vpop.permute.xlu0 %3142
    %v3144 = vsel %vm3140, %v3143, %v2990
    %v3145 = vadd.f32 %v2991, %v3123
    %v3146 = vadd.f32 %v2992, %v3139
    %3147 = vst [vmem:[%s5] sm:$0x1] %v3144
    %v3148 = vadd.f32 %v3145, 0.0
    %s3149 = vtos %v3148
    %s3150 = scalar_lea.smem [#allocation7], 0
    %3151 = sst [smem:[%s3150]] %s3149
    %v3152 = vadd.f32 %v3146, 0.0
    %s3153 = vtos %v3152
    %s3154 = scalar_lea.smem [#allocation7], 1
    %3155 = sst [smem:[%s3154]] %s3153
    // Predicated region
    $region30: #{sample.1} parent=1 // pred_check
      _
    $region31: #{sample.1} parent=1 // pred_check_branch
      %3157 = sbr.rel (0) target = $region33
    $region32: #{sample.1} parent=1 // pred_region
      _
    $region33: #{sample.1} parent=1 // pred_fallthru
      _
    // Predicated region
    $region34: #{sample.1} parent=1 // pred_check
      _
    $region35: #{sample.1} parent=1 // pred_check_branch
      %3159 = sbr.rel (0) target = $region37
    $region36: #{sample.1} parent=1 // pred_region
      %s3161 = ssub.s32 16, 16
      %3162 = vsyncadd [#allocation4], %s3161
      %3165 = dma.smem_to_hbm [#allocation7], 16, %s6, [#allocation4]
    $region37: #{sample.1} parent=1 // pred_fallthru
      _
    // Predicated region
    $region38: #{sample.1} parent=1 // pred_check
      _
    $region39: #{sample.1} parent=1 // pred_check_branch
      %3167 = sbr.rel (0) target = $region41
    $region40: #{sample.1} parent=1 // pred_region
      _
    $region41: #{sample.1} parent=1 // pred_fallthru
      _
    // Predicated region
    $region42: #{sample.1} parent=1 // pred_check
      _
    $region43: #{sample.1} parent=1 // pred_check_branch
      %3169 = sbr.rel (0) target = $region45
    $region44: #{sample.1} parent=1 // pred_region
      %3170 = dma.done [#allocation4], 16
    $region45: #{sample.1} parent=1 // pred_fallthru
      _
    %3171 = sfence
    %3172 = vsyncpa [#allocation3], 1
    %3173 = vsyncpa [#allocation4], 1
    %3174 = vsyncpa [#allocation5], 1

</llo_original>
